<compile_context>
chip_gen: v6e
topology: v6e:2x2x1
jax: 0.10.0
libtpu: 0.0.40
codegen_flags: <defaults>
</compile_context>

<pallas_src>
import functools

import jax
import jax.numpy as jnp
from jax import lax
from jax.experimental import pallas as pl
from jax.experimental.pallas import tpu as pltpu


def _round_up(x, m):
    return (x + m - 1) // m * m


def _pick_vmem_limit():
    # v5e/v6e: 128 MiB physical VMEM -> 64 MiB scoped budget; v7x: 64 MiB physical -> 32 MiB.
    try:
        cap = pltpu.get_tpu_info().vmem_capacity_bytes
    except Exception:
        cap = 64 * 1024 * 1024
    return 64 * 1024 * 1024 if cap >= 100 * 1024 * 1024 else 32 * 1024 * 1024


# ----------------------------------------------------------------------------
# XLA glue: pad-1 + stride-2 phase split (~1x activation bytes; replaces the 9x im2col)
# ----------------------------------------------------------------------------
def _phase_split_3x3_s2_p1(x_nhwc, Ho, Wo):
    """x:(N,H,W,C) -> phases:(N,4,Sp,C) bf16 plus static layout ints (Wh, M_pad, Sp).

    For a 3x3 / stride-2 / pad-1 conv, tap (kh,kw) of output (i,j) reads padded x[2i+kh, 2j+kw],
    which lives in phase p=2*(kh&1)+(kw&1) at flattened row (i+(kh>>1))*Wh + (j+(kw>>1)).  So in
    the kernel every tap is one contiguous slice [s, s+M) with s=(kh>>1)*Wh+(kw>>1); rows whose
    column index >= Wo (or row index >= Ho) are junk and get masked / sliced away downstream.
    """
    N, H, W, C = x_nhwc.shape
    x_bf = x_nhwc.astype(jnp.bfloat16)              # bf16 before any data movement
    Hp = _round_up(H + 2, 2)
    Wp = _round_up(W + 2, 2)
    xp = jnp.pad(x_bf, ((0, 0), (1, Hp - H - 1), (1, Wp - W - 1), (0, 0)))
    Hh, Wh = Hp // 2, Wp // 2                       # Hh >= Ho+1, Wh >= Wo+1
    phases = [xp[:, a::2, b::2, :] for a in (0, 1) for b in (0, 1)]   # phase index p = 2*a + b
    ph = jnp.stack(phases, axis=1).reshape(N, 4, Hh * Wh, C)
    M_pad = _round_up(Ho * Wh, 16)                  # tap-matrix rows (16 = bf16 sublane packing)
    Sp = _round_up(max(Hh * Wh, (Wh + 1) + M_pad), 16)
    ph = jnp.pad(ph, ((0, 0), (0, 0), (0, Sp - Hh * Wh), (0, 0)))
    return ph, Wh, M_pad, Sp


# ----------------------------------------------------------------------------
# In-kernel 3x3 stride-2 conv from the phase-split block (9 accumulating MXU matmuls)
# ----------------------------------------------------------------------------
def _tap_conv_relu(x_ref, w_ref, b_ref, *, Wh, M):
    """x_ref:(1,4,Sp,Cin) bf16, w_ref:(9,Cin,Cout) bf16, b_ref:(1,Cout) f32.
    Returns relu(conv + bias) as (M, Cout) f32; rows are (i,j) pairs with j in [0, Wh)."""
    acc = None
    for kh in range(3):
        for kw in range(3):
            tap = kh * 3 + kw
            p = 2 * (kh & 1) + (kw & 1)
            s = (kh >> 1) * Wh + (kw >> 1)
            part = jnp.dot(x_ref[0, p, s:s + M, :], w_ref[tap],
                           preferred_element_type=jnp.float32)
            acc = part if acc is None else acc + part
    return jnp.maximum(acc + b_ref[...], 0.0)


def _conv_relu_kernel(x_ref, w_ref, b_ref, o_ref, *, Wh, M):
    o_ref[0] = _tap_conv_relu(x_ref, w_ref, b_ref, Wh=Wh, M=M).astype(o_ref.dtype)


def _conv_pool_fc_kernel(x_ref, w_ref, b_ref, mask_ref, wfc_ref, bfc_ref, o_ref, *, Wh, M):
    act = _tap_conv_relu(x_ref, w_ref, b_ref, Wh=Wh, M=M)            # (M, C2) f32, VMEM only
    pooled = jnp.sum(act * mask_ref[...], axis=0, keepdims=True)     # mask folds in 1/(Ho*Wo)
    logits = jnp.dot(pooled, wfc_ref[...],
                     preferred_element_type=jnp.float32) + bfc_ref[...]   # FC in f32 (review)
    o_ref[0] = logits.astype(o_ref.dtype)                            # lane-dense (1,128) store


# ----------------------------------------------------------------------------
# Wrappers
# ----------------------------------------------------------------------------
def conv3x3_s2_relu(x_nhwc, w_hwio, b, *, vmem_limit):
    """conv(3x3, stride 2, pad 1) + bias + ReLU.  x:(N,H,W,Cin) -> (N,Ho,Wo,Cout) bf16."""
    N, H, W, Cin = x_nhwc.shape
    Cout = w_hwio.shape[-1]
    Ho, Wo = (H + 1) // 2, (W + 1) // 2
    ph, Wh, M, Sp = _phase_split_3x3_s2_p1(x_nhwc, Ho, Wo)
    w9 = w_hwio.reshape(9, Cin, Cout).astype(jnp.bfloat16)
    bf = b.astype(jnp.float32).reshape(1, Cout)

    out = pl.pallas_call(
        functools.partial(_conv_relu_kernel, Wh=Wh, M=M),
        out_shape=jax.ShapeDtypeStruct((N, M, Cout), jnp.bfloat16),
        grid=(N,),
        in_specs=[
            pl.BlockSpec((1, 4, Sp, Cin), lambda n: (n, 0, 0, 0)),   # per-batch phase block
            pl.BlockSpec((9, Cin, Cout), lambda n: (0, 0, 0)),       # weights stay resident
            pl.BlockSpec((1, Cout), lambda n: (0, 0)),
        ],
        out_specs=pl.BlockSpec((1, M, Cout), lambda n: (n, 0, 0)),
        compiler_params=pltpu.CompilerParams(
            dimension_semantics=("parallel",),
            vmem_limit_bytes=vmem_limit),
    )(ph, w9, bf)
    # drop junk rows (row >= Ho, col >= Wo) introduced by the flattened-phase layout
    return out[:, :Ho * Wh, :].reshape(N, Ho, Wh, Cout)[:, :, :Wo, :]


def conv3x3_s2_relu_pool_fc(x_nhwc, w_hwio, b, wfc, bfc, n_classes, *, vmem_limit):
    """Fused conv(3x3,s2,p1) + ReLU + GlobalAvgPool + Linear; conv activation never hits HBM."""
    N, H, W, Cin = x_nhwc.shape
    Cout = w_hwio.shape[-1]
    Ho, Wo = (H + 1) // 2, (W + 1) // 2
    ph, Wh, M, Sp = _phase_split_3x3_s2_p1(x_nhwc, Ho, Wo)
    w9 = w_hwio.reshape(9, Cin, Cout).astype(jnp.bfloat16)
    bf = b.astype(jnp.float32).reshape(1, Cout)

    NCP = max(128, _round_up(n_classes, 128))        # lane-dense FC output, sliced in wrapper
    wfc_p = jnp.zeros((Cout, NCP), jnp.float32).at[:, :n_classes].set(wfc.astype(jnp.float32))
    bfc_p = jnp.zeros((1, NCP), jnp.float32).at[:, :n_classes].set(bfc.astype(jnp.float32))

    rows = jnp.arange(M)
    valid = (rows < Ho * Wh) & ((rows % Wh) < Wo)    # zero junk rows + fold in the 1/HW scale
    mask = jnp.where(valid, 1.0 / (Ho * Wo), 0.0).astype(jnp.float32).reshape(M, 1)

    out = pl.pallas_call(
        functools.partial(_conv_pool_fc_kernel, Wh=Wh, M=M),
        out_shape=jax.ShapeDtypeStruct((N, 1, NCP), jnp.float32),
        grid=(N,),
        in_specs=[
            pl.BlockSpec((1, 4, Sp, Cin), lambda n: (n, 0, 0, 0)),
            pl.BlockSpec((9, Cin, Cout), lambda n: (0, 0, 0)),
            pl.BlockSpec((1, Cout), lambda n: (0, 0)),
            pl.BlockSpec((M, 1), lambda n: (0, 0)),
            pl.BlockSpec((Cout, NCP), lambda n: (0, 0)),
            pl.BlockSpec((1, NCP), lambda n: (0, 0)),
        ],
        out_specs=pl.BlockSpec((1, 1, NCP), lambda n: (n, 0, 0)),
        compiler_params=pltpu.CompilerParams(
            dimension_semantics=("parallel",),
            vmem_limit_bytes=vmem_limit),
    )(ph, w9, bf, mask, wfc_p, bfc_p)
    return out.reshape(N, NCP)[:, :n_classes]


# ----------------------------------------------------------------------------
# Model
# ----------------------------------------------------------------------------
def init_params(key, in_channels=64, n_classes=5, dtype=jnp.float32):
    k1, k2, k3, k4, k5, k6 = jax.random.split(key, 6)
    return {
        "w1": jax.random.normal(k1, (3, 3, in_channels, 256), dtype) * 0.05,   # HWIO
        "b1": jax.random.normal(k2, (256,), dtype) * 0.05,
        "w2": jax.random.normal(k3, (3, 3, 256, 128), dtype) * 0.05,           # HWIO
        "b2": jax.random.normal(k4, (128,), dtype) * 0.05,
        "wfc": jax.random.normal(k5, (128, n_classes), dtype) * 0.05,          # (in, out)
        "bfc": jax.random.normal(k6, (n_classes,), dtype) * 0.05,
    }


def simple_classifier_forward(x_nchw, params, n_classes):
    vmem_limit = _pick_vmem_limit()
    # NCHW -> NHWC, cast to bf16 before any data movement (no separate f32 + cast passes).
    x_nhwc = jnp.transpose(x_nchw, (0, 2, 3, 1)).astype(jnp.bfloat16)
    y1 = conv3x3_s2_relu(x_nhwc, params["w1"], params["b1"], vmem_limit=vmem_limit)
    return conv3x3_s2_relu_pool_fc(y1, params["w2"], params["b2"],
                                   params["wfc"], params["bfc"], n_classes,
                                   vmem_limit=vmem_limit)


# ----------------------------------------------------------------------------
# Pure-JAX f32 reference (correctness check only)
# ----------------------------------------------------------------------------
def reference_forward(x_nchw, params):
    x = jnp.transpose(x_nchw, (0, 2, 3, 1))
    dn = ("NHWC", "HWIO", "NHWC")
    y = lax.conv_general_dilated(x, params["w1"], (2, 2), ((1, 1), (1, 1)),
                                 dimension_numbers=dn) + params["b1"]
    y = jnp.maximum(y, 0.0)
    y = lax.conv_general_dilated(y, params["w2"], (2, 2), ((1, 1), (1, 1)),
                                 dimension_numbers=dn) + params["b2"]
    y = jnp.maximum(y, 0.0)
    pooled = jnp.mean(y, axis=(1, 2))
    return pooled @ params["wfc"] + params["bfc"]


if __name__ == "__main__":
    key = jax.random.PRNGKey(0)
    kx, kp = jax.random.split(key)

    batch, in_channels, spatial, n_classes = 2, 64, 16, 5
    x = jax.random.normal(kx, (batch, in_channels, spatial, spatial), jnp.float32)
    params = init_params(kp, in_channels=in_channels, n_classes=n_classes)

    fwd = jax.jit(simple_classifier_forward, static_argnums=(2,))
    pred = jax.block_until_ready(fwd(x, params, n_classes))

    ref = jax.block_until_ready(reference_forward(x, params))
    assert pred.shape == (batch, n_classes)
    # bf16 MXU operands (f32 accumulation) -> loosen tolerance vs. the pure-f32 reference.
    if not jnp.allclose(pred, ref, rtol=5e-2, atol=5e-2):
        raise AssertionError("Pallas result mismatch vs reference")

    print("KERNEL_OK")
</pallas_src>

<mosaic_0001>
module attributes {stable_mosaic.version = 11 : i64} {
  func.func @_conv_relu_kernel(%arg0: i32, %arg1: memref<1x4x96x64xbf16, #tpu.memory_space<vmem>>, %arg2: memref<9x64x256xbf16, #tpu.memory_space<vmem>>, %arg3: memref<1x256xf32, #tpu.memory_space<vmem>>, %arg4: memref<1x80x256xbf16, #tpu.memory_space<vmem>>) attributes {dimension_semantics = [#tpu.dimension_semantics<parallel>], iteration_bounds = array<i64: 2>, scalar_prefetch = 0 : i64, scratch_operands = 0 : i64, tpu.core_type = #tpu.core_type<tc>, window_params = [{transform_indices = @transform_0, window_bounds = array<i64: 1, 4, 96, 64>}, {pipeline_mode = #tpu.pipeline_mode<synchronous>, transform_indices = @transform_1, window_bounds = array<i64: 9, 64, 256>}, {pipeline_mode = #tpu.pipeline_mode<synchronous>, transform_indices = @transform_2, window_bounds = array<i64: 1, 256>}, {transform_indices = @transform_3, window_bounds = array<i64: 1, 80, 256>}]} {
    %c0 = arith.constant 0 : index
    %c0_0 = arith.constant 0 : index
    %c0_1 = arith.constant 0 : index
    %c0_2 = arith.constant 0 : index
    %0 = vector.load %arg1[%c0, %c0_0, %c0_1, %c0_2] : memref<1x4x96x64xbf16, #tpu.memory_space<vmem>>, vector<1x1x80x64xbf16>
    %1 = vector.shape_cast %0 : vector<1x1x80x64xbf16> to vector<80x64xbf16>
    %c0_3 = arith.constant 0 : index
    %c0_4 = arith.constant 0 : index
    %c0_5 = arith.constant 0 : index
    %2 = vector.load %arg2[%c0_3, %c0_4, %c0_5] : memref<9x64x256xbf16, #tpu.memory_space<vmem>>, vector<1x64x256xbf16>
    %3 = vector.shape_cast %2 : vector<1x64x256xbf16> to vector<64x256xbf16>
    %cst = arith.constant dense<0.000000e+00> : vector<80x256xf32>
    %4 = tpu.matmul %1, %3, %cst {dimension_numbers = #tpu.dot_dimension_numbers<[1], [0], [0], [1], [0, 0, 1, 1], [], []>} : vector<80x64xbf16>, vector<64x256xbf16>, vector<80x256xf32> -> vector<80x256xf32>
    %c0_6 = arith.constant 0 : index
    %c1 = arith.constant 1 : index
    %c0_7 = arith.constant 0 : index
    %c0_8 = arith.constant 0 : index
    %5 = vector.load %arg1[%c0_6, %c1, %c0_7, %c0_8] : memref<1x4x96x64xbf16, #tpu.memory_space<vmem>>, vector<1x1x80x64xbf16>
    %6 = vector.shape_cast %5 : vector<1x1x80x64xbf16> to vector<80x64xbf16>
    %c1_9 = arith.constant 1 : index
    %c0_10 = arith.constant 0 : index
    %c0_11 = arith.constant 0 : index
    %7 = vector.load %arg2[%c1_9, %c0_10, %c0_11] : memref<9x64x256xbf16, #tpu.memory_space<vmem>>, vector<1x64x256xbf16>
    %8 = vector.shape_cast %7 : vector<1x64x256xbf16> to vector<64x256xbf16>
    %cst_12 = arith.constant dense<0.000000e+00> : vector<80x256xf32>
    %9 = tpu.matmul %6, %8, %cst_12 {dimension_numbers = #tpu.dot_dimension_numbers<[1], [0], [0], [1], [0, 0, 1, 1], [], []>} : vector<80x64xbf16>, vector<64x256xbf16>, vector<80x256xf32> -> vector<80x256xf32>
    %10 = arith.addf %4, %9 : vector<80x256xf32>
    %c0_13 = arith.constant 0 : index
    %c0_14 = arith.constant 0 : index
    %c1_15 = arith.constant 1 : index
    %c0_16 = arith.constant 0 : index
    %11 = vector.load %arg1[%c0_13, %c0_14, %c1_15, %c0_16] : memref<1x4x96x64xbf16, #tpu.memory_space<vmem>>, vector<1x1x80x64xbf16>
    %12 = vector.shape_cast %11 : vector<1x1x80x64xbf16> to vector<80x64xbf16>
    %c2 = arith.constant 2 : index
    %c0_17 = arith.constant 0 : index
    %c0_18 = arith.constant 0 : index
    %13 = vector.load %arg2[%c2, %c0_17, %c0_18] : memref<9x64x256xbf16, #tpu.memory_space<vmem>>, vector<1x64x256xbf16>
    %14 = vector.shape_cast %13 : vector<1x64x256xbf16> to vector<64x256xbf16>
    %cst_19 = arith.constant dense<0.000000e+00> : vector<80x256xf32>
    %15 = tpu.matmul %12, %14, %cst_19 {dimension_numbers = #tpu.dot_dimension_numbers<[1], [0], [0], [1], [0, 0, 1, 1], [], []>} : vector<80x64xbf16>, vector<64x256xbf16>, vector<80x256xf32> -> vector<80x256xf32>
    %16 = arith.addf %10, %15 : vector<80x256xf32>
    %c0_20 = arith.constant 0 : index
    %c2_21 = arith.constant 2 : index
    %c0_22 = arith.constant 0 : index
    %c0_23 = arith.constant 0 : index
    %17 = vector.load %arg1[%c0_20, %c2_21, %c0_22, %c0_23] : memref<1x4x96x64xbf16, #tpu.memory_space<vmem>>, vector<1x1x80x64xbf16>
    %18 = vector.shape_cast %17 : vector<1x1x80x64xbf16> to vector<80x64xbf16>
    %c3 = arith.constant 3 : index
    %c0_24 = arith.constant 0 : index
    %c0_25 = arith.constant 0 : index
    %19 = vector.load %arg2[%c3, %c0_24, %c0_25] : memref<9x64x256xbf16, #tpu.memory_space<vmem>>, vector<1x64x256xbf16>
    %20 = vector.shape_cast %19 : vector<1x64x256xbf16> to vector<64x256xbf16>
    %cst_26 = arith.constant dense<0.000000e+00> : vector<80x256xf32>
    %21 = tpu.matmul %18, %20, %cst_26 {dimension_numbers = #tpu.dot_dimension_numbers<[1], [0], [0], [1], [0, 0, 1, 1], [], []>} : vector<80x64xbf16>, vector<64x256xbf16>, vector<80x256xf32> -> vector<80x256xf32>
    %22 = arith.addf %16, %21 : vector<80x256xf32>
    %c0_27 = arith.constant 0 : index
    %c3_28 = arith.constant 3 : index
    %c0_29 = arith.constant 0 : index
    %c0_30 = arith.constant 0 : index
    %23 = vector.load %arg1[%c0_27, %c3_28, %c0_29, %c0_30] : memref<1x4x96x64xbf16, #tpu.memory_space<vmem>>, vector<1x1x80x64xbf16>
    %24 = vector.shape_cast %23 : vector<1x1x80x64xbf16> to vector<80x64xbf16>
    %c4 = arith.constant 4 : index
    %c0_31 = arith.constant 0 : index
    %c0_32 = arith.constant 0 : index
    %25 = vector.load %arg2[%c4, %c0_31, %c0_32] : memref<9x64x256xbf16, #tpu.memory_space<vmem>>, vector<1x64x256xbf16>
    %26 = vector.shape_cast %25 : vector<1x64x256xbf16> to vector<64x256xbf16>
    %cst_33 = arith.constant dense<0.000000e+00> : vector<80x256xf32>
    %27 = tpu.matmul %24, %26, %cst_33 {dimension_numbers = #tpu.dot_dimension_numbers<[1], [0], [0], [1], [0, 0, 1, 1], [], []>} : vector<80x64xbf16>, vector<64x256xbf16>, vector<80x256xf32> -> vector<80x256xf32>
    %28 = arith.addf %22, %27 : vector<80x256xf32>
    %c0_34 = arith.constant 0 : index
    %c2_35 = arith.constant 2 : index
    %c1_36 = arith.constant 1 : index
    %c0_37 = arith.constant 0 : index
    %29 = vector.load %arg1[%c0_34, %c2_35, %c1_36, %c0_37] : memref<1x4x96x64xbf16, #tpu.memory_space<vmem>>, vector<1x1x80x64xbf16>
    %30 = vector.shape_cast %29 : vector<1x1x80x64xbf16> to vector<80x64xbf16>
    %c5 = arith.constant 5 : index
    %c0_38 = arith.constant 0 : index
    %c0_39 = arith.constant 0 : index
    %31 = vector.load %arg2[%c5, %c0_38, %c0_39] : memref<9x64x256xbf16, #tpu.memory_space<vmem>>, vector<1x64x256xbf16>
    %32 = vector.shape_cast %31 : vector<1x64x256xbf16> to vector<64x256xbf16>
    %cst_40 = arith.constant dense<0.000000e+00> : vector<80x256xf32>
    %33 = tpu.matmul %30, %32, %cst_40 {dimension_numbers = #tpu.dot_dimension_numbers<[1], [0], [0], [1], [0, 0, 1, 1], [], []>} : vector<80x64xbf16>, vector<64x256xbf16>, vector<80x256xf32> -> vector<80x256xf32>
    %34 = arith.addf %28, %33 : vector<80x256xf32>
    %c0_41 = arith.constant 0 : index
    %c0_42 = arith.constant 0 : index
    %c9 = arith.constant 9 : index
    %c0_43 = arith.constant 0 : index
    %35 = vector.load %arg1[%c0_41, %c0_42, %c9, %c0_43] : memref<1x4x96x64xbf16, #tpu.memory_space<vmem>>, vector<1x1x80x64xbf16>
    %36 = vector.shape_cast %35 : vector<1x1x80x64xbf16> to vector<80x64xbf16>
    %c6 = arith.constant 6 : index
    %c0_44 = arith.constant 0 : index
    %c0_45 = arith.constant 0 : index
    %37 = vector.load %arg2[%c6, %c0_44, %c0_45] : memref<9x64x256xbf16, #tpu.memory_space<vmem>>, vector<1x64x256xbf16>
    %38 = vector.shape_cast %37 : vector<1x64x256xbf16> to vector<64x256xbf16>
    %cst_46 = arith.constant dense<0.000000e+00> : vector<80x256xf32>
    %39 = tpu.matmul %36, %38, %cst_46 {dimension_numbers = #tpu.dot_dimension_numbers<[1], [0], [0], [1], [0, 0, 1, 1], [], []>} : vector<80x64xbf16>, vector<64x256xbf16>, vector<80x256xf32> -> vector<80x256xf32>
    %40 = arith.addf %34, %39 : vector<80x256xf32>
    %c0_47 = arith.constant 0 : index
    %c1_48 = arith.constant 1 : index
    %c9_49 = arith.constant 9 : index
    %c0_50 = arith.constant 0 : index
    %41 = vector.load %arg1[%c0_47, %c1_48, %c9_49, %c0_50] : memref<1x4x96x64xbf16, #tpu.memory_space<vmem>>, vector<1x1x80x64xbf16>
    %42 = vector.shape_cast %41 : vector<1x1x80x64xbf16> to vector<80x64xbf16>
    %c7 = arith.constant 7 : index
    %c0_51 = arith.constant 0 : index
    %c0_52 = arith.constant 0 : index
    %43 = vector.load %arg2[%c7, %c0_51, %c0_52] : memref<9x64x256xbf16, #tpu.memory_space<vmem>>, vector<1x64x256xbf16>
    %44 = vector.shape_cast %43 : vector<1x64x256xbf16> to vector<64x256xbf16>
    %cst_53 = arith.constant dense<0.000000e+00> : vector<80x256xf32>
    %45 = tpu.matmul %42, %44, %cst_53 {dimension_numbers = #tpu.dot_dimension_numbers<[1], [0], [0], [1], [0, 0, 1, 1], [], []>} : vector<80x64xbf16>, vector<64x256xbf16>, vector<80x256xf32> -> vector<80x256xf32>
    %46 = arith.addf %40, %45 : vector<80x256xf32>
    %c0_54 = arith.constant 0 : index
    %c0_55 = arith.constant 0 : index
    %c10 = arith.constant 10 : index
    %c0_56 = arith.constant 0 : index
    %47 = vector.load %arg1[%c0_54, %c0_55, %c10, %c0_56] : memref<1x4x96x64xbf16, #tpu.memory_space<vmem>>, vector<1x1x80x64xbf16>
    %48 = vector.shape_cast %47 : vector<1x1x80x64xbf16> to vector<80x64xbf16>
    %c8 = arith.constant 8 : index
    %c0_57 = arith.constant 0 : index
    %c0_58 = arith.constant 0 : index
    %49 = vector.load %arg2[%c8, %c0_57, %c0_58] : memref<9x64x256xbf16, #tpu.memory_space<vmem>>, vector<1x64x256xbf16>
    %50 = vector.shape_cast %49 : vector<1x64x256xbf16> to vector<64x256xbf16>
    %cst_59 = arith.constant dense<0.000000e+00> : vector<80x256xf32>
    %51 = tpu.matmul %48, %50, %cst_59 {dimension_numbers = #tpu.dot_dimension_numbers<[1], [0], [0], [1], [0, 0, 1, 1], [], []>} : vector<80x64xbf16>, vector<64x256xbf16>, vector<80x256xf32> -> vector<80x256xf32>
    %52 = arith.addf %46, %51 : vector<80x256xf32>
    %c0_60 = arith.constant 0 : index
    %c0_61 = arith.constant 0 : index
    %53 = vector.load %arg3[%c0_60, %c0_61] : memref<1x256xf32, #tpu.memory_space<vmem>>, vector<1x256xf32>
    %54 = vector.broadcast %53 : vector<1x256xf32> to vector<80x256xf32>
    %55 = arith.addf %52, %54 : vector<80x256xf32>
    %cst_62 = arith.constant 0.000000e+00 : f32
    %56 = vector.broadcast %cst_62 : f32 to vector<80x256xf32>
    %57 = arith.maximumf %55, %56 : vector<80x256xf32>
    %58 = arith.truncf %57 : vector<80x256xf32> to vector<80x256xbf16>
    %c0_63 = arith.constant 0 : index
    %c0_64 = arith.constant 0 : index
    %c0_65 = arith.constant 0 : index
    %59 = vector.load %arg4[%c0_63, %c0_64, %c0_65] : memref<1x80x256xbf16, #tpu.memory_space<vmem>>, vector<1x80x256xbf16>
    %60 = vector.shape_cast %59 : vector<1x80x256xbf16> to vector<80x256xbf16>
    %61 = vector.shape_cast %58 : vector<80x256xbf16> to vector<1x80x256xbf16>
    tpu.vector_store %arg4[%c0_63, %c0_64, %c0_65], %61 {strides = array<i32>} : memref<1x80x256xbf16, #tpu.memory_space<vmem>>, vector<1x80x256xbf16>,
    return
  }
  func.func @transform_0(%arg0: i32) -> (i32, i32, i32, i32) {
    %c0_i32 = arith.constant 0 : i32
    %c0_i32_0 = arith.constant 0 : i32
    %c0_i32_1 = arith.constant 0 : i32
    %c0_i32_2 = arith.constant 0 : i32
    return %arg0, %c0_i32, %c0_i32_0, %c0_i32_1 : i32, i32, i32, i32
  }
  func.func @transform_1(%arg0: i32) -> (i32, i32, i32) {
    %c0_i32 = arith.constant 0 : i32
    %c0_i32_0 = arith.constant 0 : i32
    %c0_i32_1 = arith.constant 0 : i32
    %c0_i32_2 = arith.constant 0 : i32
    return %c0_i32, %c0_i32_0, %c0_i32_1 : i32, i32, i32
  }
  func.func @transform_2(%arg0: i32) -> (i32, i32) {
    %c0_i32 = arith.constant 0 : i32
    %c0_i32_0 = arith.constant 0 : i32
    %c0_i32_1 = arith.constant 0 : i32
    return %c0_i32, %c0_i32_0 : i32, i32
  }
  func.func @transform_3(%arg0: i32) -> (i32, i32, i32) {
    %c0_i32 = arith.constant 0 : i32
    %c0_i32_0 = arith.constant 0 : i32
    %c0_i32_1 = arith.constant 0 : i32
    return %arg0, %c0_i32, %c0_i32_0 : i32, i32, i32
  }
}

module attributes {stable_mosaic.version = 11 : i64} {
  func.func @_conv_pool_fc_kernel(%arg0: i32, %arg1: memref<1x4x48x256xbf16, #tpu.memory_space<vmem>>, %arg2: memref<9x256x128xbf16, #tpu.memory_space<vmem>>, %arg3: memref<1x128xf32, #tpu.memory_space<vmem>>, %arg4: memref<32x1xf32, #tpu.memory_space<vmem>>, %arg5: memref<128x128xf32, #tpu.memory_space<vmem>>, %arg6: memref<1x128xf32, #tpu.memory_space<vmem>>, %arg7: memref<1x1x128xf32, #tpu.memory_space<vmem>>) attributes {dimension_semantics = [#tpu.dimension_semantics<parallel>], iteration_bounds = array<i64: 2>, scalar_prefetch = 0 : i64, scratch_operands = 0 : i64, tpu.core_type = #tpu.core_type<tc>, window_params = [{transform_indices = @transform_0, window_bounds = array<i64: 1, 4, 48, 256>}, {pipeline_mode = #tpu.pipeline_mode<synchronous>, transform_indices = @transform_1, window_bounds = array<i64: 9, 256, 128>}, {pipeline_mode = #tpu.pipeline_mode<synchronous>, transform_indices = @transform_2, window_bounds = array<i64: 1, 128>}, {pipeline_mode = #tpu.pipeline_mode<synchronous>, transform_indices = @transform_3, window_bounds = array<i64: 32, 1>}, {pipeline_mode = #tpu.pipeline_mode<synchronous>, transform_indices = @transform_4, window_bounds = array<i64: 128, 128>}, {pipeline_mode = #tpu.pipeline_mode<synchronous>, transform_indices = @transform_5, window_bounds = array<i64: 1, 128>}, {transform_indices = @transform_6, window_bounds = array<i64: 1, 1, 128>}]} {
    %c0 = arith.constant 0 : index
    %c0_0 = arith.constant 0 : index
    %c0_1 = arith.constant 0 : index
    %c0_2 = arith.constant 0 : index
    %0 = vector.load %arg1[%c0, %c0_0, %c0_1, %c0_2] : memref<1x4x48x256xbf16, #tpu.memory_space<vmem>>, vector<1x1x32x256xbf16>
    %1 = vector.shape_cast %0 : vector<1x1x32x256xbf16> to vector<32x256xbf16>
    %c0_3 = arith.constant 0 : index
    %c0_4 = arith.constant 0 : index
    %c0_5 = arith.constant 0 : index
    %2 = vector.load %arg2[%c0_3, %c0_4, %c0_5] : memref<9x256x128xbf16, #tpu.memory_space<vmem>>, vector<1x256x128xbf16>
    %3 = vector.shape_cast %2 : vector<1x256x128xbf16> to vector<256x128xbf16>
    %cst = arith.constant dense<0.000000e+00> : vector<32x128xf32>
    %4 = tpu.matmul %1, %3, %cst {dimension_numbers = #tpu.dot_dimension_numbers<[1], [0], [0], [1], [0, 0, 1, 1], [], []>} : vector<32x256xbf16>, vector<256x128xbf16>, vector<32x128xf32> -> vector<32x128xf32>
    %c0_6 = arith.constant 0 : index
    %c1 = arith.constant 1 : index
    %c0_7 = arith.constant 0 : index
    %c0_8 = arith.constant 0 : index
    %5 = vector.load %arg1[%c0_6, %c1, %c0_7, %c0_8] : memref<1x4x48x256xbf16, #tpu.memory_space<vmem>>, vector<1x1x32x256xbf16>
    %6 = vector.shape_cast %5 : vector<1x1x32x256xbf16> to vector<32x256xbf16>
    %c1_9 = arith.constant 1 : index
    %c0_10 = arith.constant 0 : index
    %c0_11 = arith.constant 0 : index
    %7 = vector.load %arg2[%c1_9, %c0_10, %c0_11] : memref<9x256x128xbf16, #tpu.memory_space<vmem>>, vector<1x256x128xbf16>
    %8 = vector.shape_cast %7 : vector<1x256x128xbf16> to vector<256x128xbf16>
    %cst_12 = arith.constant dense<0.000000e+00> : vector<32x128xf32>
    %9 = tpu.matmul %6, %8, %cst_12 {dimension_numbers = #tpu.dot_dimension_numbers<[1], [0], [0], [1], [0, 0, 1, 1], [], []>} : vector<32x256xbf16>, vector<256x128xbf16>, vector<32x128xf32> -> vector<32x128xf32>
    %10 = arith.addf %4, %9 : vector<32x128xf32>
    %c0_13 = arith.constant 0 : index
    %c0_14 = arith.constant 0 : index
    %c1_15 = arith.constant 1 : index
    %c0_16 = arith.constant 0 : index
    %11 = vector.load %arg1[%c0_13, %c0_14, %c1_15, %c0_16] : memref<1x4x48x256xbf16, #tpu.memory_space<vmem>>, vector<1x1x32x256xbf16>
    %12 = vector.shape_cast %11 : vector<1x1x32x256xbf16> to vector<32x256xbf16>
    %c2 = arith.constant 2 : index
    %c0_17 = arith.constant 0 : index
    %c0_18 = arith.constant 0 : index
    %13 = vector.load %arg2[%c2, %c0_17, %c0_18] : memref<9x256x128xbf16, #tpu.memory_space<vmem>>, vector<1x256x128xbf16>
    %14 = vector.shape_cast %13 : vector<1x256x128xbf16> to vector<256x128xbf16>
    %cst_19 = arith.constant dense<0.000000e+00> : vector<32x128xf32>
    %15 = tpu.matmul %12, %14, %cst_19 {dimension_numbers = #tpu.dot_dimension_numbers<[1], [0], [0], [1], [0, 0, 1, 1], [], []>} : vector<32x256xbf16>, vector<256x128xbf16>, vector<32x128xf32> -> vector<32x128xf32>
    %16 = arith.addf %10, %15 : vector<32x128xf32>
    %c0_20 = arith.constant 0 : index
    %c2_21 = arith.constant 2 : index
    %c0_22 = arith.constant 0 : index
    %c0_23 = arith.constant 0 : index
    %17 = vector.load %arg1[%c0_20, %c2_21, %c0_22, %c0_23] : memref<1x4x48x256xbf16, #tpu.memory_space<vmem>>, vector<1x1x32x256xbf16>
    %18 = vector.shape_cast %17 : vector<1x1x32x256xbf16> to vector<32x256xbf16>
    %c3 = arith.constant 3 : index
    %c0_24 = arith.constant 0 : index
    %c0_25 = arith.constant 0 : index
    %19 = vector.load %arg2[%c3, %c0_24, %c0_25] : memref<9x256x128xbf16, #tpu.memory_space<vmem>>, vector<1x256x128xbf16>
    %20 = vector.shape_cast %19 : vector<1x256x128xbf16> to vector<256x128xbf16>
    %cst_26 = arith.constant dense<0.000000e+00> : vector<32x128xf32>
    %21 = tpu.matmul %18, %20, %cst_26 {dimension_numbers = #tpu.dot_dimension_numbers<[1], [0], [0], [1], [0, 0, 1, 1], [], []>} : vector<32x256xbf16>, vector<256x128xbf16>, vector<32x128xf32> -> vector<32x128xf32>
    %22 = arith.addf %16, %21 : vector<32x128xf32>
    %c0_27 = arith.constant 0 : index
    %c3_28 = arith.constant 3 : index
    %c0_29 = arith.constant 0 : index
    %c0_30 = arith.constant 0 : index
    %23 = vector.load %arg1[%c0_27, %c3_28, %c0_29, %c0_30] : memref<1x4x48x256xbf16, #tpu.memory_space<vmem>>, vector<1x1x32x256xbf16>
    %24 = vector.shape_cast %23 : vector<1x1x32x256xbf16> to vector<32x256xbf16>
    %c4 = arith.constant 4 : index
    %c0_31 = arith.constant 0 : index
    %c0_32 = arith.constant 0 : index
    %25 = vector.load %arg2[%c4, %c0_31, %c0_32] : memref<9x256x128xbf16, #tpu.memory_space<vmem>>, vector<1x256x128xbf16>
    %26 = vector.shape_cast %25 : vector<1x256x128xbf16> to vector<256x128xbf16>
    %cst_33 = arith.constant dense<0.000000e+00> : vector<32x128xf32>
    %27 = tpu.matmul %24, %26, %cst_33 {dimension_numbers = #tpu.dot_dimension_numbers<[1], [0], [0], [1], [0, 0, 1, 1], [], []>} : vector<32x256xbf16>, vector<256x128xbf16>, vector<32x128xf32> -> vector<32x128xf32>
    %28 = arith.addf %22, %27 : vector<32x128xf32>
    %c0_34 = arith.constant 0 : index
    %c2_35 = arith.constant 2 : index
    %c1_36 = arith.constant 1 : index
    %c0_37 = arith.constant 0 : index
    %29 = vector.load %arg1[%c0_34, %c2_35, %c1_36, %c0_37] : memref<1x4x48x256xbf16, #tpu.memory_space<vmem>>, vector<1x1x32x256xbf16>
    %30 = vector.shape_cast %29 : vector<1x1x32x256xbf16> to vector<32x256xbf16>
    %c5 = arith.constant 5 : index
    %c0_38 = arith.constant 0 : index
    %c0_39 = arith.constant 0 : index
    %31 = vector.load %arg2[%c5, %c0_38, %c0_39] : memref<9x256x128xbf16, #tpu.memory_space<vmem>>, vector<1x256x128xbf16>
    %32 = vector.shape_cast %31 : vector<1x256x128xbf16> to vector<256x128xbf16>
    %cst_40 = arith.constant dense<0.000000e+00> : vector<32x128xf32>
    %33 = tpu.matmul %30, %32, %cst_40 {dimension_numbers = #tpu.dot_dimension_numbers<[1], [0], [0], [1], [0, 0, 1, 1], [], []>} : vector<32x256xbf16>, vector<256x128xbf16>, vector<32x128xf32> -> vector<32x128xf32>
    %34 = arith.addf %28, %33 : vector<32x128xf32>
    %c0_41 = arith.constant 0 : index
    %c0_42 = arith.constant 0 : index
    %c5_43 = arith.constant 5 : index
    %c0_44 = arith.constant 0 : index
    %35 = vector.load %arg1[%c0_41, %c0_42, %c5_43, %c0_44] : memref<1x4x48x256xbf16, #tpu.memory_space<vmem>>, vector<1x1x32x256xbf16>
    %36 = vector.shape_cast %35 : vector<1x1x32x256xbf16> to vector<32x256xbf16>
    %c6 = arith.constant 6 : index
    %c0_45 = arith.constant 0 : index
    %c0_46 = arith.constant 0 : index
    %37 = vector.load %arg2[%c6, %c0_45, %c0_46] : memref<9x256x128xbf16, #tpu.memory_space<vmem>>, vector<1x256x128xbf16>
    %38 = vector.shape_cast %37 : vector<1x256x128xbf16> to vector<256x128xbf16>
    %cst_47 = arith.constant dense<0.000000e+00> : vector<32x128xf32>
    %39 = tpu.matmul %36, %38, %cst_47 {dimension_numbers = #tpu.dot_dimension_numbers<[1], [0], [0], [1], [0, 0, 1, 1], [], []>} : vector<32x256xbf16>, vector<256x128xbf16>, vector<32x128xf32> -> vector<32x128xf32>
    %40 = arith.addf %34, %39 : vector<32x128xf32>
    %c0_48 = arith.constant 0 : index
    %c1_49 = arith.constant 1 : index
    %c5_50 = arith.constant 5 : index
    %c0_51 = arith.constant 0 : index
    %41 = vector.load %arg1[%c0_48, %c1_49, %c5_50, %c0_51] : memref<1x4x48x256xbf16, #tpu.memory_space<vmem>>, vector<1x1x32x256xbf16>
    %42 = vector.shape_cast %41 : vector<1x1x32x256xbf16> to vector<32x256xbf16>
    %c7 = arith.constant 7 : index
    %c0_52 = arith.constant 0 : index
    %c0_53 = arith.constant 0 : index
    %43 = vector.load %arg2[%c7, %c0_52, %c0_53] : memref<9x256x128xbf16, #tpu.memory_space<vmem>>, vector<1x256x128xbf16>
    %44 = vector.shape_cast %43 : vector<1x256x128xbf16> to vector<256x128xbf16>
    %cst_54 = arith.constant dense<0.000000e+00> : vector<32x128xf32>
    %45 = tpu.matmul %42, %44, %cst_54 {dimension_numbers = #tpu.dot_dimension_numbers<[1], [0], [0], [1], [0, 0, 1, 1], [], []>} : vector<32x256xbf16>, vector<256x128xbf16>, vector<32x128xf32> -> vector<32x128xf32>
    %46 = arith.addf %40, %45 : vector<32x128xf32>
    %c0_55 = arith.constant 0 : index
    %c0_56 = arith.constant 0 : index
    %c6_57 = arith.constant 6 : index
    %c0_58 = arith.constant 0 : index
    %47 = vector.load %arg1[%c0_55, %c0_56, %c6_57, %c0_58] : memref<1x4x48x256xbf16, #tpu.memory_space<vmem>>, vector<1x1x32x256xbf16>
    %48 = vector.shape_cast %47 : vector<1x1x32x256xbf16> to vector<32x256xbf16>
    %c8 = arith.constant 8 : index
    %c0_59 = arith.constant 0 : index
    %c0_60 = arith.constant 0 : index
    %49 = vector.load %arg2[%c8, %c0_59, %c0_60] : memref<9x256x128xbf16, #tpu.memory_space<vmem>>, vector<1x256x128xbf16>
    %50 = vector.shape_cast %49 : vector<1x256x128xbf16> to vector<256x128xbf16>
    %cst_61 = arith.constant dense<0.000000e+00> : vector<32x128xf32>
    %51 = tpu.matmul %48, %50, %cst_61 {dimension_numbers = #tpu.dot_dimension_numbers<[1], [0], [0], [1], [0, 0, 1, 1], [], []>} : vector<32x256xbf16>, vector<256x128xbf16>, vector<32x128xf32> -> vector<32x128xf32>
    %52 = arith.addf %46, %51 : vector<32x128xf32>
    %c0_62 = arith.constant 0 : index
    %c0_63 = arith.constant 0 : index
    %53 = vector.load %arg3[%c0_62, %c0_63] : memref<1x128xf32, #tpu.memory_space<vmem>>, vector<1x128xf32>
    %54 = vector.broadcast %53 : vector<1x128xf32> to vector<32x128xf32>
    %55 = arith.addf %52, %54 : vector<32x128xf32>
    %cst_64 = arith.constant 0.000000e+00 : f32
    %56 = vector.broadcast %cst_64 : f32 to vector<32x128xf32>
    %57 = arith.maximumf %55, %56 : vector<32x128xf32>
    %c0_65 = arith.constant 0 : index
    %c0_66 = arith.constant 0 : index
    %58 = vector.load %arg4[%c0_65, %c0_66] : memref<32x1xf32, #tpu.memory_space<vmem>>, vector<32x1xf32>
    %59 = vector.broadcast %58 : vector<32x1xf32> to vector<32x128xf32>
    %60 = arith.mulf %57, %59 : vector<32x128xf32>
    %cst_67 = arith.constant dense<0.000000e+00> : vector<128xf32>
    %61 = vector.multi_reduction <add>, %60, %cst_67 [0] : vector<32x128xf32> to vector<128xf32>
    %62 = vector.shape_cast %61 : vector<128xf32> to vector<1x128xf32>
    %c0_68 = arith.constant 0 : index
    %c0_69 = arith.constant 0 : index
    %63 = vector.load %arg5[%c0_68, %c0_69] : memref<128x128xf32, #tpu.memory_space<vmem>>, vector<128x128xf32>
    %cst_70 = arith.constant dense<0.000000e+00> : vector<1x128xf32>
    %64 = tpu.matmul %62, %63, %cst_70 {dimension_numbers = #tpu.dot_dimension_numbers<[1], [0], [0], [1], [0, 0, 1, 1], [], []>} : vector<1x128xf32>, vector<128x128xf32>, vector<1x128xf32> -> vector<1x128xf32>
    %c0_71 = arith.constant 0 : index
    %c0_72 = arith.constant 0 : index
    %65 = vector.load %arg6[%c0_71, %c0_72] : memref<1x128xf32, #tpu.memory_space<vmem>>, vector<1x128xf32>
    %66 = arith.addf %64, %65 : vector<1x128xf32>
    %c0_73 = arith.constant 0 : index
    %c0_74 = arith.constant 0 : index
    %c0_75 = arith.constant 0 : index
    %67 = vector.load %arg7[%c0_73, %c0_74, %c0_75] : memref<1x1x128xf32, #tpu.memory_space<vmem>>, vector<1x1x128xf32>
    %68 = vector.shape_cast %67 : vector<1x1x128xf32> to vector<1x128xf32>
    %69 = vector.shape_cast %66 : vector<1x128xf32> to vector<1x1x128xf32>
    tpu.vector_store %arg7[%c0_73, %c0_74, %c0_75], %69 {strides = array<i32>} : memref<1x1x128xf32, #tpu.memory_space<vmem>>, vector<1x1x128xf32>,
    return
  }
  func.func @transform_0(%arg0: i32) -> (i32, i32, i32, i32) {
    %c0_i32 = arith.constant 0 : i32
    %c0_i32_0 = arith.constant 0 : i32
    %c0_i32_1 = arith.constant 0 : i32
    %c0_i32_2 = arith.constant 0 : i32
    return %arg0, %c0_i32, %c0_i32_0, %c0_i32_1 : i32, i32, i32, i32
  }
  func.func @transform_1(%arg0: i32) -> (i32, i32, i32) {
    %c0_i32 = arith.constant 0 : i32
    %c0_i32_0 = arith.constant 0 : i32
    %c0_i32_1 = arith.constant 0 : i32
    %c0_i32_2 = arith.constant 0 : i32
    return %c0_i32, %c0_i32_0, %c0_i32_1 : i32, i32, i32
  }
  func.func @transform_2(%arg0: i32) -> (i32, i32) {
    %c0_i32 = arith.constant 0 : i32
    %c0_i32_0 = arith.constant 0 : i32
    %c0_i32_1 = arith.constant 0 : i32
    return %c0_i32, %c0_i32_0 : i32, i32
  }
  func.func @transform_3(%arg0: i32) -> (i32, i32) {
    %c0_i32 = arith.constant 0 : i32
    %c0_i32_0 = arith.constant 0 : i32
    %c0_i32_1 = arith.constant 0 : i32
    return %c0_i32, %c0_i32_0 : i32, i32
  }
  func.func @transform_4(%arg0: i32) -> (i32, i32) {
    %c0_i32 = arith.constant 0 : i32
    %c0_i32_0 = arith.constant 0 : i32
    %c0_i32_1 = arith.constant 0 : i32
    return %c0_i32, %c0_i32_0 : i32, i32
  }
  func.func @transform_5(%arg0: i32) -> (i32, i32) {
    %c0_i32 = arith.constant 0 : i32
    %c0_i32_0 = arith.constant 0 : i32
    %c0_i32_1 = arith.constant 0 : i32
    return %c0_i32, %c0_i32_0 : i32, i32
  }
  func.func @transform_6(%arg0: i32) -> (i32, i32, i32) {
    %c0_i32 = arith.constant 0 : i32
    %c0_i32_0 = arith.constant 0 : i32
    %c0_i32_1 = arith.constant 0 : i32
    return %arg0, %c0_i32, %c0_i32_0 : i32, i32, i32
  }
}

</mosaic_0001>

<llo_original>
// kernel: simple_classifier_forward.2
$region0: #{simple_classifier_forward.2}
  #allocation0 [shape = 'u32[]', space=smem, size = 0x4, offset = 0x4, fixed_abs, tag = 'smem constant byte address 0x4 - core index']
  #allocation1 [shape = 'u32[144,128]{1,0:T(1,128)}', space=vmem, size = 0x12000, scoped, tag = 'internal scratch']
  %s0 = inlined_call_operand.vmem [shape: bf16[2,4,96,64], index: 0, kind: input, shape index: {}]
  %s1 = inlined_call_operand.vmem [shape: bf16[9,64,256], index: 1, kind: input, shape index: {}]
  %s2 = inlined_call_operand.vmem [shape: f32[1,256], index: 2, kind: input, shape index: {}]
  %s3 = inlined_call_operand.vmem [shape: bf16[2,80,256], index: 3, kind: output, shape index: {}]
  %s4 = sld [smem:[#allocation0]]
  $region45: #{simple_classifier_forward.2} parent=0
    _
  %s6 = ssub.s32 1, %s4
  %s7 = scalar_select 0, %s6, %s4
  loop: start=0, step=1, limit=4
  $region2: #{simple_classifier_forward.2} parent=0 // loop_pre_header
    _
  $region3: #{simple_classifier_forward.2} parent=0 // loop_header
    %s9 = sphi 0, %s13
    %p10 = scmp.ge.s32.totalorder %s9, 4
    %s19 = sphi 0, %s21
    %s22 = sphi 0, %s19
    %s23 = sphi 0, %s22
    %s39 = sphi 0, %s23
    %s43 = sphi 0, %s43
    %s45 = sphi 0, %s43
    %s46 = sphi 0, %s45
    %s60 = sphi 0, %s46
    %s64 = sphi 0, %s64
    %s66 = sphi 0, %s64
    %s67 = sphi 0, %s66
    %s81 = sphi 0, %s67
    %s87 = sphi 0, %s89
    %s90 = sphi 0, %s87
    %s91 = sphi 0, %s90
    %s107 = sphi 0, %s91
  $region4: #{simple_classifier_forward.2} parent=0 // loop_header_branch
    %12 = sbr.rel (%p10) target = $region8
  $region5: #{simple_classifier_forward.2} parent=0 // loop_body
    %s14 = ssub.s32 %s9, 1
    %s15 = ssub.s32 %s9, 2
    %s16 = sadd.s32 %s9, 1
    %s17 = ssub.s32 %s9, %s16
    %p18 = scmp.eq.s32.totalorder %s17, 0
    %s20 = sadd.s32 %s19, 1
    %s21 = scalar_select %p18, %s19, %s20
    %p24 = pneg %p18
    %p25 = scmp.eq.s32.totalorder %s9, 1
    %p26 = por %p24, %p25
    %p27 = scmp.ne.s32.totalorder %s19, %s22
    %p28 = scmp.eq.s32.totalorder %s9, 0
    %p29 = por %p27, %p28
    %p30 = scmp.ne.s32.totalorder %s19, %s22
    %p31 = scmp.eq.s32.totalorder %s14, 1
    %p32 = por %p30, %p31
    %p33 = scmp.ne.s32.totalorder %s22, %s23
    %p34 = scmp.eq.s32.totalorder %s14, 0
    %p35 = por %p33, %p34
    %p36 = scmp.ne.s32.totalorder %s22, %s23
    %p37 = scmp.eq.s32.totalorder %s15, 1
    %p38 = por %p36, %p37
    %p40 = scmp.ne.s32.totalorder %s23, %s39
    %p41 = scmp.eq.s32.totalorder %s15, 0
    %p42 = por %p40, %p41
    %s44 = sadd.s32 %s43, 1
    %p47 = scmp.eq.s32.totalorder %s9, 1
    %p48 = scmp.ne.s32.totalorder %s43, %s45
    %p49 = scmp.eq.s32.totalorder %s9, 0
    %p50 = por %p48, %p49
    %p51 = scmp.ne.s32.totalorder %s43, %s45
    %p52 = scmp.eq.s32.totalorder %s14, 1
    %p53 = por %p51, %p52
    %p54 = scmp.ne.s32.totalorder %s45, %s46
    %p55 = scmp.eq.s32.totalorder %s14, 0
    %p56 = por %p54, %p55
    %p57 = scmp.ne.s32.totalorder %s45, %s46
    %p58 = scmp.eq.s32.totalorder %s15, 1
    %p59 = por %p57, %p58
    %p61 = scmp.ne.s32.totalorder %s46, %s60
    %p62 = scmp.eq.s32.totalorder %s15, 0
    %p63 = por %p61, %p62
    %s65 = sadd.s32 %s64, 1
    %p68 = scmp.eq.s32.totalorder %s9, 1
    %p69 = scmp.ne.s32.totalorder %s64, %s66
    %p70 = scmp.eq.s32.totalorder %s9, 0
    %p71 = por %p69, %p70
    %p72 = scmp.ne.s32.totalorder %s64, %s66
    %p73 = scmp.eq.s32.totalorder %s14, 1
    %p74 = por %p72, %p73
    %p75 = scmp.ne.s32.totalorder %s66, %s67
    %p76 = scmp.eq.s32.totalorder %s14, 0
    %p77 = por %p75, %p76
    %p78 = scmp.ne.s32.totalorder %s66, %s67
    %p79 = scmp.eq.s32.totalorder %s15, 1
    %p80 = por %p78, %p79
    %p82 = scmp.ne.s32.totalorder %s67, %s81
    %p83 = scmp.eq.s32.totalorder %s15, 0
    %p84 = por %p82, %p83
    %s85 = ssub.s32 %s9, %s16
    %p86 = scmp.eq.s32.totalorder %s85, 0
    %s88 = sadd.s32 %s87, 1
    %s89 = scalar_select %p86, %s87, %s88
    %p92 = pneg %p86
    %p93 = scmp.eq.s32.totalorder %s9, 1
    %p94 = por %p92, %p93
    %p95 = scmp.ne.s32.totalorder %s87, %s90
    %p96 = scmp.eq.s32.totalorder %s9, 0
    %p97 = por %p95, %p96
    %p98 = scmp.ne.s32.totalorder %s87, %s90
    %p99 = scmp.eq.s32.totalorder %s14, 1
    %p100 = por %p98, %p99
    %p101 = scmp.ne.s32.totalorder %s90, %s91
    %p102 = scmp.eq.s32.totalorder %s14, 0
    %p103 = por %p101, %p102
    %p104 = scmp.ne.s32.totalorder %s90, %s91
    %p105 = scmp.eq.s32.totalorder %s15, 1
    %p106 = por %p104, %p105
    %p108 = scmp.ne.s32.totalorder %s91, %s107
    %p109 = scmp.eq.s32.totalorder %s15, 0
    %p110 = por %p108, %p109
    %p111 = scmp.le.s32.totalorder 1, %s9
    %p112 = scmp.lt.s32.totalorder %s9, 3
    %p113 = pnand %p111, %p112
    %p114 = pneg %p113
    // Predicated region
    $region9: #{simple_classifier_forward.2} parent=5 // pred_check
      _
    $region10: #{simple_classifier_forward.2} parent=5 // pred_check_branch
      %116 = sbr.rel (%p113) target = $region12
    $region11: #{simple_classifier_forward.2} parent=5 // pred_region
      %s117 = ssub.s32 %s9, 1
      // Predicated region
      $region13: #{simple_classifier_forward.2} parent=11 // pred_check
        %p118 = pneg %p56
      $region14: #{simple_classifier_forward.2} parent=11 // pred_check_branch
        %120 = sbr.rel (%p118) target = $region16
      $region15: #{simple_classifier_forward.2} parent=11 // pred_region
        _
      $region16: #{simple_classifier_forward.2} parent=11 // pred_fallthru
        _
      // Predicated region
      $region17: #{simple_classifier_forward.2} parent=11 // pred_check
        %p121 = pneg %p77
      $region18: #{simple_classifier_forward.2} parent=11 // pred_check_branch
        %123 = sbr.rel (%p121) target = $region20
      $region19: #{simple_classifier_forward.2} parent=11 // pred_region
        _
      $region20: #{simple_classifier_forward.2} parent=11 // pred_fallthru
        _
    $region12: #{simple_classifier_forward.2} parent=5 // pred_fallthru
      _
    %p124 = scmp.lt.s32.totalorder %s9, 2
    // Predicated region
    $region21: #{simple_classifier_forward.2} parent=5 // pred_check
      %p125 = pneg %p124
    $region22: #{simple_classifier_forward.2} parent=5 // pred_check_branch
      %127 = sbr.rel (%p125) target = $region24
    $region23: #{simple_classifier_forward.2} parent=5 // pred_region
      // Predicated region
      $region25: #{simple_classifier_forward.2} parent=23 // pred_check
        %p128 = pneg %p29
      $region26: #{simple_classifier_forward.2} parent=23 // pred_check_branch
        %130 = sbr.rel (%p128) target = $region28
      $region27: #{simple_classifier_forward.2} parent=23 // pred_region
        %p131 = scmp.lt.s32.totalorder %s9, 1
        %s132 = scalar_select %p131, %s9, 1
        %s133 = smul.addr %s132, 48
        %s134 = smul.addr %s133, 4
        %s135 = scalar_lea.vmem %s0, %s134
      $region28: #{simple_classifier_forward.2} parent=23 // pred_fallthru
        _
    $region24: #{simple_classifier_forward.2} parent=5 // pred_fallthru
      _
    %p136 = scmp.le.s32.totalorder 1, %s9
    %p137 = scmp.lt.s32.totalorder %s9, 3
    %p138 = pnand %p136, %p137
    %p139 = pneg %p138
    // Predicated region
    $region29: #{simple_classifier_forward.2} parent=5 // pred_check
      _
    $region30: #{simple_classifier_forward.2} parent=5 // pred_check_branch
      %141 = sbr.rel (%p138) target = $region32
    $region31: #{simple_classifier_forward.2} parent=5 // pred_region
      %s142 = ssub.s32 %s9, 1
      %p143 = scmp.lt.s32.totalorder %s14, 1
      %s144 = scalar_select %p143, %s14, 1
      %s145 = smul.addr %s144, 48
      %s146 = smul.addr %s145, 4
      %s147 = scalar_lea.vmem %s0, %s146
      %p148 = pneg %p35
      %p149 = pneg %p32
      %p150 = pneg %p56
      %p151 = pneg %p53
      %p152 = pneg %p77
      %p153 = pneg %p74
      %p154 = pneg %p103
      %p155 = pneg %p100
      %p156 = scmp.lt.s32.totalorder %s14, 1
      %s157 = scalar_select %p156, %s14, 1
      %s158 = smul.addr %s157, 20
      %s159 = smul.addr %s158, 4
      %s160 = scalar_lea.vmem %s3, %s159
      %p161 = scmp.lt.s32.totalorder %s14, 1
      %s162 = scalar_select %p161, %s14, 1
      %s163 = smul.addr %s162, 48
      %s164 = smul.addr %s163, 4
      %s165 = scalar_lea.vmem %s0, %s164
      %p166 = scmp.lt.s32.totalorder %s14, 1
      %s167 = scalar_select %p166, %s14, 1
      %s168 = smul.addr %s167, 20
      %s169 = smul.addr %s168, 4
      %s170 = scalar_lea.vmem %s3, %s169
      %v172 = vld [vmem:[%s165] sm:$0xf]
      %v173 = vld [vmem:[%s165 + $0x4] sm:$0xf]
      %v174 = vld [vmem:[%s165 + $0x8] sm:$0xf]
      %v175 = vld [vmem:[%s165 + $0xc] sm:$0xf]
      %v176 = vld [vmem:[%s165 + $0x10] sm:$0xf]
      %v177 = vld [vmem:[%s165 + $0x14] sm:$0xf]
      %v178 = vld [vmem:[%s165 + $0x18] sm:$0xf]
      %v179 = vld [vmem:[%s165 + $0x1c] sm:$0xf]
      %v180 = vld [vmem:[%s165 + $0x20] sm:$0xf]
      %v181 = vld [vmem:[%s165 + $0x24] sm:$0xf]
      %v182 = vld [vmem:[%s1] sm:$0xff]
      %v183 = vld [vmem:[%s1 + $0x8] sm:$0xff]
      %v184 = vld [vmem:[%s1 + $0x10] sm:$0xff]
      %v185 = vld [vmem:[%s1 + $0x18] sm:$0xff]
      %v186 = vld [vmem:[%s1 + $0x20] sm:$0xff]
      %v187 = vld [vmem:[%s1 + $0x28] sm:$0xff]
      %v188 = vld [vmem:[%s1 + $0x30] sm:$0xff]
      %v189 = vld [vmem:[%s1 + $0x38] sm:$0xff]
      %s190 = scalar_lea.vmem %s165, 48
      %v191 = vld [vmem:[%s190] sm:$0xf]
      %v192 = vld [vmem:[%s190 + $0x4] sm:$0xf]
      %v193 = vld [vmem:[%s190 + $0x8] sm:$0xf]
      %v194 = vld [vmem:[%s190 + $0xc] sm:$0xf]
      %v195 = vld [vmem:[%s190 + $0x10] sm:$0xf]
      %v196 = vld [vmem:[%s190 + $0x14] sm:$0xf]
      %v197 = vld [vmem:[%s190 + $0x18] sm:$0xf]
      %v198 = vld [vmem:[%s190 + $0x1c] sm:$0xf]
      %v199 = vld [vmem:[%s190 + $0x20] sm:$0xf]
      %v200 = vld [vmem:[%s190 + $0x24] sm:$0xf]
      %s201 = scalar_lea.vmem %s1, 64
      %v202 = vld [vmem:[%s201] sm:$0xff]
      %v203 = vld [vmem:[%s201 + $0x8] sm:$0xff]
      %v204 = vld [vmem:[%s201 + $0x10] sm:$0xff]
      %v205 = vld [vmem:[%s201 + $0x18] sm:$0xff]
      %v206 = vld [vmem:[%s201 + $0x20] sm:$0xff]
      %v207 = vld [vmem:[%s201 + $0x28] sm:$0xff]
      %v208 = vld [vmem:[%s201 + $0x30] sm:$0xff]
      %v209 = vld [vmem:[%s201 + $0x38] sm:$0xff]
      %v220 = vunpack.c.l.b16 %v191
      %v221 = vunpack.c.l.b16 %v192
      %v222 = vunpack.c.l.b16 %v193
      %v223 = vunpack.c.l.b16 %v194
      %v224 = vunpack.c.l.b16 %v195
      %v225 = vunpack.c.l.b16 %v196
      %v226 = vunpack.c.l.b16 %v197
      %v227 = vunpack.c.l.b16 %v198
      %v228 = vunpack.c.l.b16 %v199
      %v229 = vunpack.c.l.b16 %v200
      %v230 = vpack.c.b16 %v221, %v220
      %v231 = vpack.c.b16 %v223, %v222
      %v232 = vpack.c.b16 %v225, %v224
      %v233 = vpack.c.b16 %v227, %v226
      %v234 = vpack.c.b16 %v229, %v228
      %v243 = vunpack.c.l.b16 %v202
      %v244 = vunpack.c.h.b16 %v202
      %v245 = vunpack.c.l.b16 %v203
      %v246 = vunpack.c.h.b16 %v203
      %v247 = vunpack.c.l.b16 %v204
      %v248 = vunpack.c.h.b16 %v204
      %v249 = vunpack.c.l.b16 %v205
      %v250 = vunpack.c.h.b16 %v205
      %v251 = vunpack.c.l.b16 %v206
      %v252 = vunpack.c.h.b16 %v206
      %v253 = vunpack.c.l.b16 %v207
      %v254 = vunpack.c.h.b16 %v207
      %v255 = vunpack.c.l.b16 %v208
      %v256 = vunpack.c.h.b16 %v208
      %v257 = vunpack.c.l.b16 %v209
      %v258 = vunpack.c.h.b16 %v209
      %v259 = vpack.c.b16 %v245, %v243
      %v260 = vpack.c.b16 %v246, %v244
      %v261 = vpack.c.b16 %v249, %v247
      %v262 = vpack.c.b16 %v250, %v248
      %v263 = vpack.c.b16 %v253, %v251
      %v264 = vpack.c.b16 %v254, %v252
      %v265 = vpack.c.b16 %v257, %v255
      %v266 = vpack.c.b16 %v258, %v256
      %vm275 = vcmask 523264
      %v277 = vsel %vm275, %v230, 0
      %v280 = vsel %vm275, %v231, 0
      %v283 = vsel %vm275, %v232, 0
      %v286 = vsel %vm275, %v233, 0
      %v289 = vsel %vm275, %v234, 0
      %291 = vmatprep.subr.bf16.mxu0 0
      %292 = vmatpush1.bf16.msra.mxu0 0
      %293 = vmatprep.subr.bf16.mxu0 0
      %294 = vmatpush1.bf16.msra.mxu0 0
      %295 = vmatprep.subr.bf16.mxu0 0
      %296 = vmatpush1.bf16.msra.mxu0 0
      %297 = vmatprep.subr.bf16.mxu0 0
      %298 = vmatpush1.bf16.msra.mxu0 0
      %299 = vmatprep.subr.bf16.mxu0 %v266
      %300 = vmatpush1.bf16.msra.mxu0 %v265
      %301 = vmatprep.subr.bf16.mxu0 %v264
      %302 = vmatpush1.bf16.msra.mxu0 %v263
      %303 = vmatprep.subr.bf16.mxu0 %v262
      %304 = vmatpush1.bf16.msra.mxu0 %v261
      %305 = vmatprep.subr.bf16.mxu0 %v260
      %306 = vmatpush1.bf16.msra.mxu0 %v259
      %307 = vmatprep.subr.bf16.mxu0 0
      %308 = vmatpush2.bf16.msra.mxu0 0
      %309 = vmatprep.subr.bf16.mxu0 0
      %310 = vmatpush2.bf16.msra.mxu0 0
      %311 = vmatprep.subr.bf16.mxu0 0
      %312 = vmatpush2.bf16.msra.mxu0 0
      %313 = vmatprep.subr.bf16.mxu0 0
      %314 = vmatpush2.bf16.msra.mxu0 0
      %315 = vmatprep.subr.bf16.mxu0 0
      %316 = vmatpush2.bf16.msra.mxu0 0
      %317 = vmatprep.subr.bf16.mxu0 0
      %318 = vmatpush2.bf16.msra.mxu0 0
      %319 = vmatprep.subr.bf16.mxu0 0
      %320 = vmatpush2.bf16.msra.mxu0 0
      %321 = vmatprep.subr.bf16.mxu0 0
      %322 = vmatpush2.bf16.msra.mxu0 0
      %323 = vmatprep.mubr.bf16.mxu0 0
      %324 = vmatmul.mubr.bf16.gmra.mxu0 %v277
      %v325 = vpop.f32.mrf.mxu0
      %v326 = vadd.f32 0.0, %v325
      %v327 = vpop.f32.mrf.mxu0
      %v328 = vadd.f32 0.0, %v327
      %v329 = vpop.f32.mrf.mxu0
      %v330 = vadd.f32 0.0, %v329
      %v331 = vpop.f32.mrf.mxu0
      %v332 = vadd.f32 0.0, %v331
      %333 = vmatprep.mubr.bf16.mxu0 0
      %334 = vmatmul.mubr.bf16.gmra.mxu0 %v280
      %v335 = vpop.f32.mrf.mxu0
      %v336 = vadd.f32 0.0, %v335
      %v337 = vpop.f32.mrf.mxu0
      %v338 = vadd.f32 0.0, %v337
      %v339 = vpop.f32.mrf.mxu0
      %v340 = vadd.f32 0.0, %v339
      %v341 = vpop.f32.mrf.mxu0
      %v342 = vadd.f32 0.0, %v341
      %343 = vmatprep.mubr.bf16.mxu0 0
      %344 = vmatmul.mubr.bf16.gmra.mxu0 %v283
      %v345 = vpop.f32.mrf.mxu0
      %v346 = vadd.f32 0.0, %v345
      %v347 = vpop.f32.mrf.mxu0
      %v348 = vadd.f32 0.0, %v347
      %v349 = vpop.f32.mrf.mxu0
      %v350 = vadd.f32 0.0, %v349
      %v351 = vpop.f32.mrf.mxu0
      %v352 = vadd.f32 0.0, %v351
      %353 = vmatprep.mubr.bf16.mxu0 0
      %354 = vmatmul.mubr.bf16.gmra.mxu0 %v286
      %v355 = vpop.f32.mrf.mxu0
      %v356 = vadd.f32 0.0, %v355
      %v357 = vpop.f32.mrf.mxu0
      %v358 = vadd.f32 0.0, %v357
      %v359 = vpop.f32.mrf.mxu0
      %v360 = vadd.f32 0.0, %v359
      %v361 = vpop.f32.mrf.mxu0
      %v362 = vadd.f32 0.0, %v361
      %363 = vmatprep.mubr.bf16.mxu0 0
      %364 = vmatmul.mubr.bf16.gmra.mxu0 %v289
      %v365 = vpop.f32.mrf.mxu0
      %v366 = vadd.f32 0.0, %v365
      %v367 = vpop.f32.mrf.mxu0
      %v368 = vadd.f32 0.0, %v367
      %v369 = vpop.f32.mrf.mxu0
      %v370 = vadd.f32 0.0, %v369
      %v371 = vpop.f32.mrf.mxu0
      %v372 = vadd.f32 0.0, %v371
      %373 = vdwg.mxu0
      %v384 = vunpack.c.l.b16 %v172
      %v385 = vunpack.c.l.b16 %v173
      %v386 = vunpack.c.l.b16 %v174
      %v387 = vunpack.c.l.b16 %v175
      %v388 = vunpack.c.l.b16 %v176
      %v389 = vunpack.c.l.b16 %v177
      %v390 = vunpack.c.l.b16 %v178
      %v391 = vunpack.c.l.b16 %v179
      %v392 = vunpack.c.l.b16 %v180
      %v393 = vunpack.c.l.b16 %v181
      %v394 = vpack.c.b16 %v385, %v384
      %v395 = vpack.c.b16 %v387, %v386
      %v396 = vpack.c.b16 %v389, %v388
      %v397 = vpack.c.b16 %v391, %v390
      %v398 = vpack.c.b16 %v393, %v392
      %v407 = vunpack.c.l.b16 %v182
      %v408 = vunpack.c.h.b16 %v182
      %v409 = vunpack.c.l.b16 %v183
      %v410 = vunpack.c.h.b16 %v183
      %v411 = vunpack.c.l.b16 %v184
      %v412 = vunpack.c.h.b16 %v184
      %v413 = vunpack.c.l.b16 %v185
      %v414 = vunpack.c.h.b16 %v185
      %v415 = vunpack.c.l.b16 %v186
      %v416 = vunpack.c.h.b16 %v186
      %v417 = vunpack.c.l.b16 %v187
      %v418 = vunpack.c.h.b16 %v187
      %v419 = vunpack.c.l.b16 %v188
      %v420 = vunpack.c.h.b16 %v188
      %v421 = vunpack.c.l.b16 %v189
      %v422 = vunpack.c.h.b16 %v189
      %v423 = vpack.c.b16 %v409, %v407
      %v424 = vpack.c.b16 %v410, %v408
      %v425 = vpack.c.b16 %v413, %v411
      %v426 = vpack.c.b16 %v414, %v412
      %v427 = vpack.c.b16 %v417, %v415
      %v428 = vpack.c.b16 %v418, %v416
      %v429 = vpack.c.b16 %v421, %v419
      %v430 = vpack.c.b16 %v422, %v420
      %v440 = vsel %vm275, %v394, 0
      %v443 = vsel %vm275, %v395, 0
      %v446 = vsel %vm275, %v396, 0
      %v449 = vsel %vm275, %v397, 0
      %v452 = vsel %vm275, %v398, 0
      %454 = vmatprep.subr.bf16.mxu0 0
      %455 = vmatpush1.bf16.msra.mxu0 0
      %456 = vmatprep.subr.bf16.mxu0 0
      %457 = vmatpush1.bf16.msra.mxu0 0
      %458 = vmatprep.subr.bf16.mxu0 0
      %459 = vmatpush1.bf16.msra.mxu0 0
      %460 = vmatprep.subr.bf16.mxu0 0
      %461 = vmatpush1.bf16.msra.mxu0 0
      %462 = vmatprep.subr.bf16.mxu0 %v430
      %463 = vmatpush1.bf16.msra.mxu0 %v429
      %464 = vmatprep.subr.bf16.mxu0 %v428
      %465 = vmatpush1.bf16.msra.mxu0 %v427
      %466 = vmatprep.subr.bf16.mxu0 %v426
      %467 = vmatpush1.bf16.msra.mxu0 %v425
      %468 = vmatprep.subr.bf16.mxu0 %v424
      %469 = vmatpush1.bf16.msra.mxu0 %v423
      %470 = vmatprep.subr.bf16.mxu0 0
      %471 = vmatpush2.bf16.msra.mxu0 0
      %472 = vmatprep.subr.bf16.mxu0 0
      %473 = vmatpush2.bf16.msra.mxu0 0
      %474 = vmatprep.subr.bf16.mxu0 0
      %475 = vmatpush2.bf16.msra.mxu0 0
      %476 = vmatprep.subr.bf16.mxu0 0
      %477 = vmatpush2.bf16.msra.mxu0 0
      %478 = vmatprep.subr.bf16.mxu0 0
      %479 = vmatpush2.bf16.msra.mxu0 0
      %480 = vmatprep.subr.bf16.mxu0 0
      %481 = vmatpush2.bf16.msra.mxu0 0
      %482 = vmatprep.subr.bf16.mxu0 0
      %483 = vmatpush2.bf16.msra.mxu0 0
      %484 = vmatprep.subr.bf16.mxu0 0
      %485 = vmatpush2.bf16.msra.mxu0 0
      %486 = vmatprep.mubr.bf16.mxu0 0
      %487 = vmatmul.mubr.bf16.gmra.mxu0 %v440
      %v488 = vpop.f32.mrf.mxu0
      %v489 = vadd.f32 %v326, %v488
      %v490 = vpop.f32.mrf.mxu0
      %v491 = vadd.f32 %v328, %v490
      %v492 = vpop.f32.mrf.mxu0
      %v493 = vadd.f32 %v330, %v492
      %v494 = vpop.f32.mrf.mxu0
      %v495 = vadd.f32 %v332, %v494
      %496 = vmatprep.mubr.bf16.mxu0 0
      %497 = vmatmul.mubr.bf16.gmra.mxu0 %v443
      %v498 = vpop.f32.mrf.mxu0
      %v499 = vadd.f32 %v336, %v498
      %v500 = vpop.f32.mrf.mxu0
      %v501 = vadd.f32 %v338, %v500
      %v502 = vpop.f32.mrf.mxu0
      %v503 = vadd.f32 %v340, %v502
      %v504 = vpop.f32.mrf.mxu0
      %v505 = vadd.f32 %v342, %v504
      %506 = vmatprep.mubr.bf16.mxu0 0
      %507 = vmatmul.mubr.bf16.gmra.mxu0 %v446
      %v508 = vpop.f32.mrf.mxu0
      %v509 = vadd.f32 %v346, %v508
      %v510 = vpop.f32.mrf.mxu0
      %v511 = vadd.f32 %v348, %v510
      %v512 = vpop.f32.mrf.mxu0
      %v513 = vadd.f32 %v350, %v512
      %v514 = vpop.f32.mrf.mxu0
      %v515 = vadd.f32 %v352, %v514
      %516 = vmatprep.mubr.bf16.mxu0 0
      %517 = vmatmul.mubr.bf16.gmra.mxu0 %v449
      %v518 = vpop.f32.mrf.mxu0
      %v519 = vadd.f32 %v356, %v518
      %v520 = vpop.f32.mrf.mxu0
      %v521 = vadd.f32 %v358, %v520
      %v522 = vpop.f32.mrf.mxu0
      %v523 = vadd.f32 %v360, %v522
      %v524 = vpop.f32.mrf.mxu0
      %v525 = vadd.f32 %v362, %v524
      %526 = vmatprep.mubr.bf16.mxu0 0
      %527 = vmatmul.mubr.bf16.gmra.mxu0 %v452
      %v528 = vpop.f32.mrf.mxu0
      %v529 = vadd.f32 %v366, %v528
      %v530 = vpop.f32.mrf.mxu0
      %v531 = vadd.f32 %v368, %v530
      %v532 = vpop.f32.mrf.mxu0
      %v533 = vadd.f32 %v370, %v532
      %v534 = vpop.f32.mrf.mxu0
      %v535 = vadd.f32 %v372, %v534
      %536 = vdwg.mxu0
      %v537 = vld [vmem:[%s165] sm:$0xf]
      %v538 = vld [vmem:[%s165 + $0x4] sm:$0xf]
      %v539 = vld [vmem:[%s165 + $0x8] sm:$0xf]
      %v540 = vld [vmem:[%s165 + $0xc] sm:$0xf]
      %v541 = vld [vmem:[%s165 + $0x10] sm:$0xf]
      %v542 = vld [vmem:[%s165 + $0x14] sm:$0xf]
      %v543 = vld [vmem:[%s165 + $0x18] sm:$0xf]
      %v544 = vld [vmem:[%s165 + $0x1c] sm:$0xf]
      %v545 = vld [vmem:[%s165 + $0x20] sm:$0xf]
      %v546 = vld [vmem:[%s165 + $0x24] sm:$0xf]
      %v547 = vld [vmem:[%s165 + $0x28] sm:$0x1]
      %s548 = scalar_lea.vmem %s1, 128
      %v549 = vld [vmem:[%s548] sm:$0xff]
      %v550 = vld [vmem:[%s548 + $0x8] sm:$0xff]
      %v551 = vld [vmem:[%s548 + $0x10] sm:$0xff]
      %v552 = vld [vmem:[%s548 + $0x18] sm:$0xff]
      %v553 = vld [vmem:[%s548 + $0x20] sm:$0xff]
      %v554 = vld [vmem:[%s548 + $0x28] sm:$0xff]
      %v555 = vld [vmem:[%s548 + $0x30] sm:$0xff]
      %v556 = vld [vmem:[%s548 + $0x38] sm:$0xff]
      %v568 = vunpack.c.l.b16 %v537
      %v569 = vunpack.c.l.b16 %v538
      %v570 = vunpack.c.l.b16 %v539
      %v571 = vunpack.c.l.b16 %v540
      %v572 = vunpack.c.l.b16 %v541
      %v573 = vunpack.c.l.b16 %v542
      %v574 = vunpack.c.l.b16 %v543
      %v575 = vunpack.c.l.b16 %v544
      %v576 = vunpack.c.l.b16 %v545
      %v577 = vunpack.c.l.b16 %v546
      %v578 = vunpack.c.l.b16 %v547
      %v579 = vpack.c.b16 %v569, %v568
      %v580 = vpack.c.b16 %v571, %v570
      %v581 = vpack.c.b16 %v573, %v572
      %v582 = vpack.c.b16 %v575, %v574
      %v583 = vpack.c.b16 %v577, %v576
      %v584 = vpack.c.b16 %v578, %v578
      %vm585 = vsmask.f32 7424
      %v587 = vshrl.u32 %v579, 16
      %v589 = vshll.u32 %v579, 16
      %v591 = vrot.slane %v589, 1
      %v592 = vor.u32 %v587, %v591
      %v594 = vshll.u32 %v580, 16
      %v596 = vrot.slane %v594, 1
      %v597 = vsel %vm585, %v592, %v596
      %v598 = vshrl.u32 %v580, 16
      %v600 = vor.u32 %v598, %v596
      %v602 = vshll.u32 %v581, 16
      %v604 = vrot.slane %v602, 1
      %v605 = vsel %vm585, %v600, %v604
      %v606 = vshrl.u32 %v581, 16
      %v608 = vor.u32 %v606, %v604
      %v610 = vshll.u32 %v582, 16
      %v612 = vrot.slane %v610, 1
      %v613 = vsel %vm585, %v608, %v612
      %v614 = vshrl.u32 %v582, 16
      %v616 = vor.u32 %v614, %v612
      %v618 = vshll.u32 %v583, 16
      %v620 = vrot.slane %v618, 1
      %v621 = vsel %vm585, %v616, %v620
      %v622 = vshrl.u32 %v583, 16
      %v624 = vor.u32 %v622, %v620
      %v626 = vshll.u32 %v584, 16
      %v628 = vrot.slane %v626, 1
      %v629 = vsel %vm585, %v624, %v628
      %v638 = vunpack.c.l.b16 %v549
      %v639 = vunpack.c.h.b16 %v549
      %v640 = vunpack.c.l.b16 %v550
      %v641 = vunpack.c.h.b16 %v550
      %v642 = vunpack.c.l.b16 %v551
      %v643 = vunpack.c.h.b16 %v551
      %v644 = vunpack.c.l.b16 %v552
      %v645 = vunpack.c.h.b16 %v552
      %v646 = vunpack.c.l.b16 %v553
      %v647 = vunpack.c.h.b16 %v553
      %v648 = vunpack.c.l.b16 %v554
      %v649 = vunpack.c.h.b16 %v554
      %v650 = vunpack.c.l.b16 %v555
      %v651 = vunpack.c.h.b16 %v555
      %v652 = vunpack.c.l.b16 %v556
      %v653 = vunpack.c.h.b16 %v556
      %v654 = vpack.c.b16 %v640, %v638
      %v655 = vpack.c.b16 %v641, %v639
      %v656 = vpack.c.b16 %v644, %v642
      %v657 = vpack.c.b16 %v645, %v643
      %v658 = vpack.c.b16 %v648, %v646
      %v659 = vpack.c.b16 %v649, %v647
      %v660 = vpack.c.b16 %v652, %v650
      %v661 = vpack.c.b16 %v653, %v651
      %v671 = vsel %vm275, %v597, 0
      %v674 = vsel %vm275, %v605, 0
      %v677 = vsel %vm275, %v613, 0
      %v680 = vsel %vm275, %v621, 0
      %v683 = vsel %vm275, %v629, 0
      %685 = vmatprep.subr.bf16.mxu0 0
      %686 = vmatpush1.bf16.msra.mxu0 0
      %687 = vmatprep.subr.bf16.mxu0 0
      %688 = vmatpush1.bf16.msra.mxu0 0
      %689 = vmatprep.subr.bf16.mxu0 0
      %690 = vmatpush1.bf16.msra.mxu0 0
      %691 = vmatprep.subr.bf16.mxu0 0
      %692 = vmatpush1.bf16.msra.mxu0 0
      %693 = vmatprep.subr.bf16.mxu0 %v661
      %694 = vmatpush1.bf16.msra.mxu0 %v660
      %695 = vmatprep.subr.bf16.mxu0 %v659
      %696 = vmatpush1.bf16.msra.mxu0 %v658
      %697 = vmatprep.subr.bf16.mxu0 %v657
      %698 = vmatpush1.bf16.msra.mxu0 %v656
      %699 = vmatprep.subr.bf16.mxu0 %v655
      %700 = vmatpush1.bf16.msra.mxu0 %v654
      %701 = vmatprep.subr.bf16.mxu0 0
      %702 = vmatpush2.bf16.msra.mxu0 0
      %703 = vmatprep.subr.bf16.mxu0 0
      %704 = vmatpush2.bf16.msra.mxu0 0
      %705 = vmatprep.subr.bf16.mxu0 0
      %706 = vmatpush2.bf16.msra.mxu0 0
      %707 = vmatprep.subr.bf16.mxu0 0
      %708 = vmatpush2.bf16.msra.mxu0 0
      %709 = vmatprep.subr.bf16.mxu0 0
      %710 = vmatpush2.bf16.msra.mxu0 0
      %711 = vmatprep.subr.bf16.mxu0 0
      %712 = vmatpush2.bf16.msra.mxu0 0
      %713 = vmatprep.subr.bf16.mxu0 0
      %714 = vmatpush2.bf16.msra.mxu0 0
      %715 = vmatprep.subr.bf16.mxu0 0
      %716 = vmatpush2.bf16.msra.mxu0 0
      %717 = vmatprep.mubr.bf16.mxu0 0
      %718 = vmatmul.mubr.bf16.gmra.mxu0 %v671
      %v719 = vpop.f32.mrf.mxu0
      %v720 = vadd.f32 0.0, %v719
      %v721 = vpop.f32.mrf.mxu0
      %v722 = vadd.f32 0.0, %v721
      %v723 = vpop.f32.mrf.mxu0
      %v724 = vadd.f32 0.0, %v723
      %v725 = vpop.f32.mrf.mxu0
      %v726 = vadd.f32 0.0, %v725
      %727 = vmatprep.mubr.bf16.mxu0 0
      %728 = vmatmul.mubr.bf16.gmra.mxu0 %v674
      %v729 = vpop.f32.mrf.mxu0
      %v730 = vadd.f32 0.0, %v729
      %v731 = vpop.f32.mrf.mxu0
      %v732 = vadd.f32 0.0, %v731
      %v733 = vpop.f32.mrf.mxu0
      %v734 = vadd.f32 0.0, %v733
      %v735 = vpop.f32.mrf.mxu0
      %v736 = vadd.f32 0.0, %v735
      %737 = vmatprep.mubr.bf16.mxu0 0
      %738 = vmatmul.mubr.bf16.gmra.mxu0 %v677
      %v739 = vpop.f32.mrf.mxu0
      %v740 = vadd.f32 0.0, %v739
      %v741 = vpop.f32.mrf.mxu0
      %v742 = vadd.f32 0.0, %v741
      %v743 = vpop.f32.mrf.mxu0
      %v744 = vadd.f32 0.0, %v743
      %v745 = vpop.f32.mrf.mxu0
      %v746 = vadd.f32 0.0, %v745
      %747 = vmatprep.mubr.bf16.mxu0 0
      %748 = vmatmul.mubr.bf16.gmra.mxu0 %v680
      %v749 = vpop.f32.mrf.mxu0
      %v750 = vadd.f32 0.0, %v749
      %v751 = vpop.f32.mrf.mxu0
      %v752 = vadd.f32 0.0, %v751
      %v753 = vpop.f32.mrf.mxu0
      %v754 = vadd.f32 0.0, %v753
      %v755 = vpop.f32.mrf.mxu0
      %v756 = vadd.f32 0.0, %v755
      %757 = vmatprep.mubr.bf16.mxu0 0
      %758 = vmatmul.mubr.bf16.gmra.mxu0 %v683
      %v759 = vpop.f32.mrf.mxu0
      %v760 = vadd.f32 0.0, %v759
      %v761 = vpop.f32.mrf.mxu0
      %v762 = vadd.f32 0.0, %v761
      %v763 = vpop.f32.mrf.mxu0
      %v764 = vadd.f32 0.0, %v763
      %v765 = vpop.f32.mrf.mxu0
      %v766 = vadd.f32 0.0, %v765
      %767 = vdwg.mxu0
      %v768 = vadd.f32 %v489, %v720
      %v769 = vadd.f32 %v491, %v722
      %v770 = vadd.f32 %v493, %v724
      %v771 = vadd.f32 %v495, %v726
      %v772 = vadd.f32 %v499, %v730
      %v773 = vadd.f32 %v501, %v732
      %v774 = vadd.f32 %v503, %v734
      %v775 = vadd.f32 %v505, %v736
      %v776 = vadd.f32 %v509, %v740
      %v777 = vadd.f32 %v511, %v742
      %v778 = vadd.f32 %v513, %v744
      %v779 = vadd.f32 %v515, %v746
      %v780 = vadd.f32 %v519, %v750
      %v781 = vadd.f32 %v521, %v752
      %v782 = vadd.f32 %v523, %v754
      %v783 = vadd.f32 %v525, %v756
      %v784 = vadd.f32 %v529, %v760
      %v785 = vadd.f32 %v531, %v762
      %v786 = vadd.f32 %v533, %v764
      %v787 = vadd.f32 %v535, %v766
      %s788 = scalar_lea.vmem %s165, 96
      %v789 = vld [vmem:[%s788] sm:$0xf]
      %v790 = vld [vmem:[%s788 + $0x4] sm:$0xf]
      %v791 = vld [vmem:[%s788 + $0x8] sm:$0xf]
      %v792 = vld [vmem:[%s788 + $0xc] sm:$0xf]
      %v793 = vld [vmem:[%s788 + $0x10] sm:$0xf]
      %v794 = vld [vmem:[%s788 + $0x14] sm:$0xf]
      %v795 = vld [vmem:[%s788 + $0x18] sm:$0xf]
      %v796 = vld [vmem:[%s788 + $0x1c] sm:$0xf]
      %v797 = vld [vmem:[%s788 + $0x20] sm:$0xf]
      %v798 = vld [vmem:[%s788 + $0x24] sm:$0xf]
      %s799 = scalar_lea.vmem %s1, 192
      %v800 = vld [vmem:[%s799] sm:$0xff]
      %v801 = vld [vmem:[%s799 + $0x8] sm:$0xff]
      %v802 = vld [vmem:[%s799 + $0x10] sm:$0xff]
      %v803 = vld [vmem:[%s799 + $0x18] sm:$0xff]
      %v804 = vld [vmem:[%s799 + $0x20] sm:$0xff]
      %v805 = vld [vmem:[%s799 + $0x28] sm:$0xff]
      %v806 = vld [vmem:[%s799 + $0x30] sm:$0xff]
      %v807 = vld [vmem:[%s799 + $0x38] sm:$0xff]
      %v818 = vunpack.c.l.b16 %v789
      %v819 = vunpack.c.l.b16 %v790
      %v820 = vunpack.c.l.b16 %v791
      %v821 = vunpack.c.l.b16 %v792
      %v822 = vunpack.c.l.b16 %v793
      %v823 = vunpack.c.l.b16 %v794
      %v824 = vunpack.c.l.b16 %v795
      %v825 = vunpack.c.l.b16 %v796
      %v826 = vunpack.c.l.b16 %v797
      %v827 = vunpack.c.l.b16 %v798
      %v828 = vpack.c.b16 %v819, %v818
      %v829 = vpack.c.b16 %v821, %v820
      %v830 = vpack.c.b16 %v823, %v822
      %v831 = vpack.c.b16 %v825, %v824
      %v832 = vpack.c.b16 %v827, %v826
      %v841 = vunpack.c.l.b16 %v800
      %v842 = vunpack.c.h.b16 %v800
      %v843 = vunpack.c.l.b16 %v801
      %v844 = vunpack.c.h.b16 %v801
      %v845 = vunpack.c.l.b16 %v802
      %v846 = vunpack.c.h.b16 %v802
      %v847 = vunpack.c.l.b16 %v803
      %v848 = vunpack.c.h.b16 %v803
      %v849 = vunpack.c.l.b16 %v804
      %v850 = vunpack.c.h.b16 %v804
      %v851 = vunpack.c.l.b16 %v805
      %v852 = vunpack.c.h.b16 %v805
      %v853 = vunpack.c.l.b16 %v806
      %v854 = vunpack.c.h.b16 %v806
      %v855 = vunpack.c.l.b16 %v807
      %v856 = vunpack.c.h.b16 %v807
      %v857 = vpack.c.b16 %v843, %v841
      %v858 = vpack.c.b16 %v844, %v842
      %v859 = vpack.c.b16 %v847, %v845
      %v860 = vpack.c.b16 %v848, %v846
      %v861 = vpack.c.b16 %v851, %v849
      %v862 = vpack.c.b16 %v852, %v850
      %v863 = vpack.c.b16 %v855, %v853
      %v864 = vpack.c.b16 %v856, %v854
      %v874 = vsel %vm275, %v828, 0
      %v877 = vsel %vm275, %v829, 0
      %v880 = vsel %vm275, %v830, 0
      %v883 = vsel %vm275, %v831, 0
      %v886 = vsel %vm275, %v832, 0
      %888 = vmatprep.subr.bf16.mxu0 0
      %889 = vmatpush1.bf16.msra.mxu0 0
      %890 = vmatprep.subr.bf16.mxu0 0
      %891 = vmatpush1.bf16.msra.mxu0 0
      %892 = vmatprep.subr.bf16.mxu0 0
      %893 = vmatpush1.bf16.msra.mxu0 0
      %894 = vmatprep.subr.bf16.mxu0 0
      %895 = vmatpush1.bf16.msra.mxu0 0
      %896 = vmatprep.subr.bf16.mxu0 %v864
      %897 = vmatpush1.bf16.msra.mxu0 %v863
      %898 = vmatprep.subr.bf16.mxu0 %v862
      %899 = vmatpush1.bf16.msra.mxu0 %v861
      %900 = vmatprep.subr.bf16.mxu0 %v860
      %901 = vmatpush1.bf16.msra.mxu0 %v859
      %902 = vmatprep.subr.bf16.mxu0 %v858
      %903 = vmatpush1.bf16.msra.mxu0 %v857
      %904 = vmatprep.subr.bf16.mxu0 0
      %905 = vmatpush2.bf16.msra.mxu0 0
      %906 = vmatprep.subr.bf16.mxu0 0
      %907 = vmatpush2.bf16.msra.mxu0 0
      %908 = vmatprep.subr.bf16.mxu0 0
      %909 = vmatpush2.bf16.msra.mxu0 0
      %910 = vmatprep.subr.bf16.mxu0 0
      %911 = vmatpush2.bf16.msra.mxu0 0
      %912 = vmatprep.subr.bf16.mxu0 0
      %913 = vmatpush2.bf16.msra.mxu0 0
      %914 = vmatprep.subr.bf16.mxu0 0
      %915 = vmatpush2.bf16.msra.mxu0 0
      %916 = vmatprep.subr.bf16.mxu0 0
      %917 = vmatpush2.bf16.msra.mxu0 0
      %918 = vmatprep.subr.bf16.mxu0 0
      %919 = vmatpush2.bf16.msra.mxu0 0
      %920 = vmatprep.mubr.bf16.mxu0 0
      %921 = vmatmul.mubr.bf16.gmra.mxu0 %v874
      %v922 = vpop.f32.mrf.mxu0
      %v923 = vadd.f32 0.0, %v922
      %v924 = vpop.f32.mrf.mxu0
      %v925 = vadd.f32 0.0, %v924
      %v926 = vpop.f32.mrf.mxu0
      %v927 = vadd.f32 0.0, %v926
      %v928 = vpop.f32.mrf.mxu0
      %v929 = vadd.f32 0.0, %v928
      %930 = vmatprep.mubr.bf16.mxu0 0
      %931 = vmatmul.mubr.bf16.gmra.mxu0 %v877
      %v932 = vpop.f32.mrf.mxu0
      %v933 = vadd.f32 0.0, %v932
      %v934 = vpop.f32.mrf.mxu0
      %v935 = vadd.f32 0.0, %v934
      %v936 = vpop.f32.mrf.mxu0
      %v937 = vadd.f32 0.0, %v936
      %v938 = vpop.f32.mrf.mxu0
      %v939 = vadd.f32 0.0, %v938
      %940 = vmatprep.mubr.bf16.mxu0 0
      %941 = vmatmul.mubr.bf16.gmra.mxu0 %v880
      %v942 = vpop.f32.mrf.mxu0
      %v943 = vadd.f32 0.0, %v942
      %v944 = vpop.f32.mrf.mxu0
      %v945 = vadd.f32 0.0, %v944
      %v946 = vpop.f32.mrf.mxu0
      %v947 = vadd.f32 0.0, %v946
      %v948 = vpop.f32.mrf.mxu0
      %v949 = vadd.f32 0.0, %v948
      %950 = vmatprep.mubr.bf16.mxu0 0
      %951 = vmatmul.mubr.bf16.gmra.mxu0 %v883
      %v952 = vpop.f32.mrf.mxu0
      %v953 = vadd.f32 0.0, %v952
      %v954 = vpop.f32.mrf.mxu0
      %v955 = vadd.f32 0.0, %v954
      %v956 = vpop.f32.mrf.mxu0
      %v957 = vadd.f32 0.0, %v956
      %v958 = vpop.f32.mrf.mxu0
      %v959 = vadd.f32 0.0, %v958
      %960 = vmatprep.mubr.bf16.mxu0 0
      %961 = vmatmul.mubr.bf16.gmra.mxu0 %v886
      %v962 = vpop.f32.mrf.mxu0
      %v963 = vadd.f32 0.0, %v962
      %v964 = vpop.f32.mrf.mxu0
      %v965 = vadd.f32 0.0, %v964
      %v966 = vpop.f32.mrf.mxu0
      %v967 = vadd.f32 0.0, %v966
      %v968 = vpop.f32.mrf.mxu0
      %v969 = vadd.f32 0.0, %v968
      %970 = vdwg.mxu0
      %v971 = vadd.f32 %v768, %v923
      %v972 = vadd.f32 %v769, %v925
      %v973 = vadd.f32 %v770, %v927
      %v974 = vadd.f32 %v771, %v929
      %v975 = vadd.f32 %v772, %v933
      %v976 = vadd.f32 %v773, %v935
      %v977 = vadd.f32 %v774, %v937
      %v978 = vadd.f32 %v775, %v939
      %v979 = vadd.f32 %v776, %v943
      %v980 = vadd.f32 %v777, %v945
      %v981 = vadd.f32 %v778, %v947
      %v982 = vadd.f32 %v779, %v949
      %v983 = vadd.f32 %v780, %v953
      %v984 = vadd.f32 %v781, %v955
      %v985 = vadd.f32 %v782, %v957
      %v986 = vadd.f32 %v783, %v959
      %v987 = vadd.f32 %v784, %v963
      %v988 = vadd.f32 %v785, %v965
      %v989 = vadd.f32 %v786, %v967
      %v990 = vadd.f32 %v787, %v969
      %s991 = scalar_lea.vmem %s165, 144
      %v992 = vld [vmem:[%s991] sm:$0xf]
      %v993 = vld [vmem:[%s991 + $0x4] sm:$0xf]
      %v994 = vld [vmem:[%s991 + $0x8] sm:$0xf]
      %v995 = vld [vmem:[%s991 + $0xc] sm:$0xf]
      %v996 = vld [vmem:[%s991 + $0x10] sm:$0xf]
      %v997 = vld [vmem:[%s991 + $0x14] sm:$0xf]
      %v998 = vld [vmem:[%s991 + $0x18] sm:$0xf]
      %v999 = vld [vmem:[%s991 + $0x1c] sm:$0xf]
      %v1000 = vld [vmem:[%s991 + $0x20] sm:$0xf]
      %v1001 = vld [vmem:[%s991 + $0x24] sm:$0xf]
      %s1002 = scalar_lea.vmem %s1, 256
      %v1003 = vld [vmem:[%s1002] sm:$0xff]
      %v1004 = vld [vmem:[%s1002 + $0x8] sm:$0xff]
      %v1005 = vld [vmem:[%s1002 + $0x10] sm:$0xff]
      %v1006 = vld [vmem:[%s1002 + $0x18] sm:$0xff]
      %v1007 = vld [vmem:[%s1002 + $0x20] sm:$0xff]
      %v1008 = vld [vmem:[%s1002 + $0x28] sm:$0xff]
      %v1009 = vld [vmem:[%s1002 + $0x30] sm:$0xff]
      %v1010 = vld [vmem:[%s1002 + $0x38] sm:$0xff]
      %v1021 = vunpack.c.l.b16 %v992
      %v1022 = vunpack.c.l.b16 %v993
      %v1023 = vunpack.c.l.b16 %v994
      %v1024 = vunpack.c.l.b16 %v995
      %v1025 = vunpack.c.l.b16 %v996
      %v1026 = vunpack.c.l.b16 %v997
      %v1027 = vunpack.c.l.b16 %v998
      %v1028 = vunpack.c.l.b16 %v999
      %v1029 = vunpack.c.l.b16 %v1000
      %v1030 = vunpack.c.l.b16 %v1001
      %v1031 = vpack.c.b16 %v1022, %v1021
      %v1032 = vpack.c.b16 %v1024, %v1023
      %v1033 = vpack.c.b16 %v1026, %v1025
      %v1034 = vpack.c.b16 %v1028, %v1027
      %v1035 = vpack.c.b16 %v1030, %v1029
      %v1044 = vunpack.c.l.b16 %v1003
      %v1045 = vunpack.c.h.b16 %v1003
      %v1046 = vunpack.c.l.b16 %v1004
      %v1047 = vunpack.c.h.b16 %v1004
      %v1048 = vunpack.c.l.b16 %v1005
      %v1049 = vunpack.c.h.b16 %v1005
      %v1050 = vunpack.c.l.b16 %v1006
      %v1051 = vunpack.c.h.b16 %v1006
      %v1052 = vunpack.c.l.b16 %v1007
      %v1053 = vunpack.c.h.b16 %v1007
      %v1054 = vunpack.c.l.b16 %v1008
      %v1055 = vunpack.c.h.b16 %v1008
      %v1056 = vunpack.c.l.b16 %v1009
      %v1057 = vunpack.c.h.b16 %v1009
      %v1058 = vunpack.c.l.b16 %v1010
      %v1059 = vunpack.c.h.b16 %v1010
      %v1060 = vpack.c.b16 %v1046, %v1044
      %v1061 = vpack.c.b16 %v1047, %v1045
      %v1062 = vpack.c.b16 %v1050, %v1048
      %v1063 = vpack.c.b16 %v1051, %v1049
      %v1064 = vpack.c.b16 %v1054, %v1052
      %v1065 = vpack.c.b16 %v1055, %v1053
      %v1066 = vpack.c.b16 %v1058, %v1056
      %v1067 = vpack.c.b16 %v1059, %v1057
      %v1077 = vsel %vm275, %v1031, 0
      %v1080 = vsel %vm275, %v1032, 0
      %v1083 = vsel %vm275, %v1033, 0
      %v1086 = vsel %vm275, %v1034, 0
      %v1089 = vsel %vm275, %v1035, 0
      %1091 = vmatprep.subr.bf16.mxu0 0
      %1092 = vmatpush1.bf16.msra.mxu0 0
      %1093 = vmatprep.subr.bf16.mxu0 0
      %1094 = vmatpush1.bf16.msra.mxu0 0
      %1095 = vmatprep.subr.bf16.mxu0 0
      %1096 = vmatpush1.bf16.msra.mxu0 0
      %1097 = vmatprep.subr.bf16.mxu0 0
      %1098 = vmatpush1.bf16.msra.mxu0 0
      %1099 = vmatprep.subr.bf16.mxu0 %v1067
      %1100 = vmatpush1.bf16.msra.mxu0 %v1066
      %1101 = vmatprep.subr.bf16.mxu0 %v1065
      %1102 = vmatpush1.bf16.msra.mxu0 %v1064
      %1103 = vmatprep.subr.bf16.mxu0 %v1063
      %1104 = vmatpush1.bf16.msra.mxu0 %v1062
      %1105 = vmatprep.subr.bf16.mxu0 %v1061
      %1106 = vmatpush1.bf16.msra.mxu0 %v1060
      %1107 = vmatprep.subr.bf16.mxu0 0
      %1108 = vmatpush2.bf16.msra.mxu0 0
      %1109 = vmatprep.subr.bf16.mxu0 0
      %1110 = vmatpush2.bf16.msra.mxu0 0
      %1111 = vmatprep.subr.bf16.mxu0 0
      %1112 = vmatpush2.bf16.msra.mxu0 0
      %1113 = vmatprep.subr.bf16.mxu0 0
      %1114 = vmatpush2.bf16.msra.mxu0 0
      %1115 = vmatprep.subr.bf16.mxu0 0
      %1116 = vmatpush2.bf16.msra.mxu0 0
      %1117 = vmatprep.subr.bf16.mxu0 0
      %1118 = vmatpush2.bf16.msra.mxu0 0
      %1119 = vmatprep.subr.bf16.mxu0 0
      %1120 = vmatpush2.bf16.msra.mxu0 0
      %1121 = vmatprep.subr.bf16.mxu0 0
      %1122 = vmatpush2.bf16.msra.mxu0 0
      %1123 = vmatprep.mubr.bf16.mxu0 0
      %1124 = vmatmul.mubr.bf16.gmra.mxu0 %v1077
      %v1125 = vpop.f32.mrf.mxu0
      %v1126 = vadd.f32 0.0, %v1125
      %v1127 = vpop.f32.mrf.mxu0
      %v1128 = vadd.f32 0.0, %v1127
      %v1129 = vpop.f32.mrf.mxu0
      %v1130 = vadd.f32 0.0, %v1129
      %v1131 = vpop.f32.mrf.mxu0
      %v1132 = vadd.f32 0.0, %v1131
      %1133 = vmatprep.mubr.bf16.mxu0 0
      %1134 = vmatmul.mubr.bf16.gmra.mxu0 %v1080
      %v1135 = vpop.f32.mrf.mxu0
      %v1136 = vadd.f32 0.0, %v1135
      %v1137 = vpop.f32.mrf.mxu0
      %v1138 = vadd.f32 0.0, %v1137
      %v1139 = vpop.f32.mrf.mxu0
      %v1140 = vadd.f32 0.0, %v1139
      %v1141 = vpop.f32.mrf.mxu0
      %v1142 = vadd.f32 0.0, %v1141
      %1143 = vmatprep.mubr.bf16.mxu0 0
      %1144 = vmatmul.mubr.bf16.gmra.mxu0 %v1083
      %v1145 = vpop.f32.mrf.mxu0
      %v1146 = vadd.f32 0.0, %v1145
      %v1147 = vpop.f32.mrf.mxu0
      %v1148 = vadd.f32 0.0, %v1147
      %v1149 = vpop.f32.mrf.mxu0
      %v1150 = vadd.f32 0.0, %v1149
      %v1151 = vpop.f32.mrf.mxu0
      %v1152 = vadd.f32 0.0, %v1151
      %1153 = vmatprep.mubr.bf16.mxu0 0
      %1154 = vmatmul.mubr.bf16.gmra.mxu0 %v1086
      %v1155 = vpop.f32.mrf.mxu0
      %v1156 = vadd.f32 0.0, %v1155
      %v1157 = vpop.f32.mrf.mxu0
      %v1158 = vadd.f32 0.0, %v1157
      %v1159 = vpop.f32.mrf.mxu0
      %v1160 = vadd.f32 0.0, %v1159
      %v1161 = vpop.f32.mrf.mxu0
      %v1162 = vadd.f32 0.0, %v1161
      %1163 = vmatprep.mubr.bf16.mxu0 0
      %1164 = vmatmul.mubr.bf16.gmra.mxu0 %v1089
      %v1165 = vpop.f32.mrf.mxu0
      %v1166 = vadd.f32 0.0, %v1165
      %v1167 = vpop.f32.mrf.mxu0
      %v1168 = vadd.f32 0.0, %v1167
      %v1169 = vpop.f32.mrf.mxu0
      %v1170 = vadd.f32 0.0, %v1169
      %v1171 = vpop.f32.mrf.mxu0
      %v1172 = vadd.f32 0.0, %v1171
      %1173 = vdwg.mxu0
      %v1174 = vadd.f32 %v971, %v1126
      %v1175 = vadd.f32 %v972, %v1128
      %v1176 = vadd.f32 %v973, %v1130
      %v1177 = vadd.f32 %v974, %v1132
      %v1178 = vadd.f32 %v975, %v1136
      %v1179 = vadd.f32 %v976, %v1138
      %v1180 = vadd.f32 %v977, %v1140
      %v1181 = vadd.f32 %v978, %v1142
      %v1182 = vadd.f32 %v979, %v1146
      %v1183 = vadd.f32 %v980, %v1148
      %v1184 = vadd.f32 %v981, %v1150
      %v1185 = vadd.f32 %v982, %v1152
      %v1186 = vadd.f32 %v983, %v1156
      %v1187 = vadd.f32 %v984, %v1158
      %v1188 = vadd.f32 %v985, %v1160
      %v1189 = vadd.f32 %v986, %v1162
      %v1190 = vadd.f32 %v987, %v1166
      %v1191 = vadd.f32 %v988, %v1168
      %v1192 = vadd.f32 %v989, %v1170
      %v1193 = vadd.f32 %v990, %v1172
      %v1194 = vld [vmem:[%s788] sm:$0xf]
      %v1195 = vld [vmem:[%s788 + $0x4] sm:$0xf]
      %v1196 = vld [vmem:[%s788 + $0x8] sm:$0xf]
      %v1197 = vld [vmem:[%s788 + $0xc] sm:$0xf]
      %v1198 = vld [vmem:[%s788 + $0x10] sm:$0xf]
      %v1199 = vld [vmem:[%s788 + $0x14] sm:$0xf]
      %v1200 = vld [vmem:[%s788 + $0x18] sm:$0xf]
      %v1201 = vld [vmem:[%s788 + $0x1c] sm:$0xf]
      %v1202 = vld [vmem:[%s788 + $0x20] sm:$0xf]
      %v1203 = vld [vmem:[%s788 + $0x24] sm:$0xf]
      %v1204 = vld [vmem:[%s788 + $0x28] sm:$0x1]
      %s1205 = scalar_lea.vmem %s1, 320
      %v1206 = vld [vmem:[%s1205] sm:$0xff]
      %v1207 = vld [vmem:[%s1205 + $0x8] sm:$0xff]
      %v1208 = vld [vmem:[%s1205 + $0x10] sm:$0xff]
      %v1209 = vld [vmem:[%s1205 + $0x18] sm:$0xff]
      %v1210 = vld [vmem:[%s1205 + $0x20] sm:$0xff]
      %v1211 = vld [vmem:[%s1205 + $0x28] sm:$0xff]
      %v1212 = vld [vmem:[%s1205 + $0x30] sm:$0xff]
      %v1213 = vld [vmem:[%s1205 + $0x38] sm:$0xff]
      %v1225 = vunpack.c.l.b16 %v1194
      %v1226 = vunpack.c.l.b16 %v1195
      %v1227 = vunpack.c.l.b16 %v1196
      %v1228 = vunpack.c.l.b16 %v1197
      %v1229 = vunpack.c.l.b16 %v1198
      %v1230 = vunpack.c.l.b16 %v1199
      %v1231 = vunpack.c.l.b16 %v1200
      %v1232 = vunpack.c.l.b16 %v1201
      %v1233 = vunpack.c.l.b16 %v1202
      %v1234 = vunpack.c.l.b16 %v1203
      %v1235 = vunpack.c.l.b16 %v1204
      %v1236 = vpack.c.b16 %v1226, %v1225
      %v1237 = vpack.c.b16 %v1228, %v1227
      %v1238 = vpack.c.b16 %v1230, %v1229
      %v1239 = vpack.c.b16 %v1232, %v1231
      %v1240 = vpack.c.b16 %v1234, %v1233
      %v1241 = vpack.c.b16 %v1235, %v1235
      %v1243 = vshrl.u32 %v1236, 16
      %v1245 = vshll.u32 %v1236, 16
      %v1247 = vrot.slane %v1245, 1
      %v1248 = vor.u32 %v1243, %v1247
      %v1250 = vshll.u32 %v1237, 16
      %v1252 = vrot.slane %v1250, 1
      %v1253 = vsel %vm585, %v1248, %v1252
      %v1254 = vshrl.u32 %v1237, 16
      %v1256 = vor.u32 %v1254, %v1252
      %v1258 = vshll.u32 %v1238, 16
      %v1260 = vrot.slane %v1258, 1
      %v1261 = vsel %vm585, %v1256, %v1260
      %v1262 = vshrl.u32 %v1238, 16
      %v1264 = vor.u32 %v1262, %v1260
      %v1266 = vshll.u32 %v1239, 16
      %v1268 = vrot.slane %v1266, 1
      %v1269 = vsel %vm585, %v1264, %v1268
      %v1270 = vshrl.u32 %v1239, 16
      %v1272 = vor.u32 %v1270, %v1268
      %v1274 = vshll.u32 %v1240, 16
      %v1276 = vrot.slane %v1274, 1
      %v1277 = vsel %vm585, %v1272, %v1276
      %v1278 = vshrl.u32 %v1240, 16
      %v1280 = vor.u32 %v1278, %v1276
      %v1282 = vshll.u32 %v1241, 16
      %v1284 = vrot.slane %v1282, 1
      %v1285 = vsel %vm585, %v1280, %v1284
      %v1294 = vunpack.c.l.b16 %v1206
      %v1295 = vunpack.c.h.b16 %v1206
      %v1296 = vunpack.c.l.b16 %v1207
      %v1297 = vunpack.c.h.b16 %v1207
      %v1298 = vunpack.c.l.b16 %v1208
      %v1299 = vunpack.c.h.b16 %v1208
      %v1300 = vunpack.c.l.b16 %v1209
      %v1301 = vunpack.c.h.b16 %v1209
      %v1302 = vunpack.c.l.b16 %v1210
      %v1303 = vunpack.c.h.b16 %v1210
      %v1304 = vunpack.c.l.b16 %v1211
      %v1305 = vunpack.c.h.b16 %v1211
      %v1306 = vunpack.c.l.b16 %v1212
      %v1307 = vunpack.c.h.b16 %v1212
      %v1308 = vunpack.c.l.b16 %v1213
      %v1309 = vunpack.c.h.b16 %v1213
      %v1310 = vpack.c.b16 %v1296, %v1294
      %v1311 = vpack.c.b16 %v1297, %v1295
      %v1312 = vpack.c.b16 %v1300, %v1298
      %v1313 = vpack.c.b16 %v1301, %v1299
      %v1314 = vpack.c.b16 %v1304, %v1302
      %v1315 = vpack.c.b16 %v1305, %v1303
      %v1316 = vpack.c.b16 %v1308, %v1306
      %v1317 = vpack.c.b16 %v1309, %v1307
      %v1327 = vsel %vm275, %v1253, 0
      %v1330 = vsel %vm275, %v1261, 0
      %v1333 = vsel %vm275, %v1269, 0
      %v1336 = vsel %vm275, %v1277, 0
      %v1339 = vsel %vm275, %v1285, 0
      %1341 = vmatprep.subr.bf16.mxu0 0
      %1342 = vmatpush1.bf16.msra.mxu0 0
      %1343 = vmatprep.subr.bf16.mxu0 0
      %1344 = vmatpush1.bf16.msra.mxu0 0
      %1345 = vmatprep.subr.bf16.mxu0 0
      %1346 = vmatpush1.bf16.msra.mxu0 0
      %1347 = vmatprep.subr.bf16.mxu0 0
      %1348 = vmatpush1.bf16.msra.mxu0 0
      %1349 = vmatprep.subr.bf16.mxu0 %v1317
      %1350 = vmatpush1.bf16.msra.mxu0 %v1316
      %1351 = vmatprep.subr.bf16.mxu0 %v1315
      %1352 = vmatpush1.bf16.msra.mxu0 %v1314
      %1353 = vmatprep.subr.bf16.mxu0 %v1313
      %1354 = vmatpush1.bf16.msra.mxu0 %v1312
      %1355 = vmatprep.subr.bf16.mxu0 %v1311
      %1356 = vmatpush1.bf16.msra.mxu0 %v1310
      %1357 = vmatprep.subr.bf16.mxu0 0
      %1358 = vmatpush2.bf16.msra.mxu0 0
      %1359 = vmatprep.subr.bf16.mxu0 0
      %1360 = vmatpush2.bf16.msra.mxu0 0
      %1361 = vmatprep.subr.bf16.mxu0 0
      %1362 = vmatpush2.bf16.msra.mxu0 0
      %1363 = vmatprep.subr.bf16.mxu0 0
      %1364 = vmatpush2.bf16.msra.mxu0 0
      %1365 = vmatprep.subr.bf16.mxu0 0
      %1366 = vmatpush2.bf16.msra.mxu0 0
      %1367 = vmatprep.subr.bf16.mxu0 0
      %1368 = vmatpush2.bf16.msra.mxu0 0
      %1369 = vmatprep.subr.bf16.mxu0 0
      %1370 = vmatpush2.bf16.msra.mxu0 0
      %1371 = vmatprep.subr.bf16.mxu0 0
      %1372 = vmatpush2.bf16.msra.mxu0 0
      %1373 = vmatprep.mubr.bf16.mxu0 0
      %1374 = vmatmul.mubr.bf16.gmra.mxu0 %v1327
      %v1375 = vpop.f32.mrf.mxu0
      %v1376 = vadd.f32 0.0, %v1375
      %v1377 = vpop.f32.mrf.mxu0
      %v1378 = vadd.f32 0.0, %v1377
      %v1379 = vpop.f32.mrf.mxu0
      %v1380 = vadd.f32 0.0, %v1379
      %v1381 = vpop.f32.mrf.mxu0
      %v1382 = vadd.f32 0.0, %v1381
      %1383 = vmatprep.mubr.bf16.mxu0 0
      %1384 = vmatmul.mubr.bf16.gmra.mxu0 %v1330
      %v1385 = vpop.f32.mrf.mxu0
      %v1386 = vadd.f32 0.0, %v1385
      %v1387 = vpop.f32.mrf.mxu0
      %v1388 = vadd.f32 0.0, %v1387
      %v1389 = vpop.f32.mrf.mxu0
      %v1390 = vadd.f32 0.0, %v1389
      %v1391 = vpop.f32.mrf.mxu0
      %v1392 = vadd.f32 0.0, %v1391
      %1393 = vmatprep.mubr.bf16.mxu0 0
      %1394 = vmatmul.mubr.bf16.gmra.mxu0 %v1333
      %v1395 = vpop.f32.mrf.mxu0
      %v1396 = vadd.f32 0.0, %v1395
      %v1397 = vpop.f32.mrf.mxu0
      %v1398 = vadd.f32 0.0, %v1397
      %v1399 = vpop.f32.mrf.mxu0
      %v1400 = vadd.f32 0.0, %v1399
      %v1401 = vpop.f32.mrf.mxu0
      %v1402 = vadd.f32 0.0, %v1401
      %1403 = vmatprep.mubr.bf16.mxu0 0
      %1404 = vmatmul.mubr.bf16.gmra.mxu0 %v1336
      %v1405 = vpop.f32.mrf.mxu0
      %v1406 = vadd.f32 0.0, %v1405
      %v1407 = vpop.f32.mrf.mxu0
      %v1408 = vadd.f32 0.0, %v1407
      %v1409 = vpop.f32.mrf.mxu0
      %v1410 = vadd.f32 0.0, %v1409
      %v1411 = vpop.f32.mrf.mxu0
      %v1412 = vadd.f32 0.0, %v1411
      %1413 = vmatprep.mubr.bf16.mxu0 0
      %1414 = vmatmul.mubr.bf16.gmra.mxu0 %v1339
      %v1415 = vpop.f32.mrf.mxu0
      %v1416 = vadd.f32 0.0, %v1415
      %v1417 = vpop.f32.mrf.mxu0
      %v1418 = vadd.f32 0.0, %v1417
      %v1419 = vpop.f32.mrf.mxu0
      %v1420 = vadd.f32 0.0, %v1419
      %v1421 = vpop.f32.mrf.mxu0
      %v1422 = vadd.f32 0.0, %v1421
      %1423 = vdwg.mxu0
      %v1424 = vadd.f32 %v1174, %v1376
      %v1425 = vadd.f32 %v1175, %v1378
      %v1426 = vadd.f32 %v1176, %v1380
      %v1427 = vadd.f32 %v1177, %v1382
      %v1428 = vadd.f32 %v1178, %v1386
      %v1429 = vadd.f32 %v1179, %v1388
      %v1430 = vadd.f32 %v1180, %v1390
      %v1431 = vadd.f32 %v1181, %v1392
      %v1432 = vadd.f32 %v1182, %v1396
      %v1433 = vadd.f32 %v1183, %v1398
      %v1434 = vadd.f32 %v1184, %v1400
      %v1435 = vadd.f32 %v1185, %v1402
      %v1436 = vadd.f32 %v1186, %v1406
      %v1437 = vadd.f32 %v1187, %v1408
      %v1438 = vadd.f32 %v1188, %v1410
      %v1439 = vadd.f32 %v1189, %v1412
      %v1440 = vadd.f32 %v1190, %v1416
      %v1441 = vadd.f32 %v1191, %v1418
      %v1442 = vadd.f32 %v1192, %v1420
      %v1443 = vadd.f32 %v1193, %v1422
      %v1444 = vld [vmem:[%s165 + $0x4] sm:$0xf]
      %v1445 = vld [vmem:[%s165 + $0x8] sm:$0xf]
      %v1446 = vld [vmem:[%s165 + $0xc] sm:$0xf]
      %v1447 = vld [vmem:[%s165 + $0x10] sm:$0xf]
      %v1448 = vld [vmem:[%s165 + $0x14] sm:$0xf]
      %v1449 = vld [vmem:[%s165 + $0x18] sm:$0xf]
      %v1450 = vld [vmem:[%s165 + $0x1c] sm:$0xf]
      %v1451 = vld [vmem:[%s165 + $0x20] sm:$0xf]
      %v1452 = vld [vmem:[%s165 + $0x24] sm:$0xf]
      %v1453 = vld [vmem:[%s165 + $0x28] sm:$0xf]
      %v1454 = vld [vmem:[%s165 + $0x2c] sm:$0x1]
      %s1455 = scalar_lea.vmem %s1, 384
      %v1456 = vld [vmem:[%s1455] sm:$0xff]
      %v1457 = vld [vmem:[%s1455 + $0x8] sm:$0xff]
      %v1458 = vld [vmem:[%s1455 + $0x10] sm:$0xff]
      %v1459 = vld [vmem:[%s1455 + $0x18] sm:$0xff]
      %v1460 = vld [vmem:[%s1455 + $0x20] sm:$0xff]
      %v1461 = vld [vmem:[%s1455 + $0x28] sm:$0xff]
      %v1462 = vld [vmem:[%s1455 + $0x30] sm:$0xff]
      %v1463 = vld [vmem:[%s1455 + $0x38] sm:$0xff]
      %v1475 = vunpack.c.l.b16 %v1444
      %v1476 = vunpack.c.l.b16 %v1445
      %v1477 = vunpack.c.l.b16 %v1446
      %v1478 = vunpack.c.l.b16 %v1447
      %v1479 = vunpack.c.l.b16 %v1448
      %v1480 = vunpack.c.l.b16 %v1449
      %v1481 = vunpack.c.l.b16 %v1450
      %v1482 = vunpack.c.l.b16 %v1451
      %v1483 = vunpack.c.l.b16 %v1452
      %v1484 = vunpack.c.l.b16 %v1453
      %v1485 = vunpack.c.l.b16 %v1454
      %v1486 = vpack.c.b16 %v1476, %v1475
      %v1487 = vpack.c.b16 %v1478, %v1477
      %v1488 = vpack.c.b16 %v1480, %v1479
      %v1489 = vpack.c.b16 %v1482, %v1481
      %v1490 = vpack.c.b16 %v1484, %v1483
      %v1491 = vpack.c.b16 %v1485, %v1485
      %v1493 = vshrl.u32 %v1486, 16
      %v1495 = vshll.u32 %v1486, 16
      %v1497 = vrot.slane %v1495, 1
      %v1498 = vor.u32 %v1493, %v1497
      %v1500 = vshll.u32 %v1487, 16
      %v1502 = vrot.slane %v1500, 1
      %v1503 = vsel %vm585, %v1498, %v1502
      %v1504 = vshrl.u32 %v1487, 16
      %v1506 = vor.u32 %v1504, %v1502
      %v1508 = vshll.u32 %v1488, 16
      %v1510 = vrot.slane %v1508, 1
      %v1511 = vsel %vm585, %v1506, %v1510
      %v1512 = vshrl.u32 %v1488, 16
      %v1514 = vor.u32 %v1512, %v1510
      %v1516 = vshll.u32 %v1489, 16
      %v1518 = vrot.slane %v1516, 1
      %v1519 = vsel %vm585, %v1514, %v1518
      %v1520 = vshrl.u32 %v1489, 16
      %v1522 = vor.u32 %v1520, %v1518
      %v1524 = vshll.u32 %v1490, 16
      %v1526 = vrot.slane %v1524, 1
      %v1527 = vsel %vm585, %v1522, %v1526
      %v1528 = vshrl.u32 %v1490, 16
      %v1530 = vor.u32 %v1528, %v1526
      %v1532 = vshll.u32 %v1491, 16
      %v1534 = vrot.slane %v1532, 1
      %v1535 = vsel %vm585, %v1530, %v1534
      %v1544 = vunpack.c.l.b16 %v1456
      %v1545 = vunpack.c.h.b16 %v1456
      %v1546 = vunpack.c.l.b16 %v1457
      %v1547 = vunpack.c.h.b16 %v1457
      %v1548 = vunpack.c.l.b16 %v1458
      %v1549 = vunpack.c.h.b16 %v1458
      %v1550 = vunpack.c.l.b16 %v1459
      %v1551 = vunpack.c.h.b16 %v1459
      %v1552 = vunpack.c.l.b16 %v1460
      %v1553 = vunpack.c.h.b16 %v1460
      %v1554 = vunpack.c.l.b16 %v1461
      %v1555 = vunpack.c.h.b16 %v1461
      %v1556 = vunpack.c.l.b16 %v1462
      %v1557 = vunpack.c.h.b16 %v1462
      %v1558 = vunpack.c.l.b16 %v1463
      %v1559 = vunpack.c.h.b16 %v1463
      %v1560 = vpack.c.b16 %v1546, %v1544
      %v1561 = vpack.c.b16 %v1547, %v1545
      %v1562 = vpack.c.b16 %v1550, %v1548
      %v1563 = vpack.c.b16 %v1551, %v1549
      %v1564 = vpack.c.b16 %v1554, %v1552
      %v1565 = vpack.c.b16 %v1555, %v1553
      %v1566 = vpack.c.b16 %v1558, %v1556
      %v1567 = vpack.c.b16 %v1559, %v1557
      %v1577 = vsel %vm275, %v1503, 0
      %v1580 = vsel %vm275, %v1511, 0
      %v1583 = vsel %vm275, %v1519, 0
      %v1586 = vsel %vm275, %v1527, 0
      %v1589 = vsel %vm275, %v1535, 0
      %1591 = vmatprep.subr.bf16.mxu0 0
      %1592 = vmatpush1.bf16.msra.mxu0 0
      %1593 = vmatprep.subr.bf16.mxu0 0
      %1594 = vmatpush1.bf16.msra.mxu0 0
      %1595 = vmatprep.subr.bf16.mxu0 0
      %1596 = vmatpush1.bf16.msra.mxu0 0
      %1597 = vmatprep.subr.bf16.mxu0 0
      %1598 = vmatpush1.bf16.msra.mxu0 0
      %1599 = vmatprep.subr.bf16.mxu0 %v1567
      %1600 = vmatpush1.bf16.msra.mxu0 %v1566
      %1601 = vmatprep.subr.bf16.mxu0 %v1565
      %1602 = vmatpush1.bf16.msra.mxu0 %v1564
      %1603 = vmatprep.subr.bf16.mxu0 %v1563
      %1604 = vmatpush1.bf16.msra.mxu0 %v1562
      %1605 = vmatprep.subr.bf16.mxu0 %v1561
      %1606 = vmatpush1.bf16.msra.mxu0 %v1560
      %1607 = vmatprep.subr.bf16.mxu0 0
      %1608 = vmatpush2.bf16.msra.mxu0 0
      %1609 = vmatprep.subr.bf16.mxu0 0
      %1610 = vmatpush2.bf16.msra.mxu0 0
      %1611 = vmatprep.subr.bf16.mxu0 0
      %1612 = vmatpush2.bf16.msra.mxu0 0
      %1613 = vmatprep.subr.bf16.mxu0 0
      %1614 = vmatpush2.bf16.msra.mxu0 0
      %1615 = vmatprep.subr.bf16.mxu0 0
      %1616 = vmatpush2.bf16.msra.mxu0 0
      %1617 = vmatprep.subr.bf16.mxu0 0
      %1618 = vmatpush2.bf16.msra.mxu0 0
      %1619 = vmatprep.subr.bf16.mxu0 0
      %1620 = vmatpush2.bf16.msra.mxu0 0
      %1621 = vmatprep.subr.bf16.mxu0 0
      %1622 = vmatpush2.bf16.msra.mxu0 0
      %1623 = vmatprep.mubr.bf16.mxu0 0
      %1624 = vmatmul.mubr.bf16.gmra.mxu0 %v1577
      %v1625 = vpop.f32.mrf.mxu0
      %v1626 = vadd.f32 0.0, %v1625
      %v1627 = vpop.f32.mrf.mxu0
      %v1628 = vadd.f32 0.0, %v1627
      %v1629 = vpop.f32.mrf.mxu0
      %v1630 = vadd.f32 0.0, %v1629
      %v1631 = vpop.f32.mrf.mxu0
      %v1632 = vadd.f32 0.0, %v1631
      %1633 = vmatprep.mubr.bf16.mxu0 0
      %1634 = vmatmul.mubr.bf16.gmra.mxu0 %v1580
      %v1635 = vpop.f32.mrf.mxu0
      %v1636 = vadd.f32 0.0, %v1635
      %v1637 = vpop.f32.mrf.mxu0
      %v1638 = vadd.f32 0.0, %v1637
      %v1639 = vpop.f32.mrf.mxu0
      %v1640 = vadd.f32 0.0, %v1639
      %v1641 = vpop.f32.mrf.mxu0
      %v1642 = vadd.f32 0.0, %v1641
      %1643 = vmatprep.mubr.bf16.mxu0 0
      %1644 = vmatmul.mubr.bf16.gmra.mxu0 %v1583
      %v1645 = vpop.f32.mrf.mxu0
      %v1646 = vadd.f32 0.0, %v1645
      %v1647 = vpop.f32.mrf.mxu0
      %v1648 = vadd.f32 0.0, %v1647
      %v1649 = vpop.f32.mrf.mxu0
      %v1650 = vadd.f32 0.0, %v1649
      %v1651 = vpop.f32.mrf.mxu0
      %v1652 = vadd.f32 0.0, %v1651
      %1653 = vmatprep.mubr.bf16.mxu0 0
      %1654 = vmatmul.mubr.bf16.gmra.mxu0 %v1586
      %v1655 = vpop.f32.mrf.mxu0
      %v1656 = vadd.f32 0.0, %v1655
      %v1657 = vpop.f32.mrf.mxu0
      %v1658 = vadd.f32 0.0, %v1657
      %v1659 = vpop.f32.mrf.mxu0
      %v1660 = vadd.f32 0.0, %v1659
      %v1661 = vpop.f32.mrf.mxu0
      %v1662 = vadd.f32 0.0, %v1661
      %1663 = vmatprep.mubr.bf16.mxu0 0
      %1664 = vmatmul.mubr.bf16.gmra.mxu0 %v1589
      %v1665 = vpop.f32.mrf.mxu0
      %v1666 = vadd.f32 0.0, %v1665
      %v1667 = vpop.f32.mrf.mxu0
      %v1668 = vadd.f32 0.0, %v1667
      %v1669 = vpop.f32.mrf.mxu0
      %v1670 = vadd.f32 0.0, %v1669
      %v1671 = vpop.f32.mrf.mxu0
      %v1672 = vadd.f32 0.0, %v1671
      %1673 = vdwg.mxu0
      %v1674 = vadd.f32 %v1424, %v1626
      %v1675 = vadd.f32 %v1425, %v1628
      %v1676 = vadd.f32 %v1426, %v1630
      %v1677 = vadd.f32 %v1427, %v1632
      %v1678 = vadd.f32 %v1428, %v1636
      %v1679 = vadd.f32 %v1429, %v1638
      %v1680 = vadd.f32 %v1430, %v1640
      %v1681 = vadd.f32 %v1431, %v1642
      %v1682 = vadd.f32 %v1432, %v1646
      %v1683 = vadd.f32 %v1433, %v1648
      %v1684 = vadd.f32 %v1434, %v1650
      %v1685 = vadd.f32 %v1435, %v1652
      %v1686 = vadd.f32 %v1436, %v1656
      %v1687 = vadd.f32 %v1437, %v1658
      %v1688 = vadd.f32 %v1438, %v1660
      %v1689 = vadd.f32 %v1439, %v1662
      %v1690 = vadd.f32 %v1440, %v1666
      %v1691 = vadd.f32 %v1441, %v1668
      %v1692 = vadd.f32 %v1442, %v1670
      %v1693 = vadd.f32 %v1443, %v1672
      %v1694 = vld [vmem:[%s190 + $0x4] sm:$0xf]
      %v1695 = vld [vmem:[%s190 + $0x8] sm:$0xf]
      %v1696 = vld [vmem:[%s190 + $0xc] sm:$0xf]
      %v1697 = vld [vmem:[%s190 + $0x10] sm:$0xf]
      %v1698 = vld [vmem:[%s190 + $0x14] sm:$0xf]
      %v1699 = vld [vmem:[%s190 + $0x18] sm:$0xf]
      %v1700 = vld [vmem:[%s190 + $0x1c] sm:$0xf]
      %v1701 = vld [vmem:[%s190 + $0x20] sm:$0xf]
      %v1702 = vld [vmem:[%s190 + $0x24] sm:$0xf]
      %v1703 = vld [vmem:[%s190 + $0x28] sm:$0xf]
      %v1704 = vld [vmem:[%s190 + $0x2c] sm:$0x1]
      %s1705 = scalar_lea.vmem %s1, 448
      %v1706 = vld [vmem:[%s1705] sm:$0xff]
      %v1707 = vld [vmem:[%s1705 + $0x8] sm:$0xff]
      %v1708 = vld [vmem:[%s1705 + $0x10] sm:$0xff]
      %v1709 = vld [vmem:[%s1705 + $0x18] sm:$0xff]
      %v1710 = vld [vmem:[%s1705 + $0x20] sm:$0xff]
      %v1711 = vld [vmem:[%s1705 + $0x28] sm:$0xff]
      %v1712 = vld [vmem:[%s1705 + $0x30] sm:$0xff]
      %v1713 = vld [vmem:[%s1705 + $0x38] sm:$0xff]
      %v1725 = vunpack.c.l.b16 %v1694
      %v1726 = vunpack.c.l.b16 %v1695
      %v1727 = vunpack.c.l.b16 %v1696
      %v1728 = vunpack.c.l.b16 %v1697
      %v1729 = vunpack.c.l.b16 %v1698
      %v1730 = vunpack.c.l.b16 %v1699
      %v1731 = vunpack.c.l.b16 %v1700
      %v1732 = vunpack.c.l.b16 %v1701
      %v1733 = vunpack.c.l.b16 %v1702
      %v1734 = vunpack.c.l.b16 %v1703
      %v1735 = vunpack.c.l.b16 %v1704
      %v1736 = vpack.c.b16 %v1726, %v1725
      %v1737 = vpack.c.b16 %v1728, %v1727
      %v1738 = vpack.c.b16 %v1730, %v1729
      %v1739 = vpack.c.b16 %v1732, %v1731
      %v1740 = vpack.c.b16 %v1734, %v1733
      %v1741 = vpack.c.b16 %v1735, %v1735
      %v1743 = vshrl.u32 %v1736, 16
      %v1745 = vshll.u32 %v1736, 16
      %v1747 = vrot.slane %v1745, 1
      %v1748 = vor.u32 %v1743, %v1747
      %v1750 = vshll.u32 %v1737, 16
      %v1752 = vrot.slane %v1750, 1
      %v1753 = vsel %vm585, %v1748, %v1752
      %v1754 = vshrl.u32 %v1737, 16
      %v1756 = vor.u32 %v1754, %v1752
      %v1758 = vshll.u32 %v1738, 16
      %v1760 = vrot.slane %v1758, 1
      %v1761 = vsel %vm585, %v1756, %v1760
      %v1762 = vshrl.u32 %v1738, 16
      %v1764 = vor.u32 %v1762, %v1760
      %v1766 = vshll.u32 %v1739, 16
      %v1768 = vrot.slane %v1766, 1
      %v1769 = vsel %vm585, %v1764, %v1768
      %v1770 = vshrl.u32 %v1739, 16
      %v1772 = vor.u32 %v1770, %v1768
      %v1774 = vshll.u32 %v1740, 16
      %v1776 = vrot.slane %v1774, 1
      %v1777 = vsel %vm585, %v1772, %v1776
      %v1778 = vshrl.u32 %v1740, 16
      %v1780 = vor.u32 %v1778, %v1776
      %v1782 = vshll.u32 %v1741, 16
      %v1784 = vrot.slane %v1782, 1
      %v1785 = vsel %vm585, %v1780, %v1784
      %v1794 = vunpack.c.l.b16 %v1706
      %v1795 = vunpack.c.h.b16 %v1706
      %v1796 = vunpack.c.l.b16 %v1707
      %v1797 = vunpack.c.h.b16 %v1707
      %v1798 = vunpack.c.l.b16 %v1708
      %v1799 = vunpack.c.h.b16 %v1708
      %v1800 = vunpack.c.l.b16 %v1709
      %v1801 = vunpack.c.h.b16 %v1709
      %v1802 = vunpack.c.l.b16 %v1710
      %v1803 = vunpack.c.h.b16 %v1710
      %v1804 = vunpack.c.l.b16 %v1711
      %v1805 = vunpack.c.h.b16 %v1711
      %v1806 = vunpack.c.l.b16 %v1712
      %v1807 = vunpack.c.h.b16 %v1712
      %v1808 = vunpack.c.l.b16 %v1713
      %v1809 = vunpack.c.h.b16 %v1713
      %v1810 = vpack.c.b16 %v1796, %v1794
      %v1811 = vpack.c.b16 %v1797, %v1795
      %v1812 = vpack.c.b16 %v1800, %v1798
      %v1813 = vpack.c.b16 %v1801, %v1799
      %v1814 = vpack.c.b16 %v1804, %v1802
      %v1815 = vpack.c.b16 %v1805, %v1803
      %v1816 = vpack.c.b16 %v1808, %v1806
      %v1817 = vpack.c.b16 %v1809, %v1807
      %v1827 = vsel %vm275, %v1753, 0
      %v1830 = vsel %vm275, %v1761, 0
      %v1833 = vsel %vm275, %v1769, 0
      %v1836 = vsel %vm275, %v1777, 0
      %v1839 = vsel %vm275, %v1785, 0
      %1841 = vmatprep.subr.bf16.mxu0 0
      %1842 = vmatpush1.bf16.msra.mxu0 0
      %1843 = vmatprep.subr.bf16.mxu0 0
      %1844 = vmatpush1.bf16.msra.mxu0 0
      %1845 = vmatprep.subr.bf16.mxu0 0
      %1846 = vmatpush1.bf16.msra.mxu0 0
      %1847 = vmatprep.subr.bf16.mxu0 0
      %1848 = vmatpush1.bf16.msra.mxu0 0
      %1849 = vmatprep.subr.bf16.mxu0 %v1817
      %1850 = vmatpush1.bf16.msra.mxu0 %v1816
      %1851 = vmatprep.subr.bf16.mxu0 %v1815
      %1852 = vmatpush1.bf16.msra.mxu0 %v1814
      %1853 = vmatprep.subr.bf16.mxu0 %v1813
      %1854 = vmatpush1.bf16.msra.mxu0 %v1812
      %1855 = vmatprep.subr.bf16.mxu0 %v1811
      %1856 = vmatpush1.bf16.msra.mxu0 %v1810
      %1857 = vmatprep.subr.bf16.mxu0 0
      %1858 = vmatpush2.bf16.msra.mxu0 0
      %1859 = vmatprep.subr.bf16.mxu0 0
      %1860 = vmatpush2.bf16.msra.mxu0 0
      %1861 = vmatprep.subr.bf16.mxu0 0
      %1862 = vmatpush2.bf16.msra.mxu0 0
      %1863 = vmatprep.subr.bf16.mxu0 0
      %1864 = vmatpush2.bf16.msra.mxu0 0
      %1865 = vmatprep.subr.bf16.mxu0 0
      %1866 = vmatpush2.bf16.msra.mxu0 0
      %1867 = vmatprep.subr.bf16.mxu0 0
      %1868 = vmatpush2.bf16.msra.mxu0 0
      %1869 = vmatprep.subr.bf16.mxu0 0
      %1870 = vmatpush2.bf16.msra.mxu0 0
      %1871 = vmatprep.subr.bf16.mxu0 0
      %1872 = vmatpush2.bf16.msra.mxu0 0
      %1873 = vmatprep.mubr.bf16.mxu0 0
      %1874 = vmatmul.mubr.bf16.gmra.mxu0 %v1827
      %v1875 = vpop.f32.mrf.mxu0
      %v1876 = vadd.f32 0.0, %v1875
      %v1877 = vpop.f32.mrf.mxu0
      %v1878 = vadd.f32 0.0, %v1877
      %v1879 = vpop.f32.mrf.mxu0
      %v1880 = vadd.f32 0.0, %v1879
      %v1881 = vpop.f32.mrf.mxu0
      %v1882 = vadd.f32 0.0, %v1881
      %1883 = vmatprep.mubr.bf16.mxu0 0
      %1884 = vmatmul.mubr.bf16.gmra.mxu0 %v1830
      %v1885 = vpop.f32.mrf.mxu0
      %v1886 = vadd.f32 0.0, %v1885
      %v1887 = vpop.f32.mrf.mxu0
      %v1888 = vadd.f32 0.0, %v1887
      %v1889 = vpop.f32.mrf.mxu0
      %v1890 = vadd.f32 0.0, %v1889
      %v1891 = vpop.f32.mrf.mxu0
      %v1892 = vadd.f32 0.0, %v1891
      %1893 = vmatprep.mubr.bf16.mxu0 0
      %1894 = vmatmul.mubr.bf16.gmra.mxu0 %v1833
      %v1895 = vpop.f32.mrf.mxu0
      %v1896 = vadd.f32 0.0, %v1895
      %v1897 = vpop.f32.mrf.mxu0
      %v1898 = vadd.f32 0.0, %v1897
      %v1899 = vpop.f32.mrf.mxu0
      %v1900 = vadd.f32 0.0, %v1899
      %v1901 = vpop.f32.mrf.mxu0
      %v1902 = vadd.f32 0.0, %v1901
      %1903 = vmatprep.mubr.bf16.mxu0 0
      %1904 = vmatmul.mubr.bf16.gmra.mxu0 %v1836
      %v1905 = vpop.f32.mrf.mxu0
      %v1906 = vadd.f32 0.0, %v1905
      %v1907 = vpop.f32.mrf.mxu0
      %v1908 = vadd.f32 0.0, %v1907
      %v1909 = vpop.f32.mrf.mxu0
      %v1910 = vadd.f32 0.0, %v1909
      %v1911 = vpop.f32.mrf.mxu0
      %v1912 = vadd.f32 0.0, %v1911
      %1913 = vmatprep.mubr.bf16.mxu0 0
      %1914 = vmatmul.mubr.bf16.gmra.mxu0 %v1839
      %v1915 = vpop.f32.mrf.mxu0
      %v1916 = vadd.f32 0.0, %v1915
      %v1917 = vpop.f32.mrf.mxu0
      %v1918 = vadd.f32 0.0, %v1917
      %v1919 = vpop.f32.mrf.mxu0
      %v1920 = vadd.f32 0.0, %v1919
      %v1921 = vpop.f32.mrf.mxu0
      %v1922 = vadd.f32 0.0, %v1921
      %1923 = vdwg.mxu0
      %v1924 = vadd.f32 %v1674, %v1876
      %v1925 = vadd.f32 %v1675, %v1878
      %v1926 = vadd.f32 %v1676, %v1880
      %v1927 = vadd.f32 %v1677, %v1882
      %v1928 = vadd.f32 %v1678, %v1886
      %v1929 = vadd.f32 %v1679, %v1888
      %v1930 = vadd.f32 %v1680, %v1890
      %v1931 = vadd.f32 %v1681, %v1892
      %v1932 = vadd.f32 %v1682, %v1896
      %v1933 = vadd.f32 %v1683, %v1898
      %v1934 = vadd.f32 %v1684, %v1900
      %v1935 = vadd.f32 %v1685, %v1902
      %v1936 = vadd.f32 %v1686, %v1906
      %v1937 = vadd.f32 %v1687, %v1908
      %v1938 = vadd.f32 %v1688, %v1910
      %v1939 = vadd.f32 %v1689, %v1912
      %v1940 = vadd.f32 %v1690, %v1916
      %v1941 = vadd.f32 %v1691, %v1918
      %v1942 = vadd.f32 %v1692, %v1920
      %v1943 = vadd.f32 %v1693, %v1922
      %v1944 = vld [vmem:[%s165 + $0x4] sm:$0xe]
      %s1945 = scalar_lea.vmem %s1, 512
      %v1946 = vld [vmem:[%s1945] sm:$0xff]
      %v1947 = vld [vmem:[%s1945 + $0x8] sm:$0xff]
      %v1948 = vld [vmem:[%s1945 + $0x10] sm:$0xff]
      %v1949 = vld [vmem:[%s1945 + $0x18] sm:$0xff]
      %v1950 = vld [vmem:[%s1945 + $0x20] sm:$0xff]
      %v1951 = vld [vmem:[%s1945 + $0x28] sm:$0xff]
      %v1952 = vld [vmem:[%s1945 + $0x30] sm:$0xff]
      %v1953 = vld [vmem:[%s1945 + $0x38] sm:$0xff]
      %v1955 = vunpack.c.l.b16 %v1944
      %v1956 = vpack.c.b16 %v1476, %v1955
      %vm1957 = vcmask 1046528
      %v1958 = vrot.slane %v1956, 1
      %v1959 = vrot.slane %v1487, 1
      %v1960 = vsel %vm1957, %v1958, %v1959
      %v1961 = vrot.slane %v1488, 1
      %v1962 = vsel %vm1957, %v1959, %v1961
      %v1963 = vrot.slane %v1489, 1
      %v1964 = vsel %vm1957, %v1961, %v1963
      %v1965 = vrot.slane %v1490, 1
      %v1966 = vsel %vm1957, %v1963, %v1965
      %v1967 = vrot.slane %v1491, 1
      %v1968 = vsel %vm1957, %v1965, %v1967
      %v1977 = vunpack.c.l.b16 %v1946
      %v1978 = vunpack.c.h.b16 %v1946
      %v1979 = vunpack.c.l.b16 %v1947
      %v1980 = vunpack.c.h.b16 %v1947
      %v1981 = vunpack.c.l.b16 %v1948
      %v1982 = vunpack.c.h.b16 %v1948
      %v1983 = vunpack.c.l.b16 %v1949
      %v1984 = vunpack.c.h.b16 %v1949
      %v1985 = vunpack.c.l.b16 %v1950
      %v1986 = vunpack.c.h.b16 %v1950
      %v1987 = vunpack.c.l.b16 %v1951
      %v1988 = vunpack.c.h.b16 %v1951
      %v1989 = vunpack.c.l.b16 %v1952
      %v1990 = vunpack.c.h.b16 %v1952
      %v1991 = vunpack.c.l.b16 %v1953
      %v1992 = vunpack.c.h.b16 %v1953
      %v1993 = vpack.c.b16 %v1979, %v1977
      %v1994 = vpack.c.b16 %v1980, %v1978
      %v1995 = vpack.c.b16 %v1983, %v1981
      %v1996 = vpack.c.b16 %v1984, %v1982
      %v1997 = vpack.c.b16 %v1987, %v1985
      %v1998 = vpack.c.b16 %v1988, %v1986
      %v1999 = vpack.c.b16 %v1991, %v1989
      %v2000 = vpack.c.b16 %v1992, %v1990
      %v2010 = vsel %vm275, %v1960, 0
      %v2013 = vsel %vm275, %v1962, 0
      %v2016 = vsel %vm275, %v1964, 0
      %v2019 = vsel %vm275, %v1966, 0
      %v2022 = vsel %vm275, %v1968, 0
      %2024 = vmatprep.subr.bf16.mxu0 0
      %2025 = vmatpush1.bf16.msra.mxu0 0
      %2026 = vmatprep.subr.bf16.mxu0 0
      %2027 = vmatpush1.bf16.msra.mxu0 0
      %2028 = vmatprep.subr.bf16.mxu0 0
      %2029 = vmatpush1.bf16.msra.mxu0 0
      %2030 = vmatprep.subr.bf16.mxu0 0
      %2031 = vmatpush1.bf16.msra.mxu0 0
      %2032 = vmatprep.subr.bf16.mxu0 %v2000
      %2033 = vmatpush1.bf16.msra.mxu0 %v1999
      %2034 = vmatprep.subr.bf16.mxu0 %v1998
      %2035 = vmatpush1.bf16.msra.mxu0 %v1997
      %2036 = vmatprep.subr.bf16.mxu0 %v1996
      %2037 = vmatpush1.bf16.msra.mxu0 %v1995
      %2038 = vmatprep.subr.bf16.mxu0 %v1994
      %2039 = vmatpush1.bf16.msra.mxu0 %v1993
      %2040 = vmatprep.subr.bf16.mxu0 0
      %2041 = vmatpush2.bf16.msra.mxu0 0
      %2042 = vmatprep.subr.bf16.mxu0 0
      %2043 = vmatpush2.bf16.msra.mxu0 0
      %2044 = vmatprep.subr.bf16.mxu0 0
      %2045 = vmatpush2.bf16.msra.mxu0 0
      %2046 = vmatprep.subr.bf16.mxu0 0
      %2047 = vmatpush2.bf16.msra.mxu0 0
      %2048 = vmatprep.subr.bf16.mxu0 0
      %2049 = vmatpush2.bf16.msra.mxu0 0
      %2050 = vmatprep.subr.bf16.mxu0 0
      %2051 = vmatpush2.bf16.msra.mxu0 0
      %2052 = vmatprep.subr.bf16.mxu0 0
      %2053 = vmatpush2.bf16.msra.mxu0 0
      %2054 = vmatprep.subr.bf16.mxu0 0
      %2055 = vmatpush2.bf16.msra.mxu0 0
      %2056 = vmatprep.mubr.bf16.mxu0 0
      %2057 = vmatmul.mubr.bf16.gmra.mxu0 %v2010
      %v2058 = vpop.f32.mrf.mxu0
      %v2059 = vadd.f32 0.0, %v2058
      %v2060 = vpop.f32.mrf.mxu0
      %v2061 = vadd.f32 0.0, %v2060
      %v2062 = vpop.f32.mrf.mxu0
      %v2063 = vadd.f32 0.0, %v2062
      %v2064 = vpop.f32.mrf.mxu0
      %v2065 = vadd.f32 0.0, %v2064
      %2066 = vmatprep.mubr.bf16.mxu0 0
      %2067 = vmatmul.mubr.bf16.gmra.mxu0 %v2013
      %v2068 = vpop.f32.mrf.mxu0
      %v2069 = vadd.f32 0.0, %v2068
      %v2070 = vpop.f32.mrf.mxu0
      %v2071 = vadd.f32 0.0, %v2070
      %v2072 = vpop.f32.mrf.mxu0
      %v2073 = vadd.f32 0.0, %v2072
      %v2074 = vpop.f32.mrf.mxu0
      %v2075 = vadd.f32 0.0, %v2074
      %2076 = vmatprep.mubr.bf16.mxu0 0
      %2077 = vmatmul.mubr.bf16.gmra.mxu0 %v2016
      %v2078 = vpop.f32.mrf.mxu0
      %v2079 = vadd.f32 0.0, %v2078
      %v2080 = vpop.f32.mrf.mxu0
      %v2081 = vadd.f32 0.0, %v2080
      %v2082 = vpop.f32.mrf.mxu0
      %v2083 = vadd.f32 0.0, %v2082
      %v2084 = vpop.f32.mrf.mxu0
      %v2085 = vadd.f32 0.0, %v2084
      %2086 = vmatprep.mubr.bf16.mxu0 0
      %2087 = vmatmul.mubr.bf16.gmra.mxu0 %v2019
      %v2088 = vpop.f32.mrf.mxu0
      %v2089 = vadd.f32 0.0, %v2088
      %v2090 = vpop.f32.mrf.mxu0
      %v2091 = vadd.f32 0.0, %v2090
      %v2092 = vpop.f32.mrf.mxu0
      %v2093 = vadd.f32 0.0, %v2092
      %v2094 = vpop.f32.mrf.mxu0
      %v2095 = vadd.f32 0.0, %v2094
      %2096 = vmatprep.mubr.bf16.mxu0 0
      %2097 = vmatmul.mubr.bf16.gmra.mxu0 %v2022
      %v2098 = vpop.f32.mrf.mxu0
      %v2099 = vadd.f32 0.0, %v2098
      %v2100 = vpop.f32.mrf.mxu0
      %v2101 = vadd.f32 0.0, %v2100
      %v2102 = vpop.f32.mrf.mxu0
      %v2103 = vadd.f32 0.0, %v2102
      %v2104 = vpop.f32.mrf.mxu0
      %v2105 = vadd.f32 0.0, %v2104
      %2106 = vdwg.mxu0
      %v2107 = vadd.f32 %v1924, %v2059
      %v2108 = vadd.f32 %v1925, %v2061
      %v2109 = vadd.f32 %v1926, %v2063
      %v2110 = vadd.f32 %v1927, %v2065
      %v2111 = vadd.f32 %v1928, %v2069
      %v2112 = vadd.f32 %v1929, %v2071
      %v2113 = vadd.f32 %v1930, %v2073
      %v2114 = vadd.f32 %v1931, %v2075
      %v2115 = vadd.f32 %v1932, %v2079
      %v2116 = vadd.f32 %v1933, %v2081
      %v2117 = vadd.f32 %v1934, %v2083
      %v2118 = vadd.f32 %v1935, %v2085
      %v2119 = vadd.f32 %v1936, %v2089
      %v2120 = vadd.f32 %v1937, %v2091
      %v2121 = vadd.f32 %v1938, %v2093
      %v2122 = vadd.f32 %v1939, %v2095
      %v2123 = vadd.f32 %v1940, %v2099
      %v2124 = vadd.f32 %v1941, %v2101
      %v2125 = vadd.f32 %v1942, %v2103
      %v2126 = vadd.f32 %v1943, %v2105
      %v2127 = vld [vmem:[%s2] sm:$0x3]
      %v2129 = vlaneseq
      %v2130 = vshrl.u32 %v2129, 7
      %v2131 = vsub.s32 0, %v2130
      %v2132 = vrot.slane %v2127, %v2131
      %v2133 = vlaneseq
      %v2134 = vshrl.u32 %v2133, 7
      %v2135 = vsub.s32 1, %v2134
      %v2136 = vrot.slane %v2127, %v2135
      %v2139 = vadd.f32 %v2107, %v2132
      %v2140 = vadd.f32 %v2108, %v2136
      %v2141 = vadd.f32 %v2109, %v2132
      %v2142 = vadd.f32 %v2110, %v2136
      %v2143 = vadd.f32 %v2111, %v2132
      %v2144 = vadd.f32 %v2112, %v2136
      %v2145 = vadd.f32 %v2113, %v2132
      %v2146 = vadd.f32 %v2114, %v2136
      %v2147 = vadd.f32 %v2115, %v2132
      %v2148 = vadd.f32 %v2116, %v2136
      %v2149 = vadd.f32 %v2117, %v2132
      %v2150 = vadd.f32 %v2118, %v2136
      %v2151 = vadd.f32 %v2119, %v2132
      %v2152 = vadd.f32 %v2120, %v2136
      %v2153 = vadd.f32 %v2121, %v2132
      %v2154 = vadd.f32 %v2122, %v2136
      %v2155 = vadd.f32 %v2123, %v2132
      %v2156 = vadd.f32 %v2124, %v2136
      %v2157 = vadd.f32 %v2125, %v2132
      %v2158 = vadd.f32 %v2126, %v2136
      %v2159 = vmax.f32 %v2139, 0.0
      %v2160 = vmax.f32 %v2140, 0.0
      %v2161 = vmax.f32 %v2141, 0.0
      %v2162 = vmax.f32 %v2142, 0.0
      %v2163 = vmax.f32 %v2143, 0.0
      %v2164 = vmax.f32 %v2144, 0.0
      %v2165 = vmax.f32 %v2145, 0.0
      %v2166 = vmax.f32 %v2146, 0.0
      %v2167 = vmax.f32 %v2147, 0.0
      %v2168 = vmax.f32 %v2148, 0.0
      %v2169 = vmax.f32 %v2149, 0.0
      %v2170 = vmax.f32 %v2150, 0.0
      %v2171 = vmax.f32 %v2151, 0.0
      %v2172 = vmax.f32 %v2152, 0.0
      %v2173 = vmax.f32 %v2153, 0.0
      %v2174 = vmax.f32 %v2154, 0.0
      %v2175 = vmax.f32 %v2155, 0.0
      %v2176 = vmax.f32 %v2156, 0.0
      %v2177 = vmax.f32 %v2157, 0.0
      %v2178 = vmax.f32 %v2158, 0.0
      %v2179 = vpack.c.bf16 %v2161, %v2159
      %v2180 = vpack.c.bf16 %v2162, %v2160
      %v2181 = vpack.c.bf16 %v2165, %v2163
      %v2182 = vpack.c.bf16 %v2166, %v2164
      %v2183 = vpack.c.bf16 %v2169, %v2167
      %v2184 = vpack.c.bf16 %v2170, %v2168
      %v2185 = vpack.c.bf16 %v2173, %v2171
      %v2186 = vpack.c.bf16 %v2174, %v2172
      %v2187 = vpack.c.bf16 %v2177, %v2175
      %v2188 = vpack.c.bf16 %v2178, %v2176
      %v2199 = vunpack.c.l.b16 %v2179
      %v2200 = vunpack.c.l.b16 %v2180
      %v2201 = vunpack.c.h.b16 %v2179
      %v2202 = vunpack.c.h.b16 %v2180
      %v2203 = vunpack.c.l.b16 %v2181
      %v2204 = vunpack.c.l.b16 %v2182
      %v2205 = vunpack.c.h.b16 %v2181
      %v2206 = vunpack.c.h.b16 %v2182
      %v2207 = vunpack.c.l.b16 %v2183
      %v2208 = vunpack.c.l.b16 %v2184
      %v2209 = vunpack.c.h.b16 %v2183
      %v2210 = vunpack.c.h.b16 %v2184
      %v2211 = vunpack.c.l.b16 %v2185
      %v2212 = vunpack.c.l.b16 %v2186
      %v2213 = vunpack.c.h.b16 %v2185
      %v2214 = vunpack.c.h.b16 %v2186
      %v2215 = vunpack.c.l.b16 %v2187
      %v2216 = vunpack.c.l.b16 %v2188
      %v2217 = vunpack.c.h.b16 %v2187
      %v2218 = vunpack.c.h.b16 %v2188
      %v2219 = vpack.c.b16 %v2200, %v2199
      %v2220 = vpack.c.b16 %v2202, %v2201
      %v2221 = vpack.c.b16 %v2204, %v2203
      %v2222 = vpack.c.b16 %v2206, %v2205
      %v2223 = vpack.c.b16 %v2208, %v2207
      %v2224 = vpack.c.b16 %v2210, %v2209
      %v2225 = vpack.c.b16 %v2212, %v2211
      %v2226 = vpack.c.b16 %v2214, %v2213
      %v2227 = vpack.c.b16 %v2216, %v2215
      %v2228 = vpack.c.b16 %v2218, %v2217
      %2239 = vst [vmem:[%s170] sm:$0xff] %v2219
      %2240 = vst [vmem:[%s170 + $0x8] sm:$0xff] %v2220
      %2241 = vst [vmem:[%s170 + $0x10] sm:$0xff] %v2221
      %2242 = vst [vmem:[%s170 + $0x18] sm:$0xff] %v2222
      %2243 = vst [vmem:[%s170 + $0x20] sm:$0xff] %v2223
      %2244 = vst [vmem:[%s170 + $0x28] sm:$0xff] %v2224
      %2245 = vst [vmem:[%s170 + $0x30] sm:$0xff] %v2225
      %2246 = vst [vmem:[%s170 + $0x38] sm:$0xff] %v2226
      %2247 = vst [vmem:[%s170 + $0x40] sm:$0xff] %v2227
      %2248 = vst [vmem:[%s170 + $0x48] sm:$0xff] %v2228
      %p2249 = scmp.lt.s32.totalorder %s14, 1
      %s2250 = scalar_select %p2249, %s14, 1
      %s2251 = smul.addr %s2250, 20
      %s2252 = smul.addr %s2251, 4
      %s2253 = scalar_lea.vmem %s3, %s2252
      // Predicated region
      $region33: #{simple_classifier_forward.2} parent=31 // pred_check
        %p2254 = pneg %p100
      $region34: #{simple_classifier_forward.2} parent=31 // pred_check_branch
        %2256 = sbr.rel (%p2254) target = $region36
      $region35: #{simple_classifier_forward.2} parent=31 // pred_region
        _
      $region36: #{simple_classifier_forward.2} parent=31 // pred_fallthru
        _
    $region32: #{simple_classifier_forward.2} parent=5 // pred_fallthru
      _
    %p2257 = scmp.le.s32.totalorder 2, %s9
    // Predicated region
    $region37: #{simple_classifier_forward.2} parent=5 // pred_check
      %p2258 = pneg %p2257
    $region38: #{simple_classifier_forward.2} parent=5 // pred_check_branch
      %2260 = sbr.rel (%p2258) target = $region40
    $region39: #{simple_classifier_forward.2} parent=5 // pred_region
      %s2261 = ssub.s32 %s9, 2
      // Predicated region
      $region41: #{simple_classifier_forward.2} parent=39 // pred_check
        %p2262 = pneg %p106
      $region42: #{simple_classifier_forward.2} parent=39 // pred_check_branch
        %2264 = sbr.rel (%p2262) target = $region44
      $region43: #{simple_classifier_forward.2} parent=39 // pred_region
        %p2265 = scmp.lt.s32.totalorder %s15, 1
        %s2266 = scalar_select %p2265, %s15, 1
        %s2267 = smul.addr %s2266, 20
        %s2268 = smul.addr %s2267, 4
        %s2269 = scalar_lea.vmem %s3, %s2268
      $region44: #{simple_classifier_forward.2} parent=39 // pred_fallthru
        _
    $region40: #{simple_classifier_forward.2} parent=5 // pred_fallthru
      _
  $region6: #{simple_classifier_forward.2} parent=0 // loop_footer
    %s13 = sadd.s32 1, %s9
  $region7: #{simple_classifier_forward.2} parent=0 // loop_footer_branch
    %8 = sbr.rel target = $region3
  $region8: #{simple_classifier_forward.2} parent=0 // loop_exit
    _

// kernel: simple_classifier_forward.3
$region0: #{simple_classifier_forward.3}
  #allocation0 [shape = 'u32[]', space=smem, size = 0x4, offset = 0x4, fixed_abs, tag = 'smem constant byte address 0x4 - core index']
  #allocation1 [shape = 'u32[144,128]{1,0:T(1,128)}', space=vmem, size = 0x12000, scoped, tag = 'internal scratch']
  %s0 = inlined_call_operand.vmem [shape: bf16[2,4,48,256], index: 0, kind: input, shape index: {}]
  %s1 = inlined_call_operand.vmem [shape: bf16[9,256,128], index: 1, kind: input, shape index: {}]
  %s2 = inlined_call_operand.vmem [shape: f32[1,128], index: 2, kind: input, shape index: {}]
  %s3 = inlined_call_operand.vmem [shape: f32[32,1], index: 3, kind: input, shape index: {}]
  %s4 = inlined_call_operand.vmem [shape: f32[128,128], index: 4, kind: input, shape index: {}]
  %s5 = inlined_call_operand.vmem [shape: f32[1,128], index: 5, kind: input, shape index: {}]
  %s6 = inlined_call_operand.hbm [shape: f32[2,1,128], index: 6, kind: output, shape index: {}]
  %s7 = sld [smem:[#allocation0]]
  $region57: #{simple_classifier_forward.3} parent=0
    _
  %s9 = ssub.s32 1, %s7
  %s10 = scalar_select 0, %s9, %s7
  $region1: #{simple_classifier_forward.3} parent=0
    #allocation2 [shape = 'u8[1024]{0}', space=vmem, size = 0x400, scoped, tag = 'output window, operand 0']
    #allocation3 [shape = 's32[2]{0}', space=sflag, size = 0x8, scoped, tag = 'scoped memory for simple_classifier_forward.3']
    %11 = vsyncpa [#allocation3], 0
    %s12 = scalar_lea.sflag [#allocation3], 1
    %13 = vsyncpa %s12, 0
    loop: start=0, step=1, limit=4
    $region2: #{simple_classifier_forward.3} parent=1 // loop_pre_header
      _
    $region3: #{simple_classifier_forward.3} parent=1 // loop_header
      %s15 = sphi 0, %s19
      %p16 = scmp.ge.s32.totalorder %s15, 4
      %s25 = sphi 0, %s27
      %s28 = sphi 0, %s25
      %s29 = sphi 0, %s28
      %s45 = sphi 0, %s29
      %s49 = sphi 0, %s49
      %s51 = sphi 0, %s49
      %s52 = sphi 0, %s51
      %s66 = sphi 0, %s52
      %s70 = sphi 0, %s70
      %s72 = sphi 0, %s70
      %s73 = sphi 0, %s72
      %s87 = sphi 0, %s73
      %s91 = sphi 0, %s91
      %s93 = sphi 0, %s91
      %s94 = sphi 0, %s93
      %s108 = sphi 0, %s94
      %s112 = sphi 0, %s112
      %s114 = sphi 0, %s112
      %s115 = sphi 0, %s114
      %s129 = sphi 0, %s115
      %s133 = sphi 0, %s133
      %s135 = sphi 0, %s133
      %s136 = sphi 0, %s135
      %s150 = sphi 0, %s136
      %s156 = sphi 0, %s158
      %s159 = sphi 0, %s156
      %s160 = sphi 0, %s159
      %s176 = sphi 0, %s160
    $region4: #{simple_classifier_forward.3} parent=1 // loop_header_branch
      %18 = sbr.rel (%p16) target = $region8
    $region5: #{simple_classifier_forward.3} parent=1 // loop_body
      %s20 = ssub.s32 %s15, 1
      %s21 = ssub.s32 %s15, 2
      %s22 = sadd.s32 %s15, 1
      %s23 = ssub.s32 %s15, %s22
      %p24 = scmp.eq.s32.totalorder %s23, 0
      %s26 = sadd.s32 %s25, 1
      %s27 = scalar_select %p24, %s25, %s26
      %p30 = pneg %p24
      %p31 = scmp.eq.s32.totalorder %s15, 1
      %p32 = por %p30, %p31
      %p33 = scmp.ne.s32.totalorder %s25, %s28
      %p34 = scmp.eq.s32.totalorder %s15, 0
      %p35 = por %p33, %p34
      %p36 = scmp.ne.s32.totalorder %s25, %s28
      %p37 = scmp.eq.s32.totalorder %s20, 1
      %p38 = por %p36, %p37
      %p39 = scmp.ne.s32.totalorder %s28, %s29
      %p40 = scmp.eq.s32.totalorder %s20, 0
      %p41 = por %p39, %p40
      %p42 = scmp.ne.s32.totalorder %s28, %s29
      %p43 = scmp.eq.s32.totalorder %s21, 1
      %p44 = por %p42, %p43
      %p46 = scmp.ne.s32.totalorder %s29, %s45
      %p47 = scmp.eq.s32.totalorder %s21, 0
      %p48 = por %p46, %p47
      %s50 = sadd.s32 %s49, 1
      %p53 = scmp.eq.s32.totalorder %s15, 1
      %p54 = scmp.ne.s32.totalorder %s49, %s51
      %p55 = scmp.eq.s32.totalorder %s15, 0
      %p56 = por %p54, %p55
      %p57 = scmp.ne.s32.totalorder %s49, %s51
      %p58 = scmp.eq.s32.totalorder %s20, 1
      %p59 = por %p57, %p58
      %p60 = scmp.ne.s32.totalorder %s51, %s52
      %p61 = scmp.eq.s32.totalorder %s20, 0
      %p62 = por %p60, %p61
      %p63 = scmp.ne.s32.totalorder %s51, %s52
      %p64 = scmp.eq.s32.totalorder %s21, 1
      %p65 = por %p63, %p64
      %p67 = scmp.ne.s32.totalorder %s52, %s66
      %p68 = scmp.eq.s32.totalorder %s21, 0
      %p69 = por %p67, %p68
      %s71 = sadd.s32 %s70, 1
      %p74 = scmp.eq.s32.totalorder %s15, 1
      %p75 = scmp.ne.s32.totalorder %s70, %s72
      %p76 = scmp.eq.s32.totalorder %s15, 0
      %p77 = por %p75, %p76
      %p78 = scmp.ne.s32.totalorder %s70, %s72
      %p79 = scmp.eq.s32.totalorder %s20, 1
      %p80 = por %p78, %p79
      %p81 = scmp.ne.s32.totalorder %s72, %s73
      %p82 = scmp.eq.s32.totalorder %s20, 0
      %p83 = por %p81, %p82
      %p84 = scmp.ne.s32.totalorder %s72, %s73
      %p85 = scmp.eq.s32.totalorder %s21, 1
      %p86 = por %p84, %p85
      %p88 = scmp.ne.s32.totalorder %s73, %s87
      %p89 = scmp.eq.s32.totalorder %s21, 0
      %p90 = por %p88, %p89
      %s92 = sadd.s32 %s91, 1
      %p95 = scmp.eq.s32.totalorder %s15, 1
      %p96 = scmp.ne.s32.totalorder %s91, %s93
      %p97 = scmp.eq.s32.totalorder %s15, 0
      %p98 = por %p96, %p97
      %p99 = scmp.ne.s32.totalorder %s91, %s93
      %p100 = scmp.eq.s32.totalorder %s20, 1
      %p101 = por %p99, %p100
      %p102 = scmp.ne.s32.totalorder %s93, %s94
      %p103 = scmp.eq.s32.totalorder %s20, 0
      %p104 = por %p102, %p103
      %p105 = scmp.ne.s32.totalorder %s93, %s94
      %p106 = scmp.eq.s32.totalorder %s21, 1
      %p107 = por %p105, %p106
      %p109 = scmp.ne.s32.totalorder %s94, %s108
      %p110 = scmp.eq.s32.totalorder %s21, 0
      %p111 = por %p109, %p110
      %s113 = sadd.s32 %s112, 1
      %p116 = scmp.eq.s32.totalorder %s15, 1
      %p117 = scmp.ne.s32.totalorder %s112, %s114
      %p118 = scmp.eq.s32.totalorder %s15, 0
      %p119 = por %p117, %p118
      %p120 = scmp.ne.s32.totalorder %s112, %s114
      %p121 = scmp.eq.s32.totalorder %s20, 1
      %p122 = por %p120, %p121
      %p123 = scmp.ne.s32.totalorder %s114, %s115
      %p124 = scmp.eq.s32.totalorder %s20, 0
      %p125 = por %p123, %p124
      %p126 = scmp.ne.s32.totalorder %s114, %s115
      %p127 = scmp.eq.s32.totalorder %s21, 1
      %p128 = por %p126, %p127
      %p130 = scmp.ne.s32.totalorder %s115, %s129
      %p131 = scmp.eq.s32.totalorder %s21, 0
      %p132 = por %p130, %p131
      %s134 = sadd.s32 %s133, 1
      %p137 = scmp.eq.s32.totalorder %s15, 1
      %p138 = scmp.ne.s32.totalorder %s133, %s135
      %p139 = scmp.eq.s32.totalorder %s15, 0
      %p140 = por %p138, %p139
      %p141 = scmp.ne.s32.totalorder %s133, %s135
      %p142 = scmp.eq.s32.totalorder %s20, 1
      %p143 = por %p141, %p142
      %p144 = scmp.ne.s32.totalorder %s135, %s136
      %p145 = scmp.eq.s32.totalorder %s20, 0
      %p146 = por %p144, %p145
      %p147 = scmp.ne.s32.totalorder %s135, %s136
      %p148 = scmp.eq.s32.totalorder %s21, 1
      %p149 = por %p147, %p148
      %p151 = scmp.ne.s32.totalorder %s136, %s150
      %p152 = scmp.eq.s32.totalorder %s21, 0
      %p153 = por %p151, %p152
      %s154 = ssub.s32 %s15, %s22
      %p155 = scmp.eq.s32.totalorder %s154, 0
      %s157 = sadd.s32 %s156, 1
      %s158 = scalar_select %p155, %s156, %s157
      %p161 = pneg %p155
      %p162 = scmp.eq.s32.totalorder %s15, 1
      %p163 = por %p161, %p162
      %p164 = scmp.ne.s32.totalorder %s156, %s159
      %p165 = scmp.eq.s32.totalorder %s15, 0
      %p166 = por %p164, %p165
      %p167 = scmp.ne.s32.totalorder %s156, %s159
      %p168 = scmp.eq.s32.totalorder %s20, 1
      %p169 = por %p167, %p168
      %p170 = scmp.ne.s32.totalorder %s159, %s160
      %p171 = scmp.eq.s32.totalorder %s20, 0
      %p172 = por %p170, %p171
      %p173 = scmp.ne.s32.totalorder %s159, %s160
      %p174 = scmp.eq.s32.totalorder %s21, 1
      %p175 = por %p173, %p174
      %p177 = scmp.ne.s32.totalorder %s160, %s176
      %p178 = scmp.eq.s32.totalorder %s21, 0
      %p179 = por %p177, %p178
      %p180 = scmp.le.s32.totalorder 1, %s15
      %p181 = scmp.lt.s32.totalorder %s15, 3
      %p182 = pnand %p180, %p181
      %p183 = pneg %p182
      // Predicated region
      $region9: #{simple_classifier_forward.3} parent=5 // pred_check
        _
      $region10: #{simple_classifier_forward.3} parent=5 // pred_check_branch
        %185 = sbr.rel (%p182) target = $region12
      $region11: #{simple_classifier_forward.3} parent=5 // pred_region
        %s186 = ssub.s32 %s15, 1
        // Predicated region
        $region13: #{simple_classifier_forward.3} parent=11 // pred_check
          %p187 = pneg %p62
        $region14: #{simple_classifier_forward.3} parent=11 // pred_check_branch
          %189 = sbr.rel (%p187) target = $region16
        $region15: #{simple_classifier_forward.3} parent=11 // pred_region
          _
        $region16: #{simple_classifier_forward.3} parent=11 // pred_fallthru
          _
        // Predicated region
        $region17: #{simple_classifier_forward.3} parent=11 // pred_check
          %p190 = pneg %p83
        $region18: #{simple_classifier_forward.3} parent=11 // pred_check_branch
          %192 = sbr.rel (%p190) target = $region20
        $region19: #{simple_classifier_forward.3} parent=11 // pred_region
          _
        $region20: #{simple_classifier_forward.3} parent=11 // pred_fallthru
          _
        // Predicated region
        $region21: #{simple_classifier_forward.3} parent=11 // pred_check
          %p193 = pneg %p104
        $region22: #{simple_classifier_forward.3} parent=11 // pred_check_branch
          %195 = sbr.rel (%p193) target = $region24
        $region23: #{simple_classifier_forward.3} parent=11 // pred_region
          _
        $region24: #{simple_classifier_forward.3} parent=11 // pred_fallthru
          _
        // Predicated region
        $region25: #{simple_classifier_forward.3} parent=11 // pred_check
          %p196 = pneg %p125
        $region26: #{simple_classifier_forward.3} parent=11 // pred_check_branch
          %198 = sbr.rel (%p196) target = $region28
        $region27: #{simple_classifier_forward.3} parent=11 // pred_region
          _
        $region28: #{simple_classifier_forward.3} parent=11 // pred_fallthru
          _
        // Predicated region
        $region29: #{simple_classifier_forward.3} parent=11 // pred_check
          %p199 = pneg %p146
        $region30: #{simple_classifier_forward.3} parent=11 // pred_check_branch
          %201 = sbr.rel (%p199) target = $region32
        $region31: #{simple_classifier_forward.3} parent=11 // pred_region
          _
        $region32: #{simple_classifier_forward.3} parent=11 // pred_fallthru
          _
      $region12: #{simple_classifier_forward.3} parent=5 // pred_fallthru
        _
      %p202 = scmp.lt.s32.totalorder %s15, 2
      // Predicated region
      $region33: #{simple_classifier_forward.3} parent=5 // pred_check
        %p203 = pneg %p202
      $region34: #{simple_classifier_forward.3} parent=5 // pred_check_branch
        %205 = sbr.rel (%p203) target = $region36
      $region35: #{simple_classifier_forward.3} parent=5 // pred_region
        // Predicated region
        $region37: #{simple_classifier_forward.3} parent=35 // pred_check
          %p206 = pneg %p35
        $region38: #{simple_classifier_forward.3} parent=35 // pred_check_branch
          %208 = sbr.rel (%p206) target = $region40
        $region39: #{simple_classifier_forward.3} parent=35 // pred_region
          %p209 = scmp.lt.s32.totalorder %s15, 1
          %s210 = scalar_select %p209, %s15, 1
          %s211 = smul.addr %s210, 48
          %s212 = smul.addr %s211, 4
          %s213 = scalar_lea.vmem %s0, %s212
        $region40: #{simple_classifier_forward.3} parent=35 // pred_fallthru
          _
      $region36: #{simple_classifier_forward.3} parent=5 // pred_fallthru
        _
      %p214 = scmp.le.s32.totalorder 1, %s15
      %p215 = scmp.lt.s32.totalorder %s15, 3
      %p216 = pnand %p214, %p215
      %p217 = pneg %p216
      // Predicated region
      $region41: #{simple_classifier_forward.3} parent=5 // pred_check
        _
      $region42: #{simple_classifier_forward.3} parent=5 // pred_check_branch
        %219 = sbr.rel (%p216) target = $region44
      $region43: #{simple_classifier_forward.3} parent=5 // pred_region
        %s220 = ssub.s32 %s15, 1
        %p221 = scmp.lt.s32.totalorder %s20, 1
        %s222 = scalar_select %p221, %s20, 1
        %s223 = smul.addr %s222, 48
        %s224 = smul.addr %s223, 4
        %s225 = scalar_lea.vmem %s0, %s224
        %p226 = pneg %p41
        %p227 = pneg %p38
        %p228 = pneg %p62
        %p229 = pneg %p59
        %p230 = pneg %p83
        %p231 = pneg %p80
        %p232 = pneg %p104
        %p233 = pneg %p101
        %p234 = pneg %p125
        %p235 = pneg %p122
        %p236 = pneg %p146
        %p237 = pneg %p143
        %p238 = pneg %p172
        %p239 = pneg %p169
        %s240 = sand.u32 %s159, 1
        %s241 = scalar_lea.sflag [#allocation3], %s240
        %s242 = sand.u32 %s159, 1
        %s243 = scalar_lea.vmem [#allocation2], %s242
        %p244 = scmp.lt.s32.totalorder %s20, 1
        %s245 = scalar_select %p244, %s20, 1
        %s246 = smul.addr %s245, 48
        %s247 = smul.addr %s246, 4
        %s248 = scalar_lea.vmem %s0, %s247
        %v250 = vld [vmem:[%s248] sm:$0xff]
        %v251 = vld [vmem:[%s248 + $0x8] sm:$0xff]
        %v252 = vld [vmem:[%s248 + $0x10] sm:$0xff]
        %v253 = vld [vmem:[%s248 + $0x18] sm:$0xff]
        %v254 = vld [vmem:[%s1] sm:$0xf]
        %v255 = vld [vmem:[%s1 + $0x4] sm:$0xf]
        %v256 = vld [vmem:[%s1 + $0x8] sm:$0xf]
        %v257 = vld [vmem:[%s1 + $0xc] sm:$0xf]
        %v258 = vld [vmem:[%s1 + $0x10] sm:$0xf]
        %v259 = vld [vmem:[%s1 + $0x14] sm:$0xf]
        %v260 = vld [vmem:[%s1 + $0x18] sm:$0xf]
        %v261 = vld [vmem:[%s1 + $0x1c] sm:$0xf]
        %v262 = vld [vmem:[%s1 + $0x20] sm:$0xf]
        %v263 = vld [vmem:[%s1 + $0x24] sm:$0xf]
        %v264 = vld [vmem:[%s1 + $0x28] sm:$0xf]
        %v265 = vld [vmem:[%s1 + $0x2c] sm:$0xf]
        %v266 = vld [vmem:[%s1 + $0x30] sm:$0xf]
        %v267 = vld [vmem:[%s1 + $0x34] sm:$0xf]
        %v268 = vld [vmem:[%s1 + $0x38] sm:$0xf]
        %v269 = vld [vmem:[%s1 + $0x3c] sm:$0xf]
        %v270 = vld [vmem:[%s1 + $0x40] sm:$0xf]
        %v271 = vld [vmem:[%s1 + $0x44] sm:$0xf]
        %v272 = vld [vmem:[%s1 + $0x48] sm:$0xf]
        %v273 = vld [vmem:[%s1 + $0x4c] sm:$0xf]
        %v274 = vld [vmem:[%s1 + $0x50] sm:$0xf]
        %v275 = vld [vmem:[%s1 + $0x54] sm:$0xf]
        %v276 = vld [vmem:[%s1 + $0x58] sm:$0xf]
        %v277 = vld [vmem:[%s1 + $0x5c] sm:$0xf]
        %v278 = vld [vmem:[%s1 + $0x60] sm:$0xf]
        %v279 = vld [vmem:[%s1 + $0x64] sm:$0xf]
        %v280 = vld [vmem:[%s1 + $0x68] sm:$0xf]
        %v281 = vld [vmem:[%s1 + $0x6c] sm:$0xf]
        %v282 = vld [vmem:[%s1 + $0x70] sm:$0xf]
        %v283 = vld [vmem:[%s1 + $0x74] sm:$0xf]
        %v284 = vld [vmem:[%s1 + $0x78] sm:$0xf]
        %v285 = vld [vmem:[%s1 + $0x7c] sm:$0xf]
        %s286 = scalar_lea.vmem %s248, 48
        %v287 = vld [vmem:[%s286] sm:$0xff]
        %v288 = vld [vmem:[%s286 + $0x8] sm:$0xff]
        %v289 = vld [vmem:[%s286 + $0x10] sm:$0xff]
        %v290 = vld [vmem:[%s286 + $0x18] sm:$0xff]
        %s291 = scalar_lea.vmem %s1, 128
        %v292 = vld [vmem:[%s291] sm:$0xf]
        %v293 = vld [vmem:[%s291 + $0x4] sm:$0xf]
        %v294 = vld [vmem:[%s291 + $0x8] sm:$0xf]
        %v295 = vld [vmem:[%s291 + $0xc] sm:$0xf]
        %v296 = vld [vmem:[%s291 + $0x10] sm:$0xf]
        %v297 = vld [vmem:[%s291 + $0x14] sm:$0xf]
        %v298 = vld [vmem:[%s291 + $0x18] sm:$0xf]
        %v299 = vld [vmem:[%s291 + $0x1c] sm:$0xf]
        %v300 = vld [vmem:[%s291 + $0x20] sm:$0xf]
        %v301 = vld [vmem:[%s291 + $0x24] sm:$0xf]
        %v302 = vld [vmem:[%s291 + $0x28] sm:$0xf]
        %v303 = vld [vmem:[%s291 + $0x2c] sm:$0xf]
        %v304 = vld [vmem:[%s291 + $0x30] sm:$0xf]
        %v305 = vld [vmem:[%s291 + $0x34] sm:$0xf]
        %v306 = vld [vmem:[%s291 + $0x38] sm:$0xf]
        %v307 = vld [vmem:[%s291 + $0x3c] sm:$0xf]
        %v308 = vld [vmem:[%s291 + $0x40] sm:$0xf]
        %v309 = vld [vmem:[%s291 + $0x44] sm:$0xf]
        %v310 = vld [vmem:[%s291 + $0x48] sm:$0xf]
        %v311 = vld [vmem:[%s291 + $0x4c] sm:$0xf]
        %v312 = vld [vmem:[%s291 + $0x50] sm:$0xf]
        %v313 = vld [vmem:[%s291 + $0x54] sm:$0xf]
        %v314 = vld [vmem:[%s291 + $0x58] sm:$0xf]
        %v315 = vld [vmem:[%s291 + $0x5c] sm:$0xf]
        %v316 = vld [vmem:[%s291 + $0x60] sm:$0xf]
        %v317 = vld [vmem:[%s291 + $0x64] sm:$0xf]
        %v318 = vld [vmem:[%s291 + $0x68] sm:$0xf]
        %v319 = vld [vmem:[%s291 + $0x6c] sm:$0xf]
        %v320 = vld [vmem:[%s291 + $0x70] sm:$0xf]
        %v321 = vld [vmem:[%s291 + $0x74] sm:$0xf]
        %v322 = vld [vmem:[%s291 + $0x78] sm:$0xf]
        %v323 = vld [vmem:[%s291 + $0x7c] sm:$0xf]
        %v328 = vunpack.c.l.b16 %v287
        %v329 = vunpack.c.h.b16 %v287
        %v330 = vunpack.c.l.b16 %v288
        %v331 = vunpack.c.h.b16 %v288
        %v332 = vunpack.c.l.b16 %v289
        %v333 = vunpack.c.h.b16 %v289
        %v334 = vunpack.c.l.b16 %v290
        %v335 = vunpack.c.h.b16 %v290
        %v336 = vpack.c.b16 %v330, %v328
        %v337 = vpack.c.b16 %v331, %v329
        %v338 = vpack.c.b16 %v334, %v332
        %v339 = vpack.c.b16 %v335, %v333
        %v376 = vunpack.c.l.b16 %v292
        %v377 = vunpack.c.l.b16 %v293
        %v378 = vunpack.c.l.b16 %v294
        %v379 = vunpack.c.l.b16 %v295
        %v380 = vunpack.c.l.b16 %v296
        %v381 = vunpack.c.l.b16 %v297
        %v382 = vunpack.c.l.b16 %v298
        %v383 = vunpack.c.l.b16 %v299
        %v384 = vunpack.c.l.b16 %v300
        %v385 = vunpack.c.l.b16 %v301
        %v386 = vunpack.c.l.b16 %v302
        %v387 = vunpack.c.l.b16 %v303
        %v388 = vunpack.c.l.b16 %v304
        %v389 = vunpack.c.l.b16 %v305
        %v390 = vunpack.c.l.b16 %v306
        %v391 = vunpack.c.l.b16 %v307
        %v392 = vunpack.c.l.b16 %v308
        %v393 = vunpack.c.l.b16 %v309
        %v394 = vunpack.c.l.b16 %v310
        %v395 = vunpack.c.l.b16 %v311
        %v396 = vunpack.c.l.b16 %v312
        %v397 = vunpack.c.l.b16 %v313
        %v398 = vunpack.c.l.b16 %v314
        %v399 = vunpack.c.l.b16 %v315
        %v400 = vunpack.c.l.b16 %v316
        %v401 = vunpack.c.l.b16 %v317
        %v402 = vunpack.c.l.b16 %v318
        %v403 = vunpack.c.l.b16 %v319
        %v404 = vunpack.c.l.b16 %v320
        %v405 = vunpack.c.l.b16 %v321
        %v406 = vunpack.c.l.b16 %v322
        %v407 = vunpack.c.l.b16 %v323
        %v408 = vpack.c.b16 %v377, %v376
        %v409 = vpack.c.b16 %v379, %v378
        %v410 = vpack.c.b16 %v381, %v380
        %v411 = vpack.c.b16 %v383, %v382
        %v412 = vpack.c.b16 %v385, %v384
        %v413 = vpack.c.b16 %v387, %v386
        %v414 = vpack.c.b16 %v389, %v388
        %v415 = vpack.c.b16 %v391, %v390
        %v416 = vpack.c.b16 %v393, %v392
        %v417 = vpack.c.b16 %v395, %v394
        %v418 = vpack.c.b16 %v397, %v396
        %v419 = vpack.c.b16 %v399, %v398
        %v420 = vpack.c.b16 %v401, %v400
        %v421 = vpack.c.b16 %v403, %v402
        %v422 = vpack.c.b16 %v405, %v404
        %v423 = vpack.c.b16 %v407, %v406
        %440 = vmatprep.subr.bf16.mxu0 0
        %441 = vmatpush1.bf16.msra.mxu0 %v415
        %442 = vmatprep.subr.bf16.mxu0 0
        %443 = vmatpush1.bf16.msra.mxu0 %v414
        %444 = vmatprep.subr.bf16.mxu0 0
        %445 = vmatpush1.bf16.msra.mxu0 %v413
        %446 = vmatprep.subr.bf16.mxu0 0
        %447 = vmatpush1.bf16.msra.mxu0 %v412
        %448 = vmatprep.subr.bf16.mxu0 0
        %449 = vmatpush1.bf16.msra.mxu0 %v411
        %450 = vmatprep.subr.bf16.mxu0 0
        %451 = vmatpush1.bf16.msra.mxu0 %v410
        %452 = vmatprep.subr.bf16.mxu0 0
        %453 = vmatpush1.bf16.msra.mxu0 %v409
        %454 = vmatprep.subr.bf16.mxu0 0
        %455 = vmatpush1.bf16.msra.mxu0 %v408
        %456 = vmatprep.subr.bf16.mxu0 0
        %457 = vmatpush2.bf16.msra.mxu0 %v423
        %458 = vmatprep.subr.bf16.mxu0 0
        %459 = vmatpush2.bf16.msra.mxu0 %v422
        %460 = vmatprep.subr.bf16.mxu0 0
        %461 = vmatpush2.bf16.msra.mxu0 %v421
        %462 = vmatprep.subr.bf16.mxu0 0
        %463 = vmatpush2.bf16.msra.mxu0 %v420
        %464 = vmatprep.subr.bf16.mxu0 0
        %465 = vmatpush2.bf16.msra.mxu0 %v419
        %466 = vmatprep.subr.bf16.mxu0 0
        %467 = vmatpush2.bf16.msra.mxu0 %v418
        %468 = vmatprep.subr.bf16.mxu0 0
        %469 = vmatpush2.bf16.msra.mxu0 %v417
        %470 = vmatprep.subr.bf16.mxu0 0
        %471 = vmatpush2.bf16.msra.mxu0 %v416
        %472 = vmatprep.mubr.bf16.mxu0 %v337
        %473 = vmatmul.mubr.bf16.gmra.mxu0 %v336
        %v474 = vpop.f32.mrf.mxu0
        %v475 = vadd.f32 0.0, %v474
        %v476 = vpop.f32.mrf.mxu0
        %v477 = vpop.f32.mrf.mxu0
        %v478 = vadd.f32 0.0, %v477
        %v479 = vpop.f32.mrf.mxu0
        %480 = vmatprep.mubr.bf16.mxu0 %v339
        %481 = vmatmul.mubr.bf16.gmra.mxu0 %v338
        %v482 = vpop.f32.mrf.mxu0
        %v483 = vadd.f32 0.0, %v482
        %v484 = vpop.f32.mrf.mxu0
        %v485 = vpop.f32.mrf.mxu0
        %v486 = vadd.f32 0.0, %v485
        %v487 = vpop.f32.mrf.mxu0
        %488 = vdwg.mxu0
        %v493 = vunpack.c.l.b16 %v250
        %v494 = vunpack.c.h.b16 %v250
        %v495 = vunpack.c.l.b16 %v251
        %v496 = vunpack.c.h.b16 %v251
        %v497 = vunpack.c.l.b16 %v252
        %v498 = vunpack.c.h.b16 %v252
        %v499 = vunpack.c.l.b16 %v253
        %v500 = vunpack.c.h.b16 %v253
        %v501 = vpack.c.b16 %v495, %v493
        %v502 = vpack.c.b16 %v496, %v494
        %v503 = vpack.c.b16 %v499, %v497
        %v504 = vpack.c.b16 %v500, %v498
        %v541 = vunpack.c.l.b16 %v254
        %v542 = vunpack.c.l.b16 %v255
        %v543 = vunpack.c.l.b16 %v256
        %v544 = vunpack.c.l.b16 %v257
        %v545 = vunpack.c.l.b16 %v258
        %v546 = vunpack.c.l.b16 %v259
        %v547 = vunpack.c.l.b16 %v260
        %v548 = vunpack.c.l.b16 %v261
        %v549 = vunpack.c.l.b16 %v262
        %v550 = vunpack.c.l.b16 %v263
        %v551 = vunpack.c.l.b16 %v264
        %v552 = vunpack.c.l.b16 %v265
        %v553 = vunpack.c.l.b16 %v266
        %v554 = vunpack.c.l.b16 %v267
        %v555 = vunpack.c.l.b16 %v268
        %v556 = vunpack.c.l.b16 %v269
        %v557 = vunpack.c.l.b16 %v270
        %v558 = vunpack.c.l.b16 %v271
        %v559 = vunpack.c.l.b16 %v272
        %v560 = vunpack.c.l.b16 %v273
        %v561 = vunpack.c.l.b16 %v274
        %v562 = vunpack.c.l.b16 %v275
        %v563 = vunpack.c.l.b16 %v276
        %v564 = vunpack.c.l.b16 %v277
        %v565 = vunpack.c.l.b16 %v278
        %v566 = vunpack.c.l.b16 %v279
        %v567 = vunpack.c.l.b16 %v280
        %v568 = vunpack.c.l.b16 %v281
        %v569 = vunpack.c.l.b16 %v282
        %v570 = vunpack.c.l.b16 %v283
        %v571 = vunpack.c.l.b16 %v284
        %v572 = vunpack.c.l.b16 %v285
        %v573 = vpack.c.b16 %v542, %v541
        %v574 = vpack.c.b16 %v544, %v543
        %v575 = vpack.c.b16 %v546, %v545
        %v576 = vpack.c.b16 %v548, %v547
        %v577 = vpack.c.b16 %v550, %v549
        %v578 = vpack.c.b16 %v552, %v551
        %v579 = vpack.c.b16 %v554, %v553
        %v580 = vpack.c.b16 %v556, %v555
        %v581 = vpack.c.b16 %v558, %v557
        %v582 = vpack.c.b16 %v560, %v559
        %v583 = vpack.c.b16 %v562, %v561
        %v584 = vpack.c.b16 %v564, %v563
        %v585 = vpack.c.b16 %v566, %v565
        %v586 = vpack.c.b16 %v568, %v567
        %v587 = vpack.c.b16 %v570, %v569
        %v588 = vpack.c.b16 %v572, %v571
        %605 = vmatprep.subr.bf16.mxu0 0
        %606 = vmatpush1.bf16.msra.mxu0 %v580
        %607 = vmatprep.subr.bf16.mxu0 0
        %608 = vmatpush1.bf16.msra.mxu0 %v579
        %609 = vmatprep.subr.bf16.mxu0 0
        %610 = vmatpush1.bf16.msra.mxu0 %v578
        %611 = vmatprep.subr.bf16.mxu0 0
        %612 = vmatpush1.bf16.msra.mxu0 %v577
        %613 = vmatprep.subr.bf16.mxu0 0
        %614 = vmatpush1.bf16.msra.mxu0 %v576
        %615 = vmatprep.subr.bf16.mxu0 0
        %616 = vmatpush1.bf16.msra.mxu0 %v575
        %617 = vmatprep.subr.bf16.mxu0 0
        %618 = vmatpush1.bf16.msra.mxu0 %v574
        %619 = vmatprep.subr.bf16.mxu0 0
        %620 = vmatpush1.bf16.msra.mxu0 %v573
        %621 = vmatprep.subr.bf16.mxu0 0
        %622 = vmatpush2.bf16.msra.mxu0 %v588
        %623 = vmatprep.subr.bf16.mxu0 0
        %624 = vmatpush2.bf16.msra.mxu0 %v587
        %625 = vmatprep.subr.bf16.mxu0 0
        %626 = vmatpush2.bf16.msra.mxu0 %v586
        %627 = vmatprep.subr.bf16.mxu0 0
        %628 = vmatpush2.bf16.msra.mxu0 %v585
        %629 = vmatprep.subr.bf16.mxu0 0
        %630 = vmatpush2.bf16.msra.mxu0 %v584
        %631 = vmatprep.subr.bf16.mxu0 0
        %632 = vmatpush2.bf16.msra.mxu0 %v583
        %633 = vmatprep.subr.bf16.mxu0 0
        %634 = vmatpush2.bf16.msra.mxu0 %v582
        %635 = vmatprep.subr.bf16.mxu0 0
        %636 = vmatpush2.bf16.msra.mxu0 %v581
        %637 = vmatprep.mubr.bf16.mxu0 %v502
        %638 = vmatmul.mubr.bf16.gmra.mxu0 %v501
        %v639 = vpop.f32.mrf.mxu0
        %v640 = vadd.f32 %v475, %v639
        %v641 = vpop.f32.mrf.mxu0
        %v642 = vpop.f32.mrf.mxu0
        %v643 = vadd.f32 %v478, %v642
        %v644 = vpop.f32.mrf.mxu0
        %645 = vmatprep.mubr.bf16.mxu0 %v504
        %646 = vmatmul.mubr.bf16.gmra.mxu0 %v503
        %v647 = vpop.f32.mrf.mxu0
        %v648 = vadd.f32 %v483, %v647
        %v649 = vpop.f32.mrf.mxu0
        %v650 = vpop.f32.mrf.mxu0
        %v651 = vadd.f32 %v486, %v650
        %v652 = vpop.f32.mrf.mxu0
        %653 = vdwg.mxu0
        %v654 = vld [vmem:[%s248] sm:$0xff]
        %v655 = vld [vmem:[%s248 + $0x8] sm:$0xff]
        %v656 = vld [vmem:[%s248 + $0x10] sm:$0xff]
        %v657 = vld [vmem:[%s248 + $0x18] sm:$0xff]
        %v658 = vld [vmem:[%s248 + $0x20] sm:$0x11]
        %s659 = scalar_lea.vmem %s1, 256
        %v660 = vld [vmem:[%s659] sm:$0xf]
        %v661 = vld [vmem:[%s659 + $0x4] sm:$0xf]
        %v662 = vld [vmem:[%s659 + $0x8] sm:$0xf]
        %v663 = vld [vmem:[%s659 + $0xc] sm:$0xf]
        %v664 = vld [vmem:[%s659 + $0x10] sm:$0xf]
        %v665 = vld [vmem:[%s659 + $0x14] sm:$0xf]
        %v666 = vld [vmem:[%s659 + $0x18] sm:$0xf]
        %v667 = vld [vmem:[%s659 + $0x1c] sm:$0xf]
        %v668 = vld [vmem:[%s659 + $0x20] sm:$0xf]
        %v669 = vld [vmem:[%s659 + $0x24] sm:$0xf]
        %v670 = vld [vmem:[%s659 + $0x28] sm:$0xf]
        %v671 = vld [vmem:[%s659 + $0x2c] sm:$0xf]
        %v672 = vld [vmem:[%s659 + $0x30] sm:$0xf]
        %v673 = vld [vmem:[%s659 + $0x34] sm:$0xf]
        %v674 = vld [vmem:[%s659 + $0x38] sm:$0xf]
        %v675 = vld [vmem:[%s659 + $0x3c] sm:$0xf]
        %v676 = vld [vmem:[%s659 + $0x40] sm:$0xf]
        %v677 = vld [vmem:[%s659 + $0x44] sm:$0xf]
        %v678 = vld [vmem:[%s659 + $0x48] sm:$0xf]
        %v679 = vld [vmem:[%s659 + $0x4c] sm:$0xf]
        %v680 = vld [vmem:[%s659 + $0x50] sm:$0xf]
        %v681 = vld [vmem:[%s659 + $0x54] sm:$0xf]
        %v682 = vld [vmem:[%s659 + $0x58] sm:$0xf]
        %v683 = vld [vmem:[%s659 + $0x5c] sm:$0xf]
        %v684 = vld [vmem:[%s659 + $0x60] sm:$0xf]
        %v685 = vld [vmem:[%s659 + $0x64] sm:$0xf]
        %v686 = vld [vmem:[%s659 + $0x68] sm:$0xf]
        %v687 = vld [vmem:[%s659 + $0x6c] sm:$0xf]
        %v688 = vld [vmem:[%s659 + $0x70] sm:$0xf]
        %v689 = vld [vmem:[%s659 + $0x74] sm:$0xf]
        %v690 = vld [vmem:[%s659 + $0x78] sm:$0xf]
        %v691 = vld [vmem:[%s659 + $0x7c] sm:$0xf]
        %v697 = vunpack.c.l.b16 %v654
        %v698 = vunpack.c.h.b16 %v654
        %v699 = vunpack.c.l.b16 %v655
        %v700 = vunpack.c.h.b16 %v655
        %v701 = vunpack.c.l.b16 %v656
        %v702 = vunpack.c.h.b16 %v656
        %v703 = vunpack.c.l.b16 %v657
        %v704 = vunpack.c.h.b16 %v657
        %v705 = vunpack.c.l.b16 %v658
        %v706 = vunpack.c.h.b16 %v658
        %v707 = vpack.c.b16 %v699, %v697
        %v708 = vpack.c.b16 %v700, %v698
        %v709 = vpack.c.b16 %v703, %v701
        %v710 = vpack.c.b16 %v704, %v702
        %v711 = vpack.c.b16 %v705, %v705
        %v712 = vpack.c.b16 %v706, %v706
        %vm713 = vsmask.f32 7424
        %v715 = vshrl.u32 %v707, 16
        %v717 = vshll.u32 %v707, 16
        %v719 = vrot.slane %v717, 1
        %v720 = vor.u32 %v715, %v719
        %v722 = vshll.u32 %v709, 16
        %v724 = vrot.slane %v722, 1
        %v725 = vsel %vm713, %v720, %v724
        %v727 = vshrl.u32 %v708, 16
        %v729 = vshll.u32 %v708, 16
        %v731 = vrot.slane %v729, 1
        %v732 = vor.u32 %v727, %v731
        %v734 = vshll.u32 %v710, 16
        %v736 = vrot.slane %v734, 1
        %v737 = vsel %vm713, %v732, %v736
        %v738 = vshrl.u32 %v709, 16
        %v740 = vor.u32 %v738, %v724
        %v742 = vshll.u32 %v711, 16
        %v744 = vrot.slane %v742, 1
        %v745 = vsel %vm713, %v740, %v744
        %v746 = vshrl.u32 %v710, 16
        %v748 = vor.u32 %v746, %v736
        %v750 = vshll.u32 %v712, 16
        %v752 = vrot.slane %v750, 1
        %v753 = vsel %vm713, %v748, %v752
        %v790 = vunpack.c.l.b16 %v660
        %v791 = vunpack.c.l.b16 %v661
        %v792 = vunpack.c.l.b16 %v662
        %v793 = vunpack.c.l.b16 %v663
        %v794 = vunpack.c.l.b16 %v664
        %v795 = vunpack.c.l.b16 %v665
        %v796 = vunpack.c.l.b16 %v666
        %v797 = vunpack.c.l.b16 %v667
        %v798 = vunpack.c.l.b16 %v668
        %v799 = vunpack.c.l.b16 %v669
        %v800 = vunpack.c.l.b16 %v670
        %v801 = vunpack.c.l.b16 %v671
        %v802 = vunpack.c.l.b16 %v672
        %v803 = vunpack.c.l.b16 %v673
        %v804 = vunpack.c.l.b16 %v674
        %v805 = vunpack.c.l.b16 %v675
        %v806 = vunpack.c.l.b16 %v676
        %v807 = vunpack.c.l.b16 %v677
        %v808 = vunpack.c.l.b16 %v678
        %v809 = vunpack.c.l.b16 %v679
        %v810 = vunpack.c.l.b16 %v680
        %v811 = vunpack.c.l.b16 %v681
        %v812 = vunpack.c.l.b16 %v682
        %v813 = vunpack.c.l.b16 %v683
        %v814 = vunpack.c.l.b16 %v684
        %v815 = vunpack.c.l.b16 %v685
        %v816 = vunpack.c.l.b16 %v686
        %v817 = vunpack.c.l.b16 %v687
        %v818 = vunpack.c.l.b16 %v688
        %v819 = vunpack.c.l.b16 %v689
        %v820 = vunpack.c.l.b16 %v690
        %v821 = vunpack.c.l.b16 %v691
        %v822 = vpack.c.b16 %v791, %v790
        %v823 = vpack.c.b16 %v793, %v792
        %v824 = vpack.c.b16 %v795, %v794
        %v825 = vpack.c.b16 %v797, %v796
        %v826 = vpack.c.b16 %v799, %v798
        %v827 = vpack.c.b16 %v801, %v800
        %v828 = vpack.c.b16 %v803, %v802
        %v829 = vpack.c.b16 %v805, %v804
        %v830 = vpack.c.b16 %v807, %v806
        %v831 = vpack.c.b16 %v809, %v808
        %v832 = vpack.c.b16 %v811, %v810
        %v833 = vpack.c.b16 %v813, %v812
        %v834 = vpack.c.b16 %v815, %v814
        %v835 = vpack.c.b16 %v817, %v816
        %v836 = vpack.c.b16 %v819, %v818
        %v837 = vpack.c.b16 %v821, %v820
        %854 = vmatprep.subr.bf16.mxu0 0
        %855 = vmatpush1.bf16.msra.mxu0 %v829
        %856 = vmatprep.subr.bf16.mxu0 0
        %857 = vmatpush1.bf16.msra.mxu0 %v828
        %858 = vmatprep.subr.bf16.mxu0 0
        %859 = vmatpush1.bf16.msra.mxu0 %v827
        %860 = vmatprep.subr.bf16.mxu0 0
        %861 = vmatpush1.bf16.msra.mxu0 %v826
        %862 = vmatprep.subr.bf16.mxu0 0
        %863 = vmatpush1.bf16.msra.mxu0 %v825
        %864 = vmatprep.subr.bf16.mxu0 0
        %865 = vmatpush1.bf16.msra.mxu0 %v824
        %866 = vmatprep.subr.bf16.mxu0 0
        %867 = vmatpush1.bf16.msra.mxu0 %v823
        %868 = vmatprep.subr.bf16.mxu0 0
        %869 = vmatpush1.bf16.msra.mxu0 %v822
        %870 = vmatprep.subr.bf16.mxu0 0
        %871 = vmatpush2.bf16.msra.mxu0 %v837
        %872 = vmatprep.subr.bf16.mxu0 0
        %873 = vmatpush2.bf16.msra.mxu0 %v836
        %874 = vmatprep.subr.bf16.mxu0 0
        %875 = vmatpush2.bf16.msra.mxu0 %v835
        %876 = vmatprep.subr.bf16.mxu0 0
        %877 = vmatpush2.bf16.msra.mxu0 %v834
        %878 = vmatprep.subr.bf16.mxu0 0
        %879 = vmatpush2.bf16.msra.mxu0 %v833
        %880 = vmatprep.subr.bf16.mxu0 0
        %881 = vmatpush2.bf16.msra.mxu0 %v832
        %882 = vmatprep.subr.bf16.mxu0 0
        %883 = vmatpush2.bf16.msra.mxu0 %v831
        %884 = vmatprep.subr.bf16.mxu0 0
        %885 = vmatpush2.bf16.msra.mxu0 %v830
        %886 = vmatprep.mubr.bf16.mxu0 %v737
        %887 = vmatmul.mubr.bf16.gmra.mxu0 %v725
        %v888 = vpop.f32.mrf.mxu0
        %v889 = vadd.f32 0.0, %v888
        %v890 = vpop.f32.mrf.mxu0
        %v891 = vpop.f32.mrf.mxu0
        %v892 = vadd.f32 0.0, %v891
        %v893 = vpop.f32.mrf.mxu0
        %894 = vmatprep.mubr.bf16.mxu0 %v753
        %895 = vmatmul.mubr.bf16.gmra.mxu0 %v745
        %v896 = vpop.f32.mrf.mxu0
        %v897 = vadd.f32 0.0, %v896
        %v898 = vpop.f32.mrf.mxu0
        %v899 = vpop.f32.mrf.mxu0
        %v900 = vadd.f32 0.0, %v899
        %v901 = vpop.f32.mrf.mxu0
        %902 = vdwg.mxu0
        %v903 = vadd.f32 %v640, %v889
        %v904 = vadd.f32 %v643, %v892
        %v905 = vadd.f32 %v648, %v897
        %v906 = vadd.f32 %v651, %v900
        %s907 = scalar_lea.vmem %s248, 96
        %v908 = vld [vmem:[%s907] sm:$0xff]
        %v909 = vld [vmem:[%s907 + $0x8] sm:$0xff]
        %v910 = vld [vmem:[%s907 + $0x10] sm:$0xff]
        %v911 = vld [vmem:[%s907 + $0x18] sm:$0xff]
        %s912 = scalar_lea.vmem %s1, 384
        %v913 = vld [vmem:[%s912] sm:$0xf]
        %v914 = vld [vmem:[%s912 + $0x4] sm:$0xf]
        %v915 = vld [vmem:[%s912 + $0x8] sm:$0xf]
        %v916 = vld [vmem:[%s912 + $0xc] sm:$0xf]
        %v917 = vld [vmem:[%s912 + $0x10] sm:$0xf]
        %v918 = vld [vmem:[%s912 + $0x14] sm:$0xf]
        %v919 = vld [vmem:[%s912 + $0x18] sm:$0xf]
        %v920 = vld [vmem:[%s912 + $0x1c] sm:$0xf]
        %v921 = vld [vmem:[%s912 + $0x20] sm:$0xf]
        %v922 = vld [vmem:[%s912 + $0x24] sm:$0xf]
        %v923 = vld [vmem:[%s912 + $0x28] sm:$0xf]
        %v924 = vld [vmem:[%s912 + $0x2c] sm:$0xf]
        %v925 = vld [vmem:[%s912 + $0x30] sm:$0xf]
        %v926 = vld [vmem:[%s912 + $0x34] sm:$0xf]
        %v927 = vld [vmem:[%s912 + $0x38] sm:$0xf]
        %v928 = vld [vmem:[%s912 + $0x3c] sm:$0xf]
        %v929 = vld [vmem:[%s912 + $0x40] sm:$0xf]
        %v930 = vld [vmem:[%s912 + $0x44] sm:$0xf]
        %v931 = vld [vmem:[%s912 + $0x48] sm:$0xf]
        %v932 = vld [vmem:[%s912 + $0x4c] sm:$0xf]
        %v933 = vld [vmem:[%s912 + $0x50] sm:$0xf]
        %v934 = vld [vmem:[%s912 + $0x54] sm:$0xf]
        %v935 = vld [vmem:[%s912 + $0x58] sm:$0xf]
        %v936 = vld [vmem:[%s912 + $0x5c] sm:$0xf]
        %v937 = vld [vmem:[%s912 + $0x60] sm:$0xf]
        %v938 = vld [vmem:[%s912 + $0x64] sm:$0xf]
        %v939 = vld [vmem:[%s912 + $0x68] sm:$0xf]
        %v940 = vld [vmem:[%s912 + $0x6c] sm:$0xf]
        %v941 = vld [vmem:[%s912 + $0x70] sm:$0xf]
        %v942 = vld [vmem:[%s912 + $0x74] sm:$0xf]
        %v943 = vld [vmem:[%s912 + $0x78] sm:$0xf]
        %v944 = vld [vmem:[%s912 + $0x7c] sm:$0xf]
        %v949 = vunpack.c.l.b16 %v908
        %v950 = vunpack.c.h.b16 %v908
        %v951 = vunpack.c.l.b16 %v909
        %v952 = vunpack.c.h.b16 %v909
        %v953 = vunpack.c.l.b16 %v910
        %v954 = vunpack.c.h.b16 %v910
        %v955 = vunpack.c.l.b16 %v911
        %v956 = vunpack.c.h.b16 %v911
        %v957 = vpack.c.b16 %v951, %v949
        %v958 = vpack.c.b16 %v952, %v950
        %v959 = vpack.c.b16 %v955, %v953
        %v960 = vpack.c.b16 %v956, %v954
        %v997 = vunpack.c.l.b16 %v913
        %v998 = vunpack.c.l.b16 %v914
        %v999 = vunpack.c.l.b16 %v915
        %v1000 = vunpack.c.l.b16 %v916
        %v1001 = vunpack.c.l.b16 %v917
        %v1002 = vunpack.c.l.b16 %v918
        %v1003 = vunpack.c.l.b16 %v919
        %v1004 = vunpack.c.l.b16 %v920
        %v1005 = vunpack.c.l.b16 %v921
        %v1006 = vunpack.c.l.b16 %v922
        %v1007 = vunpack.c.l.b16 %v923
        %v1008 = vunpack.c.l.b16 %v924
        %v1009 = vunpack.c.l.b16 %v925
        %v1010 = vunpack.c.l.b16 %v926
        %v1011 = vunpack.c.l.b16 %v927
        %v1012 = vunpack.c.l.b16 %v928
        %v1013 = vunpack.c.l.b16 %v929
        %v1014 = vunpack.c.l.b16 %v930
        %v1015 = vunpack.c.l.b16 %v931
        %v1016 = vunpack.c.l.b16 %v932
        %v1017 = vunpack.c.l.b16 %v933
        %v1018 = vunpack.c.l.b16 %v934
        %v1019 = vunpack.c.l.b16 %v935
        %v1020 = vunpack.c.l.b16 %v936
        %v1021 = vunpack.c.l.b16 %v937
        %v1022 = vunpack.c.l.b16 %v938
        %v1023 = vunpack.c.l.b16 %v939
        %v1024 = vunpack.c.l.b16 %v940
        %v1025 = vunpack.c.l.b16 %v941
        %v1026 = vunpack.c.l.b16 %v942
        %v1027 = vunpack.c.l.b16 %v943
        %v1028 = vunpack.c.l.b16 %v944
        %v1029 = vpack.c.b16 %v998, %v997
        %v1030 = vpack.c.b16 %v1000, %v999
        %v1031 = vpack.c.b16 %v1002, %v1001
        %v1032 = vpack.c.b16 %v1004, %v1003
        %v1033 = vpack.c.b16 %v1006, %v1005
        %v1034 = vpack.c.b16 %v1008, %v1007
        %v1035 = vpack.c.b16 %v1010, %v1009
        %v1036 = vpack.c.b16 %v1012, %v1011
        %v1037 = vpack.c.b16 %v1014, %v1013
        %v1038 = vpack.c.b16 %v1016, %v1015
        %v1039 = vpack.c.b16 %v1018, %v1017
        %v1040 = vpack.c.b16 %v1020, %v1019
        %v1041 = vpack.c.b16 %v1022, %v1021
        %v1042 = vpack.c.b16 %v1024, %v1023
        %v1043 = vpack.c.b16 %v1026, %v1025
        %v1044 = vpack.c.b16 %v1028, %v1027
        %1061 = vmatprep.subr.bf16.mxu0 0
        %1062 = vmatpush1.bf16.msra.mxu0 %v1036
        %1063 = vmatprep.subr.bf16.mxu0 0
        %1064 = vmatpush1.bf16.msra.mxu0 %v1035
        %1065 = vmatprep.subr.bf16.mxu0 0
        %1066 = vmatpush1.bf16.msra.mxu0 %v1034
        %1067 = vmatprep.subr.bf16.mxu0 0
        %1068 = vmatpush1.bf16.msra.mxu0 %v1033
        %1069 = vmatprep.subr.bf16.mxu0 0
        %1070 = vmatpush1.bf16.msra.mxu0 %v1032
        %1071 = vmatprep.subr.bf16.mxu0 0
        %1072 = vmatpush1.bf16.msra.mxu0 %v1031
        %1073 = vmatprep.subr.bf16.mxu0 0
        %1074 = vmatpush1.bf16.msra.mxu0 %v1030
        %1075 = vmatprep.subr.bf16.mxu0 0
        %1076 = vmatpush1.bf16.msra.mxu0 %v1029
        %1077 = vmatprep.subr.bf16.mxu0 0
        %1078 = vmatpush2.bf16.msra.mxu0 %v1044
        %1079 = vmatprep.subr.bf16.mxu0 0
        %1080 = vmatpush2.bf16.msra.mxu0 %v1043
        %1081 = vmatprep.subr.bf16.mxu0 0
        %1082 = vmatpush2.bf16.msra.mxu0 %v1042
        %1083 = vmatprep.subr.bf16.mxu0 0
        %1084 = vmatpush2.bf16.msra.mxu0 %v1041
        %1085 = vmatprep.subr.bf16.mxu0 0
        %1086 = vmatpush2.bf16.msra.mxu0 %v1040
        %1087 = vmatprep.subr.bf16.mxu0 0
        %1088 = vmatpush2.bf16.msra.mxu0 %v1039
        %1089 = vmatprep.subr.bf16.mxu0 0
        %1090 = vmatpush2.bf16.msra.mxu0 %v1038
        %1091 = vmatprep.subr.bf16.mxu0 0
        %1092 = vmatpush2.bf16.msra.mxu0 %v1037
        %1093 = vmatprep.mubr.bf16.mxu0 %v958
        %1094 = vmatmul.mubr.bf16.gmra.mxu0 %v957
        %v1095 = vpop.f32.mrf.mxu0
        %v1096 = vadd.f32 0.0, %v1095
        %v1097 = vpop.f32.mrf.mxu0
        %v1098 = vpop.f32.mrf.mxu0
        %v1099 = vadd.f32 0.0, %v1098
        %v1100 = vpop.f32.mrf.mxu0
        %1101 = vmatprep.mubr.bf16.mxu0 %v960
        %1102 = vmatmul.mubr.bf16.gmra.mxu0 %v959
        %v1103 = vpop.f32.mrf.mxu0
        %v1104 = vadd.f32 0.0, %v1103
        %v1105 = vpop.f32.mrf.mxu0
        %v1106 = vpop.f32.mrf.mxu0
        %v1107 = vadd.f32 0.0, %v1106
        %v1108 = vpop.f32.mrf.mxu0
        %1109 = vdwg.mxu0
        %v1110 = vadd.f32 %v903, %v1096
        %v1111 = vadd.f32 %v904, %v1099
        %v1112 = vadd.f32 %v905, %v1104
        %v1113 = vadd.f32 %v906, %v1107
        %s1114 = scalar_lea.vmem %s248, 144
        %v1115 = vld [vmem:[%s1114] sm:$0xff]
        %v1116 = vld [vmem:[%s1114 + $0x8] sm:$0xff]
        %v1117 = vld [vmem:[%s1114 + $0x10] sm:$0xff]
        %v1118 = vld [vmem:[%s1114 + $0x18] sm:$0xff]
        %s1119 = scalar_lea.vmem %s1, 512
        %v1120 = vld [vmem:[%s1119] sm:$0xf]
        %v1121 = vld [vmem:[%s1119 + $0x4] sm:$0xf]
        %v1122 = vld [vmem:[%s1119 + $0x8] sm:$0xf]
        %v1123 = vld [vmem:[%s1119 + $0xc] sm:$0xf]
        %v1124 = vld [vmem:[%s1119 + $0x10] sm:$0xf]
        %v1125 = vld [vmem:[%s1119 + $0x14] sm:$0xf]
        %v1126 = vld [vmem:[%s1119 + $0x18] sm:$0xf]
        %v1127 = vld [vmem:[%s1119 + $0x1c] sm:$0xf]
        %v1128 = vld [vmem:[%s1119 + $0x20] sm:$0xf]
        %v1129 = vld [vmem:[%s1119 + $0x24] sm:$0xf]
        %v1130 = vld [vmem:[%s1119 + $0x28] sm:$0xf]
        %v1131 = vld [vmem:[%s1119 + $0x2c] sm:$0xf]
        %v1132 = vld [vmem:[%s1119 + $0x30] sm:$0xf]
        %v1133 = vld [vmem:[%s1119 + $0x34] sm:$0xf]
        %v1134 = vld [vmem:[%s1119 + $0x38] sm:$0xf]
        %v1135 = vld [vmem:[%s1119 + $0x3c] sm:$0xf]
        %v1136 = vld [vmem:[%s1119 + $0x40] sm:$0xf]
        %v1137 = vld [vmem:[%s1119 + $0x44] sm:$0xf]
        %v1138 = vld [vmem:[%s1119 + $0x48] sm:$0xf]
        %v1139 = vld [vmem:[%s1119 + $0x4c] sm:$0xf]
        %v1140 = vld [vmem:[%s1119 + $0x50] sm:$0xf]
        %v1141 = vld [vmem:[%s1119 + $0x54] sm:$0xf]
        %v1142 = vld [vmem:[%s1119 + $0x58] sm:$0xf]
        %v1143 = vld [vmem:[%s1119 + $0x5c] sm:$0xf]
        %v1144 = vld [vmem:[%s1119 + $0x60] sm:$0xf]
        %v1145 = vld [vmem:[%s1119 + $0x64] sm:$0xf]
        %v1146 = vld [vmem:[%s1119 + $0x68] sm:$0xf]
        %v1147 = vld [vmem:[%s1119 + $0x6c] sm:$0xf]
        %v1148 = vld [vmem:[%s1119 + $0x70] sm:$0xf]
        %v1149 = vld [vmem:[%s1119 + $0x74] sm:$0xf]
        %v1150 = vld [vmem:[%s1119 + $0x78] sm:$0xf]
        %v1151 = vld [vmem:[%s1119 + $0x7c] sm:$0xf]
        %v1156 = vunpack.c.l.b16 %v1115
        %v1157 = vunpack.c.h.b16 %v1115
        %v1158 = vunpack.c.l.b16 %v1116
        %v1159 = vunpack.c.h.b16 %v1116
        %v1160 = vunpack.c.l.b16 %v1117
        %v1161 = vunpack.c.h.b16 %v1117
        %v1162 = vunpack.c.l.b16 %v1118
        %v1163 = vunpack.c.h.b16 %v1118
        %v1164 = vpack.c.b16 %v1158, %v1156
        %v1165 = vpack.c.b16 %v1159, %v1157
        %v1166 = vpack.c.b16 %v1162, %v1160
        %v1167 = vpack.c.b16 %v1163, %v1161
        %v1204 = vunpack.c.l.b16 %v1120
        %v1205 = vunpack.c.l.b16 %v1121
        %v1206 = vunpack.c.l.b16 %v1122
        %v1207 = vunpack.c.l.b16 %v1123
        %v1208 = vunpack.c.l.b16 %v1124
        %v1209 = vunpack.c.l.b16 %v1125
        %v1210 = vunpack.c.l.b16 %v1126
        %v1211 = vunpack.c.l.b16 %v1127
        %v1212 = vunpack.c.l.b16 %v1128
        %v1213 = vunpack.c.l.b16 %v1129
        %v1214 = vunpack.c.l.b16 %v1130
        %v1215 = vunpack.c.l.b16 %v1131
        %v1216 = vunpack.c.l.b16 %v1132
        %v1217 = vunpack.c.l.b16 %v1133
        %v1218 = vunpack.c.l.b16 %v1134
        %v1219 = vunpack.c.l.b16 %v1135
        %v1220 = vunpack.c.l.b16 %v1136
        %v1221 = vunpack.c.l.b16 %v1137
        %v1222 = vunpack.c.l.b16 %v1138
        %v1223 = vunpack.c.l.b16 %v1139
        %v1224 = vunpack.c.l.b16 %v1140
        %v1225 = vunpack.c.l.b16 %v1141
        %v1226 = vunpack.c.l.b16 %v1142
        %v1227 = vunpack.c.l.b16 %v1143
        %v1228 = vunpack.c.l.b16 %v1144
        %v1229 = vunpack.c.l.b16 %v1145
        %v1230 = vunpack.c.l.b16 %v1146
        %v1231 = vunpack.c.l.b16 %v1147
        %v1232 = vunpack.c.l.b16 %v1148
        %v1233 = vunpack.c.l.b16 %v1149
        %v1234 = vunpack.c.l.b16 %v1150
        %v1235 = vunpack.c.l.b16 %v1151
        %v1236 = vpack.c.b16 %v1205, %v1204
        %v1237 = vpack.c.b16 %v1207, %v1206
        %v1238 = vpack.c.b16 %v1209, %v1208
        %v1239 = vpack.c.b16 %v1211, %v1210
        %v1240 = vpack.c.b16 %v1213, %v1212
        %v1241 = vpack.c.b16 %v1215, %v1214
        %v1242 = vpack.c.b16 %v1217, %v1216
        %v1243 = vpack.c.b16 %v1219, %v1218
        %v1244 = vpack.c.b16 %v1221, %v1220
        %v1245 = vpack.c.b16 %v1223, %v1222
        %v1246 = vpack.c.b16 %v1225, %v1224
        %v1247 = vpack.c.b16 %v1227, %v1226
        %v1248 = vpack.c.b16 %v1229, %v1228
        %v1249 = vpack.c.b16 %v1231, %v1230
        %v1250 = vpack.c.b16 %v1233, %v1232
        %v1251 = vpack.c.b16 %v1235, %v1234
        %1268 = vmatprep.subr.bf16.mxu0 0
        %1269 = vmatpush1.bf16.msra.mxu0 %v1243
        %1270 = vmatprep.subr.bf16.mxu0 0
        %1271 = vmatpush1.bf16.msra.mxu0 %v1242
        %1272 = vmatprep.subr.bf16.mxu0 0
        %1273 = vmatpush1.bf16.msra.mxu0 %v1241
        %1274 = vmatprep.subr.bf16.mxu0 0
        %1275 = vmatpush1.bf16.msra.mxu0 %v1240
        %1276 = vmatprep.subr.bf16.mxu0 0
        %1277 = vmatpush1.bf16.msra.mxu0 %v1239
        %1278 = vmatprep.subr.bf16.mxu0 0
        %1279 = vmatpush1.bf16.msra.mxu0 %v1238
        %1280 = vmatprep.subr.bf16.mxu0 0
        %1281 = vmatpush1.bf16.msra.mxu0 %v1237
        %1282 = vmatprep.subr.bf16.mxu0 0
        %1283 = vmatpush1.bf16.msra.mxu0 %v1236
        %1284 = vmatprep.subr.bf16.mxu0 0
        %1285 = vmatpush2.bf16.msra.mxu0 %v1251
        %1286 = vmatprep.subr.bf16.mxu0 0
        %1287 = vmatpush2.bf16.msra.mxu0 %v1250
        %1288 = vmatprep.subr.bf16.mxu0 0
        %1289 = vmatpush2.bf16.msra.mxu0 %v1249
        %1290 = vmatprep.subr.bf16.mxu0 0
        %1291 = vmatpush2.bf16.msra.mxu0 %v1248
        %1292 = vmatprep.subr.bf16.mxu0 0
        %1293 = vmatpush2.bf16.msra.mxu0 %v1247
        %1294 = vmatprep.subr.bf16.mxu0 0
        %1295 = vmatpush2.bf16.msra.mxu0 %v1246
        %1296 = vmatprep.subr.bf16.mxu0 0
        %1297 = vmatpush2.bf16.msra.mxu0 %v1245
        %1298 = vmatprep.subr.bf16.mxu0 0
        %1299 = vmatpush2.bf16.msra.mxu0 %v1244
        %1300 = vmatprep.mubr.bf16.mxu0 %v1165
        %1301 = vmatmul.mubr.bf16.gmra.mxu0 %v1164
        %v1302 = vpop.f32.mrf.mxu0
        %v1303 = vadd.f32 0.0, %v1302
        %v1304 = vpop.f32.mrf.mxu0
        %v1305 = vpop.f32.mrf.mxu0
        %v1306 = vadd.f32 0.0, %v1305
        %v1307 = vpop.f32.mrf.mxu0
        %1308 = vmatprep.mubr.bf16.mxu0 %v1167
        %1309 = vmatmul.mubr.bf16.gmra.mxu0 %v1166
        %v1310 = vpop.f32.mrf.mxu0
        %v1311 = vadd.f32 0.0, %v1310
        %v1312 = vpop.f32.mrf.mxu0
        %v1313 = vpop.f32.mrf.mxu0
        %v1314 = vadd.f32 0.0, %v1313
        %v1315 = vpop.f32.mrf.mxu0
        %1316 = vdwg.mxu0
        %v1317 = vadd.f32 %v1110, %v1303
        %v1318 = vadd.f32 %v1111, %v1306
        %v1319 = vadd.f32 %v1112, %v1311
        %v1320 = vadd.f32 %v1113, %v1314
        %v1321 = vld [vmem:[%s907] sm:$0xff]
        %v1322 = vld [vmem:[%s907 + $0x8] sm:$0xff]
        %v1323 = vld [vmem:[%s907 + $0x10] sm:$0xff]
        %v1324 = vld [vmem:[%s907 + $0x18] sm:$0xff]
        %v1325 = vld [vmem:[%s907 + $0x20] sm:$0x11]
        %s1326 = scalar_lea.vmem %s1, 640
        %v1327 = vld [vmem:[%s1326] sm:$0xf]
        %v1328 = vld [vmem:[%s1326 + $0x4] sm:$0xf]
        %v1329 = vld [vmem:[%s1326 + $0x8] sm:$0xf]
        %v1330 = vld [vmem:[%s1326 + $0xc] sm:$0xf]
        %v1331 = vld [vmem:[%s1326 + $0x10] sm:$0xf]
        %v1332 = vld [vmem:[%s1326 + $0x14] sm:$0xf]
        %v1333 = vld [vmem:[%s1326 + $0x18] sm:$0xf]
        %v1334 = vld [vmem:[%s1326 + $0x1c] sm:$0xf]
        %v1335 = vld [vmem:[%s1326 + $0x20] sm:$0xf]
        %v1336 = vld [vmem:[%s1326 + $0x24] sm:$0xf]
        %v1337 = vld [vmem:[%s1326 + $0x28] sm:$0xf]
        %v1338 = vld [vmem:[%s1326 + $0x2c] sm:$0xf]
        %v1339 = vld [vmem:[%s1326 + $0x30] sm:$0xf]
        %v1340 = vld [vmem:[%s1326 + $0x34] sm:$0xf]
        %v1341 = vld [vmem:[%s1326 + $0x38] sm:$0xf]
        %v1342 = vld [vmem:[%s1326 + $0x3c] sm:$0xf]
        %v1343 = vld [vmem:[%s1326 + $0x40] sm:$0xf]
        %v1344 = vld [vmem:[%s1326 + $0x44] sm:$0xf]
        %v1345 = vld [vmem:[%s1326 + $0x48] sm:$0xf]
        %v1346 = vld [vmem:[%s1326 + $0x4c] sm:$0xf]
        %v1347 = vld [vmem:[%s1326 + $0x50] sm:$0xf]
        %v1348 = vld [vmem:[%s1326 + $0x54] sm:$0xf]
        %v1349 = vld [vmem:[%s1326 + $0x58] sm:$0xf]
        %v1350 = vld [vmem:[%s1326 + $0x5c] sm:$0xf]
        %v1351 = vld [vmem:[%s1326 + $0x60] sm:$0xf]
        %v1352 = vld [vmem:[%s1326 + $0x64] sm:$0xf]
        %v1353 = vld [vmem:[%s1326 + $0x68] sm:$0xf]
        %v1354 = vld [vmem:[%s1326 + $0x6c] sm:$0xf]
        %v1355 = vld [vmem:[%s1326 + $0x70] sm:$0xf]
        %v1356 = vld [vmem:[%s1326 + $0x74] sm:$0xf]
        %v1357 = vld [vmem:[%s1326 + $0x78] sm:$0xf]
        %v1358 = vld [vmem:[%s1326 + $0x7c] sm:$0xf]
        %v1364 = vunpack.c.l.b16 %v1321
        %v1365 = vunpack.c.h.b16 %v1321
        %v1366 = vunpack.c.l.b16 %v1322
        %v1367 = vunpack.c.h.b16 %v1322
        %v1368 = vunpack.c.l.b16 %v1323
        %v1369 = vunpack.c.h.b16 %v1323
        %v1370 = vunpack.c.l.b16 %v1324
        %v1371 = vunpack.c.h.b16 %v1324
        %v1372 = vunpack.c.l.b16 %v1325
        %v1373 = vunpack.c.h.b16 %v1325
        %v1374 = vpack.c.b16 %v1366, %v1364
        %v1375 = vpack.c.b16 %v1367, %v1365
        %v1376 = vpack.c.b16 %v1370, %v1368
        %v1377 = vpack.c.b16 %v1371, %v1369
        %v1378 = vpack.c.b16 %v1372, %v1372
        %v1379 = vpack.c.b16 %v1373, %v1373
        %v1381 = vshrl.u32 %v1374, 16
        %v1383 = vshll.u32 %v1374, 16
        %v1385 = vrot.slane %v1383, 1
        %v1386 = vor.u32 %v1381, %v1385
        %v1388 = vshll.u32 %v1376, 16
        %v1390 = vrot.slane %v1388, 1
        %v1391 = vsel %vm713, %v1386, %v1390
        %v1393 = vshrl.u32 %v1375, 16
        %v1395 = vshll.u32 %v1375, 16
        %v1397 = vrot.slane %v1395, 1
        %v1398 = vor.u32 %v1393, %v1397
        %v1400 = vshll.u32 %v1377, 16
        %v1402 = vrot.slane %v1400, 1
        %v1403 = vsel %vm713, %v1398, %v1402
        %v1404 = vshrl.u32 %v1376, 16
        %v1406 = vor.u32 %v1404, %v1390
        %v1408 = vshll.u32 %v1378, 16
        %v1410 = vrot.slane %v1408, 1
        %v1411 = vsel %vm713, %v1406, %v1410
        %v1412 = vshrl.u32 %v1377, 16
        %v1414 = vor.u32 %v1412, %v1402
        %v1416 = vshll.u32 %v1379, 16
        %v1418 = vrot.slane %v1416, 1
        %v1419 = vsel %vm713, %v1414, %v1418
        %v1456 = vunpack.c.l.b16 %v1327
        %v1457 = vunpack.c.l.b16 %v1328
        %v1458 = vunpack.c.l.b16 %v1329
        %v1459 = vunpack.c.l.b16 %v1330
        %v1460 = vunpack.c.l.b16 %v1331
        %v1461 = vunpack.c.l.b16 %v1332
        %v1462 = vunpack.c.l.b16 %v1333
        %v1463 = vunpack.c.l.b16 %v1334
        %v1464 = vunpack.c.l.b16 %v1335
        %v1465 = vunpack.c.l.b16 %v1336
        %v1466 = vunpack.c.l.b16 %v1337
        %v1467 = vunpack.c.l.b16 %v1338
        %v1468 = vunpack.c.l.b16 %v1339
        %v1469 = vunpack.c.l.b16 %v1340
        %v1470 = vunpack.c.l.b16 %v1341
        %v1471 = vunpack.c.l.b16 %v1342
        %v1472 = vunpack.c.l.b16 %v1343
        %v1473 = vunpack.c.l.b16 %v1344
        %v1474 = vunpack.c.l.b16 %v1345
        %v1475 = vunpack.c.l.b16 %v1346
        %v1476 = vunpack.c.l.b16 %v1347
        %v1477 = vunpack.c.l.b16 %v1348
        %v1478 = vunpack.c.l.b16 %v1349
        %v1479 = vunpack.c.l.b16 %v1350
        %v1480 = vunpack.c.l.b16 %v1351
        %v1481 = vunpack.c.l.b16 %v1352
        %v1482 = vunpack.c.l.b16 %v1353
        %v1483 = vunpack.c.l.b16 %v1354
        %v1484 = vunpack.c.l.b16 %v1355
        %v1485 = vunpack.c.l.b16 %v1356
        %v1486 = vunpack.c.l.b16 %v1357
        %v1487 = vunpack.c.l.b16 %v1358
        %v1488 = vpack.c.b16 %v1457, %v1456
        %v1489 = vpack.c.b16 %v1459, %v1458
        %v1490 = vpack.c.b16 %v1461, %v1460
        %v1491 = vpack.c.b16 %v1463, %v1462
        %v1492 = vpack.c.b16 %v1465, %v1464
        %v1493 = vpack.c.b16 %v1467, %v1466
        %v1494 = vpack.c.b16 %v1469, %v1468
        %v1495 = vpack.c.b16 %v1471, %v1470
        %v1496 = vpack.c.b16 %v1473, %v1472
        %v1497 = vpack.c.b16 %v1475, %v1474
        %v1498 = vpack.c.b16 %v1477, %v1476
        %v1499 = vpack.c.b16 %v1479, %v1478
        %v1500 = vpack.c.b16 %v1481, %v1480
        %v1501 = vpack.c.b16 %v1483, %v1482
        %v1502 = vpack.c.b16 %v1485, %v1484
        %v1503 = vpack.c.b16 %v1487, %v1486
        %1520 = vmatprep.subr.bf16.mxu0 0
        %1521 = vmatpush1.bf16.msra.mxu0 %v1495
        %1522 = vmatprep.subr.bf16.mxu0 0
        %1523 = vmatpush1.bf16.msra.mxu0 %v1494
        %1524 = vmatprep.subr.bf16.mxu0 0
        %1525 = vmatpush1.bf16.msra.mxu0 %v1493
        %1526 = vmatprep.subr.bf16.mxu0 0
        %1527 = vmatpush1.bf16.msra.mxu0 %v1492
        %1528 = vmatprep.subr.bf16.mxu0 0
        %1529 = vmatpush1.bf16.msra.mxu0 %v1491
        %1530 = vmatprep.subr.bf16.mxu0 0
        %1531 = vmatpush1.bf16.msra.mxu0 %v1490
        %1532 = vmatprep.subr.bf16.mxu0 0
        %1533 = vmatpush1.bf16.msra.mxu0 %v1489
        %1534 = vmatprep.subr.bf16.mxu0 0
        %1535 = vmatpush1.bf16.msra.mxu0 %v1488
        %1536 = vmatprep.subr.bf16.mxu0 0
        %1537 = vmatpush2.bf16.msra.mxu0 %v1503
        %1538 = vmatprep.subr.bf16.mxu0 0
        %1539 = vmatpush2.bf16.msra.mxu0 %v1502
        %1540 = vmatprep.subr.bf16.mxu0 0
        %1541 = vmatpush2.bf16.msra.mxu0 %v1501
        %1542 = vmatprep.subr.bf16.mxu0 0
        %1543 = vmatpush2.bf16.msra.mxu0 %v1500
        %1544 = vmatprep.subr.bf16.mxu0 0
        %1545 = vmatpush2.bf16.msra.mxu0 %v1499
        %1546 = vmatprep.subr.bf16.mxu0 0
        %1547 = vmatpush2.bf16.msra.mxu0 %v1498
        %1548 = vmatprep.subr.bf16.mxu0 0
        %1549 = vmatpush2.bf16.msra.mxu0 %v1497
        %1550 = vmatprep.subr.bf16.mxu0 0
        %1551 = vmatpush2.bf16.msra.mxu0 %v1496
        %1552 = vmatprep.mubr.bf16.mxu0 %v1403
        %1553 = vmatmul.mubr.bf16.gmra.mxu0 %v1391
        %v1554 = vpop.f32.mrf.mxu0
        %v1555 = vadd.f32 0.0, %v1554
        %v1556 = vpop.f32.mrf.mxu0
        %v1557 = vpop.f32.mrf.mxu0
        %v1558 = vadd.f32 0.0, %v1557
        %v1559 = vpop.f32.mrf.mxu0
        %1560 = vmatprep.mubr.bf16.mxu0 %v1419
        %1561 = vmatmul.mubr.bf16.gmra.mxu0 %v1411
        %v1562 = vpop.f32.mrf.mxu0
        %v1563 = vadd.f32 0.0, %v1562
        %v1564 = vpop.f32.mrf.mxu0
        %v1565 = vpop.f32.mrf.mxu0
        %v1566 = vadd.f32 0.0, %v1565
        %v1567 = vpop.f32.mrf.mxu0
        %1568 = vdwg.mxu0
        %v1569 = vadd.f32 %v1317, %v1555
        %v1570 = vadd.f32 %v1318, %v1558
        %v1571 = vadd.f32 %v1319, %v1563
        %v1572 = vadd.f32 %v1320, %v1566
        %v1573 = vld [vmem:[%s248] sm:$0xcc]
        %v1574 = vld [vmem:[%s248 + $0x20] sm:$0x77]
        %s1575 = scalar_lea.vmem %s1, 768
        %v1576 = vld [vmem:[%s1575] sm:$0xf]
        %v1577 = vld [vmem:[%s1575 + $0x4] sm:$0xf]
        %v1578 = vld [vmem:[%s1575 + $0x8] sm:$0xf]
        %v1579 = vld [vmem:[%s1575 + $0xc] sm:$0xf]
        %v1580 = vld [vmem:[%s1575 + $0x10] sm:$0xf]
        %v1581 = vld [vmem:[%s1575 + $0x14] sm:$0xf]
        %v1582 = vld [vmem:[%s1575 + $0x18] sm:$0xf]
        %v1583 = vld [vmem:[%s1575 + $0x1c] sm:$0xf]
        %v1584 = vld [vmem:[%s1575 + $0x20] sm:$0xf]
        %v1585 = vld [vmem:[%s1575 + $0x24] sm:$0xf]
        %v1586 = vld [vmem:[%s1575 + $0x28] sm:$0xf]
        %v1587 = vld [vmem:[%s1575 + $0x2c] sm:$0xf]
        %v1588 = vld [vmem:[%s1575 + $0x30] sm:$0xf]
        %v1589 = vld [vmem:[%s1575 + $0x34] sm:$0xf]
        %v1590 = vld [vmem:[%s1575 + $0x38] sm:$0xf]
        %v1591 = vld [vmem:[%s1575 + $0x3c] sm:$0xf]
        %v1592 = vld [vmem:[%s1575 + $0x40] sm:$0xf]
        %v1593 = vld [vmem:[%s1575 + $0x44] sm:$0xf]
        %v1594 = vld [vmem:[%s1575 + $0x48] sm:$0xf]
        %v1595 = vld [vmem:[%s1575 + $0x4c] sm:$0xf]
        %v1596 = vld [vmem:[%s1575 + $0x50] sm:$0xf]
        %v1597 = vld [vmem:[%s1575 + $0x54] sm:$0xf]
        %v1598 = vld [vmem:[%s1575 + $0x58] sm:$0xf]
        %v1599 = vld [vmem:[%s1575 + $0x5c] sm:$0xf]
        %v1600 = vld [vmem:[%s1575 + $0x60] sm:$0xf]
        %v1601 = vld [vmem:[%s1575 + $0x64] sm:$0xf]
        %v1602 = vld [vmem:[%s1575 + $0x68] sm:$0xf]
        %v1603 = vld [vmem:[%s1575 + $0x6c] sm:$0xf]
        %v1604 = vld [vmem:[%s1575 + $0x70] sm:$0xf]
        %v1605 = vld [vmem:[%s1575 + $0x74] sm:$0xf]
        %v1606 = vld [vmem:[%s1575 + $0x78] sm:$0xf]
        %v1607 = vld [vmem:[%s1575 + $0x7c] sm:$0xf]
        %v1610 = vunpack.c.l.b16 %v1573
        %v1611 = vunpack.c.h.b16 %v1573
        %v1612 = vunpack.c.l.b16 %v1574
        %v1613 = vunpack.c.h.b16 %v1574
        %v1614 = vpack.c.b16 %v699, %v1610
        %v1615 = vpack.c.b16 %v700, %v1611
        %v1616 = vpack.c.b16 %v1612, %v1612
        %v1617 = vpack.c.b16 %v1613, %v1613
        %vm1618 = vsmask.f32 5376
        %v1620 = vshrl.u32 %v1614, 16
        %v1622 = vrot.slane %v1620, 2
        %v1623 = vshll.u32 %v1614, 16
        %v1625 = vrot.slane %v1623, 3
        %v1626 = vor.u32 %v1622, %v1625
        %v1627 = vrot.slane %v738, 2
        %v1628 = vrot.slane %v722, 3
        %v1629 = vor.u32 %v1627, %v1628
        %v1630 = vsel %vm1618, %v1626, %v1629
        %v1632 = vshrl.u32 %v1615, 16
        %v1634 = vrot.slane %v1632, 2
        %v1635 = vshll.u32 %v1615, 16
        %v1637 = vrot.slane %v1635, 3
        %v1638 = vor.u32 %v1634, %v1637
        %v1639 = vrot.slane %v746, 2
        %v1640 = vrot.slane %v734, 3
        %v1641 = vor.u32 %v1639, %v1640
        %v1642 = vsel %vm1618, %v1638, %v1641
        %v1644 = vshrl.u32 %v1616, 16
        %v1646 = vrot.slane %v1644, 2
        %v1647 = vshll.u32 %v1616, 16
        %v1649 = vrot.slane %v1647, 3
        %v1650 = vor.u32 %v1646, %v1649
        %v1651 = vsel %vm1618, %v1629, %v1650
        %v1653 = vshrl.u32 %v1617, 16
        %v1655 = vrot.slane %v1653, 2
        %v1656 = vshll.u32 %v1617, 16
        %v1658 = vrot.slane %v1656, 3
        %v1659 = vor.u32 %v1655, %v1658
        %v1660 = vsel %vm1618, %v1641, %v1659
        %v1697 = vunpack.c.l.b16 %v1576
        %v1698 = vunpack.c.l.b16 %v1577
        %v1699 = vunpack.c.l.b16 %v1578
        %v1700 = vunpack.c.l.b16 %v1579
        %v1701 = vunpack.c.l.b16 %v1580
        %v1702 = vunpack.c.l.b16 %v1581
        %v1703 = vunpack.c.l.b16 %v1582
        %v1704 = vunpack.c.l.b16 %v1583
        %v1705 = vunpack.c.l.b16 %v1584
        %v1706 = vunpack.c.l.b16 %v1585
        %v1707 = vunpack.c.l.b16 %v1586
        %v1708 = vunpack.c.l.b16 %v1587
        %v1709 = vunpack.c.l.b16 %v1588
        %v1710 = vunpack.c.l.b16 %v1589
        %v1711 = vunpack.c.l.b16 %v1590
        %v1712 = vunpack.c.l.b16 %v1591
        %v1713 = vunpack.c.l.b16 %v1592
        %v1714 = vunpack.c.l.b16 %v1593
        %v1715 = vunpack.c.l.b16 %v1594
        %v1716 = vunpack.c.l.b16 %v1595
        %v1717 = vunpack.c.l.b16 %v1596
        %v1718 = vunpack.c.l.b16 %v1597
        %v1719 = vunpack.c.l.b16 %v1598
        %v1720 = vunpack.c.l.b16 %v1599
        %v1721 = vunpack.c.l.b16 %v1600
        %v1722 = vunpack.c.l.b16 %v1601
        %v1723 = vunpack.c.l.b16 %v1602
        %v1724 = vunpack.c.l.b16 %v1603
        %v1725 = vunpack.c.l.b16 %v1604
        %v1726 = vunpack.c.l.b16 %v1605
        %v1727 = vunpack.c.l.b16 %v1606
        %v1728 = vunpack.c.l.b16 %v1607
        %v1729 = vpack.c.b16 %v1698, %v1697
        %v1730 = vpack.c.b16 %v1700, %v1699
        %v1731 = vpack.c.b16 %v1702, %v1701
        %v1732 = vpack.c.b16 %v1704, %v1703
        %v1733 = vpack.c.b16 %v1706, %v1705
        %v1734 = vpack.c.b16 %v1708, %v1707
        %v1735 = vpack.c.b16 %v1710, %v1709
        %v1736 = vpack.c.b16 %v1712, %v1711
        %v1737 = vpack.c.b16 %v1714, %v1713
        %v1738 = vpack.c.b16 %v1716, %v1715
        %v1739 = vpack.c.b16 %v1718, %v1717
        %v1740 = vpack.c.b16 %v1720, %v1719
        %v1741 = vpack.c.b16 %v1722, %v1721
        %v1742 = vpack.c.b16 %v1724, %v1723
        %v1743 = vpack.c.b16 %v1726, %v1725
        %v1744 = vpack.c.b16 %v1728, %v1727
        %1761 = vmatprep.subr.bf16.mxu0 0
        %1762 = vmatpush1.bf16.msra.mxu0 %v1736
        %1763 = vmatprep.subr.bf16.mxu0 0
        %1764 = vmatpush1.bf16.msra.mxu0 %v1735
        %1765 = vmatprep.subr.bf16.mxu0 0
        %1766 = vmatpush1.bf16.msra.mxu0 %v1734
        %1767 = vmatprep.subr.bf16.mxu0 0
        %1768 = vmatpush1.bf16.msra.mxu0 %v1733
        %1769 = vmatprep.subr.bf16.mxu0 0
        %1770 = vmatpush1.bf16.msra.mxu0 %v1732
        %1771 = vmatprep.subr.bf16.mxu0 0
        %1772 = vmatpush1.bf16.msra.mxu0 %v1731
        %1773 = vmatprep.subr.bf16.mxu0 0
        %1774 = vmatpush1.bf16.msra.mxu0 %v1730
        %1775 = vmatprep.subr.bf16.mxu0 0
        %1776 = vmatpush1.bf16.msra.mxu0 %v1729
        %1777 = vmatprep.subr.bf16.mxu0 0
        %1778 = vmatpush2.bf16.msra.mxu0 %v1744
        %1779 = vmatprep.subr.bf16.mxu0 0
        %1780 = vmatpush2.bf16.msra.mxu0 %v1743
        %1781 = vmatprep.subr.bf16.mxu0 0
        %1782 = vmatpush2.bf16.msra.mxu0 %v1742
        %1783 = vmatprep.subr.bf16.mxu0 0
        %1784 = vmatpush2.bf16.msra.mxu0 %v1741
        %1785 = vmatprep.subr.bf16.mxu0 0
        %1786 = vmatpush2.bf16.msra.mxu0 %v1740
        %1787 = vmatprep.subr.bf16.mxu0 0
        %1788 = vmatpush2.bf16.msra.mxu0 %v1739
        %1789 = vmatprep.subr.bf16.mxu0 0
        %1790 = vmatpush2.bf16.msra.mxu0 %v1738
        %1791 = vmatprep.subr.bf16.mxu0 0
        %1792 = vmatpush2.bf16.msra.mxu0 %v1737
        %1793 = vmatprep.mubr.bf16.mxu0 %v1642
        %1794 = vmatmul.mubr.bf16.gmra.mxu0 %v1630
        %v1795 = vpop.f32.mrf.mxu0
        %v1796 = vadd.f32 0.0, %v1795
        %v1797 = vpop.f32.mrf.mxu0
        %v1798 = vpop.f32.mrf.mxu0
        %v1799 = vadd.f32 0.0, %v1798
        %v1800 = vpop.f32.mrf.mxu0
        %1801 = vmatprep.mubr.bf16.mxu0 %v1660
        %1802 = vmatmul.mubr.bf16.gmra.mxu0 %v1651
        %v1803 = vpop.f32.mrf.mxu0
        %v1804 = vadd.f32 0.0, %v1803
        %v1805 = vpop.f32.mrf.mxu0
        %v1806 = vpop.f32.mrf.mxu0
        %v1807 = vadd.f32 0.0, %v1806
        %v1808 = vpop.f32.mrf.mxu0
        %1809 = vdwg.mxu0
        %v1810 = vadd.f32 %v1569, %v1796
        %v1811 = vadd.f32 %v1570, %v1799
        %v1812 = vadd.f32 %v1571, %v1804
        %v1813 = vadd.f32 %v1572, %v1807
        %v1814 = vld [vmem:[%s286] sm:$0xcc]
        %v1815 = vld [vmem:[%s286 + $0x8] sm:$0xff]
        %v1816 = vld [vmem:[%s286 + $0x10] sm:$0xff]
        %v1817 = vld [vmem:[%s286 + $0x18] sm:$0xff]
        %v1818 = vld [vmem:[%s286 + $0x20] sm:$0x77]
        %s1819 = scalar_lea.vmem %s1, 896
        %v1820 = vld [vmem:[%s1819] sm:$0xf]
        %v1821 = vld [vmem:[%s1819 + $0x4] sm:$0xf]
        %v1822 = vld [vmem:[%s1819 + $0x8] sm:$0xf]
        %v1823 = vld [vmem:[%s1819 + $0xc] sm:$0xf]
        %v1824 = vld [vmem:[%s1819 + $0x10] sm:$0xf]
        %v1825 = vld [vmem:[%s1819 + $0x14] sm:$0xf]
        %v1826 = vld [vmem:[%s1819 + $0x18] sm:$0xf]
        %v1827 = vld [vmem:[%s1819 + $0x1c] sm:$0xf]
        %v1828 = vld [vmem:[%s1819 + $0x20] sm:$0xf]
        %v1829 = vld [vmem:[%s1819 + $0x24] sm:$0xf]
        %v1830 = vld [vmem:[%s1819 + $0x28] sm:$0xf]
        %v1831 = vld [vmem:[%s1819 + $0x2c] sm:$0xf]
        %v1832 = vld [vmem:[%s1819 + $0x30] sm:$0xf]
        %v1833 = vld [vmem:[%s1819 + $0x34] sm:$0xf]
        %v1834 = vld [vmem:[%s1819 + $0x38] sm:$0xf]
        %v1835 = vld [vmem:[%s1819 + $0x3c] sm:$0xf]
        %v1836 = vld [vmem:[%s1819 + $0x40] sm:$0xf]
        %v1837 = vld [vmem:[%s1819 + $0x44] sm:$0xf]
        %v1838 = vld [vmem:[%s1819 + $0x48] sm:$0xf]
        %v1839 = vld [vmem:[%s1819 + $0x4c] sm:$0xf]
        %v1840 = vld [vmem:[%s1819 + $0x50] sm:$0xf]
        %v1841 = vld [vmem:[%s1819 + $0x54] sm:$0xf]
        %v1842 = vld [vmem:[%s1819 + $0x58] sm:$0xf]
        %v1843 = vld [vmem:[%s1819 + $0x5c] sm:$0xf]
        %v1844 = vld [vmem:[%s1819 + $0x60] sm:$0xf]
        %v1845 = vld [vmem:[%s1819 + $0x64] sm:$0xf]
        %v1846 = vld [vmem:[%s1819 + $0x68] sm:$0xf]
        %v1847 = vld [vmem:[%s1819 + $0x6c] sm:$0xf]
        %v1848 = vld [vmem:[%s1819 + $0x70] sm:$0xf]
        %v1849 = vld [vmem:[%s1819 + $0x74] sm:$0xf]
        %v1850 = vld [vmem:[%s1819 + $0x78] sm:$0xf]
        %v1851 = vld [vmem:[%s1819 + $0x7c] sm:$0xf]
        %v1857 = vunpack.c.l.b16 %v1814
        %v1858 = vunpack.c.h.b16 %v1814
        %v1859 = vunpack.c.l.b16 %v1815
        %v1860 = vunpack.c.h.b16 %v1815
        %v1861 = vunpack.c.l.b16 %v1816
        %v1862 = vunpack.c.h.b16 %v1816
        %v1863 = vunpack.c.l.b16 %v1817
        %v1864 = vunpack.c.h.b16 %v1817
        %v1865 = vunpack.c.l.b16 %v1818
        %v1866 = vunpack.c.h.b16 %v1818
        %v1867 = vpack.c.b16 %v1859, %v1857
        %v1868 = vpack.c.b16 %v1860, %v1858
        %v1869 = vpack.c.b16 %v1863, %v1861
        %v1870 = vpack.c.b16 %v1864, %v1862
        %v1871 = vpack.c.b16 %v1865, %v1865
        %v1872 = vpack.c.b16 %v1866, %v1866
        %v1874 = vshrl.u32 %v1867, 16
        %v1876 = vrot.slane %v1874, 2
        %v1877 = vshll.u32 %v1867, 16
        %v1879 = vrot.slane %v1877, 3
        %v1880 = vor.u32 %v1876, %v1879
        %v1882 = vshrl.u32 %v1869, 16
        %v1884 = vrot.slane %v1882, 2
        %v1885 = vshll.u32 %v1869, 16
        %v1887 = vrot.slane %v1885, 3
        %v1888 = vor.u32 %v1884, %v1887
        %v1889 = vsel %vm1618, %v1880, %v1888
        %v1891 = vshrl.u32 %v1868, 16
        %v1893 = vrot.slane %v1891, 2
        %v1894 = vshll.u32 %v1868, 16
        %v1896 = vrot.slane %v1894, 3
        %v1897 = vor.u32 %v1893, %v1896
        %v1899 = vshrl.u32 %v1870, 16
        %v1901 = vrot.slane %v1899, 2
        %v1902 = vshll.u32 %v1870, 16
        %v1904 = vrot.slane %v1902, 3
        %v1905 = vor.u32 %v1901, %v1904
        %v1906 = vsel %vm1618, %v1897, %v1905
        %v1908 = vshrl.u32 %v1871, 16
        %v1910 = vrot.slane %v1908, 2
        %v1911 = vshll.u32 %v1871, 16
        %v1913 = vrot.slane %v1911, 3
        %v1914 = vor.u32 %v1910, %v1913
        %v1915 = vsel %vm1618, %v1888, %v1914
        %v1917 = vshrl.u32 %v1872, 16
        %v1919 = vrot.slane %v1917, 2
        %v1920 = vshll.u32 %v1872, 16
        %v1922 = vrot.slane %v1920, 3
        %v1923 = vor.u32 %v1919, %v1922
        %v1924 = vsel %vm1618, %v1905, %v1923
        %v1961 = vunpack.c.l.b16 %v1820
        %v1962 = vunpack.c.l.b16 %v1821
        %v1963 = vunpack.c.l.b16 %v1822
        %v1964 = vunpack.c.l.b16 %v1823
        %v1965 = vunpack.c.l.b16 %v1824
        %v1966 = vunpack.c.l.b16 %v1825
        %v1967 = vunpack.c.l.b16 %v1826
        %v1968 = vunpack.c.l.b16 %v1827
        %v1969 = vunpack.c.l.b16 %v1828
        %v1970 = vunpack.c.l.b16 %v1829
        %v1971 = vunpack.c.l.b16 %v1830
        %v1972 = vunpack.c.l.b16 %v1831
        %v1973 = vunpack.c.l.b16 %v1832
        %v1974 = vunpack.c.l.b16 %v1833
        %v1975 = vunpack.c.l.b16 %v1834
        %v1976 = vunpack.c.l.b16 %v1835
        %v1977 = vunpack.c.l.b16 %v1836
        %v1978 = vunpack.c.l.b16 %v1837
        %v1979 = vunpack.c.l.b16 %v1838
        %v1980 = vunpack.c.l.b16 %v1839
        %v1981 = vunpack.c.l.b16 %v1840
        %v1982 = vunpack.c.l.b16 %v1841
        %v1983 = vunpack.c.l.b16 %v1842
        %v1984 = vunpack.c.l.b16 %v1843
        %v1985 = vunpack.c.l.b16 %v1844
        %v1986 = vunpack.c.l.b16 %v1845
        %v1987 = vunpack.c.l.b16 %v1846
        %v1988 = vunpack.c.l.b16 %v1847
        %v1989 = vunpack.c.l.b16 %v1848
        %v1990 = vunpack.c.l.b16 %v1849
        %v1991 = vunpack.c.l.b16 %v1850
        %v1992 = vunpack.c.l.b16 %v1851
        %v1993 = vpack.c.b16 %v1962, %v1961
        %v1994 = vpack.c.b16 %v1964, %v1963
        %v1995 = vpack.c.b16 %v1966, %v1965
        %v1996 = vpack.c.b16 %v1968, %v1967
        %v1997 = vpack.c.b16 %v1970, %v1969
        %v1998 = vpack.c.b16 %v1972, %v1971
        %v1999 = vpack.c.b16 %v1974, %v1973
        %v2000 = vpack.c.b16 %v1976, %v1975
        %v2001 = vpack.c.b16 %v1978, %v1977
        %v2002 = vpack.c.b16 %v1980, %v1979
        %v2003 = vpack.c.b16 %v1982, %v1981
        %v2004 = vpack.c.b16 %v1984, %v1983
        %v2005 = vpack.c.b16 %v1986, %v1985
        %v2006 = vpack.c.b16 %v1988, %v1987
        %v2007 = vpack.c.b16 %v1990, %v1989
        %v2008 = vpack.c.b16 %v1992, %v1991
        %2025 = vmatprep.subr.bf16.mxu0 0
        %2026 = vmatpush1.bf16.msra.mxu0 %v2000
        %2027 = vmatprep.subr.bf16.mxu0 0
        %2028 = vmatpush1.bf16.msra.mxu0 %v1999
        %2029 = vmatprep.subr.bf16.mxu0 0
        %2030 = vmatpush1.bf16.msra.mxu0 %v1998
        %2031 = vmatprep.subr.bf16.mxu0 0
        %2032 = vmatpush1.bf16.msra.mxu0 %v1997
        %2033 = vmatprep.subr.bf16.mxu0 0
        %2034 = vmatpush1.bf16.msra.mxu0 %v1996
        %2035 = vmatprep.subr.bf16.mxu0 0
        %2036 = vmatpush1.bf16.msra.mxu0 %v1995
        %2037 = vmatprep.subr.bf16.mxu0 0
        %2038 = vmatpush1.bf16.msra.mxu0 %v1994
        %2039 = vmatprep.subr.bf16.mxu0 0
        %2040 = vmatpush1.bf16.msra.mxu0 %v1993
        %2041 = vmatprep.subr.bf16.mxu0 0
        %2042 = vmatpush2.bf16.msra.mxu0 %v2008
        %2043 = vmatprep.subr.bf16.mxu0 0
        %2044 = vmatpush2.bf16.msra.mxu0 %v2007
        %2045 = vmatprep.subr.bf16.mxu0 0
        %2046 = vmatpush2.bf16.msra.mxu0 %v2006
        %2047 = vmatprep.subr.bf16.mxu0 0
        %2048 = vmatpush2.bf16.msra.mxu0 %v2005
        %2049 = vmatprep.subr.bf16.mxu0 0
        %2050 = vmatpush2.bf16.msra.mxu0 %v2004
        %2051 = vmatprep.subr.bf16.mxu0 0
        %2052 = vmatpush2.bf16.msra.mxu0 %v2003
        %2053 = vmatprep.subr.bf16.mxu0 0
        %2054 = vmatpush2.bf16.msra.mxu0 %v2002
        %2055 = vmatprep.subr.bf16.mxu0 0
        %2056 = vmatpush2.bf16.msra.mxu0 %v2001
        %2057 = vmatprep.mubr.bf16.mxu0 %v1906
        %2058 = vmatmul.mubr.bf16.gmra.mxu0 %v1889
        %v2059 = vpop.f32.mrf.mxu0
        %v2060 = vadd.f32 0.0, %v2059
        %v2061 = vpop.f32.mrf.mxu0
        %v2062 = vpop.f32.mrf.mxu0
        %v2063 = vadd.f32 0.0, %v2062
        %v2064 = vpop.f32.mrf.mxu0
        %2065 = vmatprep.mubr.bf16.mxu0 %v1924
        %2066 = vmatmul.mubr.bf16.gmra.mxu0 %v1915
        %v2067 = vpop.f32.mrf.mxu0
        %v2068 = vadd.f32 0.0, %v2067
        %v2069 = vpop.f32.mrf.mxu0
        %v2070 = vpop.f32.mrf.mxu0
        %v2071 = vadd.f32 0.0, %v2070
        %v2072 = vpop.f32.mrf.mxu0
        %2073 = vdwg.mxu0
        %v2074 = vadd.f32 %v1810, %v2060
        %v2075 = vadd.f32 %v1811, %v2063
        %v2076 = vadd.f32 %v1812, %v2068
        %v2077 = vadd.f32 %v1813, %v2071
        %v2078 = vld [vmem:[%s248] sm:$0x88]
        %s2079 = scalar_lea.vmem %s1, 1024
        %v2080 = vld [vmem:[%s2079] sm:$0xf]
        %v2081 = vld [vmem:[%s2079 + $0x4] sm:$0xf]
        %v2082 = vld [vmem:[%s2079 + $0x8] sm:$0xf]
        %v2083 = vld [vmem:[%s2079 + $0xc] sm:$0xf]
        %v2084 = vld [vmem:[%s2079 + $0x10] sm:$0xf]
        %v2085 = vld [vmem:[%s2079 + $0x14] sm:$0xf]
        %v2086 = vld [vmem:[%s2079 + $0x18] sm:$0xf]
        %v2087 = vld [vmem:[%s2079 + $0x1c] sm:$0xf]
        %v2088 = vld [vmem:[%s2079 + $0x20] sm:$0xf]
        %v2089 = vld [vmem:[%s2079 + $0x24] sm:$0xf]
        %v2090 = vld [vmem:[%s2079 + $0x28] sm:$0xf]
        %v2091 = vld [vmem:[%s2079 + $0x2c] sm:$0xf]
        %v2092 = vld [vmem:[%s2079 + $0x30] sm:$0xf]
        %v2093 = vld [vmem:[%s2079 + $0x34] sm:$0xf]
        %v2094 = vld [vmem:[%s2079 + $0x38] sm:$0xf]
        %v2095 = vld [vmem:[%s2079 + $0x3c] sm:$0xf]
        %v2096 = vld [vmem:[%s2079 + $0x40] sm:$0xf]
        %v2097 = vld [vmem:[%s2079 + $0x44] sm:$0xf]
        %v2098 = vld [vmem:[%s2079 + $0x48] sm:$0xf]
        %v2099 = vld [vmem:[%s2079 + $0x4c] sm:$0xf]
        %v2100 = vld [vmem:[%s2079 + $0x50] sm:$0xf]
        %v2101 = vld [vmem:[%s2079 + $0x54] sm:$0xf]
        %v2102 = vld [vmem:[%s2079 + $0x58] sm:$0xf]
        %v2103 = vld [vmem:[%s2079 + $0x5c] sm:$0xf]
        %v2104 = vld [vmem:[%s2079 + $0x60] sm:$0xf]
        %v2105 = vld [vmem:[%s2079 + $0x64] sm:$0xf]
        %v2106 = vld [vmem:[%s2079 + $0x68] sm:$0xf]
        %v2107 = vld [vmem:[%s2079 + $0x6c] sm:$0xf]
        %v2108 = vld [vmem:[%s2079 + $0x70] sm:$0xf]
        %v2109 = vld [vmem:[%s2079 + $0x74] sm:$0xf]
        %v2110 = vld [vmem:[%s2079 + $0x78] sm:$0xf]
        %v2111 = vld [vmem:[%s2079 + $0x7c] sm:$0xf]
        %v2113 = vunpack.c.l.b16 %v2078
        %v2114 = vunpack.c.h.b16 %v2078
        %v2115 = vpack.c.b16 %v699, %v2113
        %v2116 = vpack.c.b16 %v700, %v2114
        %vm2117 = vcmask 1044480
        %v2118 = vrot.slane %v2115, 3
        %v2119 = vrot.slane %v709, 3
        %v2120 = vsel %vm2117, %v2118, %v2119
        %v2121 = vrot.slane %v2116, 3
        %v2122 = vrot.slane %v710, 3
        %v2123 = vsel %vm2117, %v2121, %v2122
        %v2124 = vrot.slane %v1616, 3
        %v2125 = vsel %vm2117, %v2119, %v2124
        %v2126 = vrot.slane %v1617, 3
        %v2127 = vsel %vm2117, %v2122, %v2126
        %v2164 = vunpack.c.l.b16 %v2080
        %v2165 = vunpack.c.l.b16 %v2081
        %v2166 = vunpack.c.l.b16 %v2082
        %v2167 = vunpack.c.l.b16 %v2083
        %v2168 = vunpack.c.l.b16 %v2084
        %v2169 = vunpack.c.l.b16 %v2085
        %v2170 = vunpack.c.l.b16 %v2086
        %v2171 = vunpack.c.l.b16 %v2087
        %v2172 = vunpack.c.l.b16 %v2088
        %v2173 = vunpack.c.l.b16 %v2089
        %v2174 = vunpack.c.l.b16 %v2090
        %v2175 = vunpack.c.l.b16 %v2091
        %v2176 = vunpack.c.l.b16 %v2092
        %v2177 = vunpack.c.l.b16 %v2093
        %v2178 = vunpack.c.l.b16 %v2094
        %v2179 = vunpack.c.l.b16 %v2095
        %v2180 = vunpack.c.l.b16 %v2096
        %v2181 = vunpack.c.l.b16 %v2097
        %v2182 = vunpack.c.l.b16 %v2098
        %v2183 = vunpack.c.l.b16 %v2099
        %v2184 = vunpack.c.l.b16 %v2100
        %v2185 = vunpack.c.l.b16 %v2101
        %v2186 = vunpack.c.l.b16 %v2102
        %v2187 = vunpack.c.l.b16 %v2103
        %v2188 = vunpack.c.l.b16 %v2104
        %v2189 = vunpack.c.l.b16 %v2105
        %v2190 = vunpack.c.l.b16 %v2106
        %v2191 = vunpack.c.l.b16 %v2107
        %v2192 = vunpack.c.l.b16 %v2108
        %v2193 = vunpack.c.l.b16 %v2109
        %v2194 = vunpack.c.l.b16 %v2110
        %v2195 = vunpack.c.l.b16 %v2111
        %v2196 = vpack.c.b16 %v2165, %v2164
        %v2197 = vpack.c.b16 %v2167, %v2166
        %v2198 = vpack.c.b16 %v2169, %v2168
        %v2199 = vpack.c.b16 %v2171, %v2170
        %v2200 = vpack.c.b16 %v2173, %v2172
        %v2201 = vpack.c.b16 %v2175, %v2174
        %v2202 = vpack.c.b16 %v2177, %v2176
        %v2203 = vpack.c.b16 %v2179, %v2178
        %v2204 = vpack.c.b16 %v2181, %v2180
        %v2205 = vpack.c.b16 %v2183, %v2182
        %v2206 = vpack.c.b16 %v2185, %v2184
        %v2207 = vpack.c.b16 %v2187, %v2186
        %v2208 = vpack.c.b16 %v2189, %v2188
        %v2209 = vpack.c.b16 %v2191, %v2190
        %v2210 = vpack.c.b16 %v2193, %v2192
        %v2211 = vpack.c.b16 %v2195, %v2194
        %2228 = vmatprep.subr.bf16.mxu0 0
        %2229 = vmatpush1.bf16.msra.mxu0 %v2203
        %2230 = vmatprep.subr.bf16.mxu0 0
        %2231 = vmatpush1.bf16.msra.mxu0 %v2202
        %2232 = vmatprep.subr.bf16.mxu0 0
        %2233 = vmatpush1.bf16.msra.mxu0 %v2201
        %2234 = vmatprep.subr.bf16.mxu0 0
        %2235 = vmatpush1.bf16.msra.mxu0 %v2200
        %2236 = vmatprep.subr.bf16.mxu0 0
        %2237 = vmatpush1.bf16.msra.mxu0 %v2199
        %2238 = vmatprep.subr.bf16.mxu0 0
        %2239 = vmatpush1.bf16.msra.mxu0 %v2198
        %2240 = vmatprep.subr.bf16.mxu0 0
        %2241 = vmatpush1.bf16.msra.mxu0 %v2197
        %2242 = vmatprep.subr.bf16.mxu0 0
        %2243 = vmatpush1.bf16.msra.mxu0 %v2196
        %2244 = vmatprep.subr.bf16.mxu0 0
        %2245 = vmatpush2.bf16.msra.mxu0 %v2211
        %2246 = vmatprep.subr.bf16.mxu0 0
        %2247 = vmatpush2.bf16.msra.mxu0 %v2210
        %2248 = vmatprep.subr.bf16.mxu0 0
        %2249 = vmatpush2.bf16.msra.mxu0 %v2209
        %2250 = vmatprep.subr.bf16.mxu0 0
        %2251 = vmatpush2.bf16.msra.mxu0 %v2208
        %2252 = vmatprep.subr.bf16.mxu0 0
        %2253 = vmatpush2.bf16.msra.mxu0 %v2207
        %2254 = vmatprep.subr.bf16.mxu0 0
        %2255 = vmatpush2.bf16.msra.mxu0 %v2206
        %2256 = vmatprep.subr.bf16.mxu0 0
        %2257 = vmatpush2.bf16.msra.mxu0 %v2205
        %2258 = vmatprep.subr.bf16.mxu0 0
        %2259 = vmatpush2.bf16.msra.mxu0 %v2204
        %2260 = vmatprep.mubr.bf16.mxu0 %v2123
        %2261 = vmatmul.mubr.bf16.gmra.mxu0 %v2120
        %v2262 = vpop.f32.mrf.mxu0
        %v2263 = vadd.f32 0.0, %v2262
        %v2264 = vpop.f32.mrf.mxu0
        %v2265 = vpop.f32.mrf.mxu0
        %v2266 = vadd.f32 0.0, %v2265
        %v2267 = vpop.f32.mrf.mxu0
        %2268 = vmatprep.mubr.bf16.mxu0 %v2127
        %2269 = vmatmul.mubr.bf16.gmra.mxu0 %v2125
        %v2270 = vpop.f32.mrf.mxu0
        %v2271 = vadd.f32 0.0, %v2270
        %v2272 = vpop.f32.mrf.mxu0
        %v2273 = vpop.f32.mrf.mxu0
        %v2274 = vadd.f32 0.0, %v2273
        %v2275 = vpop.f32.mrf.mxu0
        %2276 = vdwg.mxu0
        %v2277 = vadd.f32 %v2074, %v2263
        %v2278 = vadd.f32 %v2075, %v2266
        %v2279 = vadd.f32 %v2076, %v2271
        %v2280 = vadd.f32 %v2077, %v2274
        %v2281 = vld [vmem:[%s2] sm:$0x1]
        %v2283 = vlaneseq
        %v2284 = vshrl.u32 %v2283, 7
        %v2285 = vsub.s32 0, %v2284
        %v2286 = vrot.slane %v2281, %v2285
        %v2288 = vadd.f32 %v2277, %v2286
        %v2289 = vadd.f32 %v2278, %v2286
        %v2290 = vadd.f32 %v2279, %v2286
        %v2291 = vadd.f32 %v2280, %v2286
        %v2292 = vmax.f32 %v2288, 0.0
        %v2293 = vmax.f32 %v2289, 0.0
        %v2294 = vmax.f32 %v2290, 0.0
        %v2295 = vmax.f32 %v2291, 0.0
        %v2296 = vld [vmem:[%s3] sm:$0xff]
        %v2297 = vld [vmem:[%s3 + $0x8] sm:$0xff]
        %v2298 = vld [vmem:[%s3 + $0x10] sm:$0xff]
        %v2299 = vld [vmem:[%s3 + $0x18] sm:$0xff]
        %2301 = vset.pattern.permute.xlu0 0
        %2302 = vperm.xlu0 %2301, %v2296
        %v2303 = vpop.permute.xlu0 %2302
        %2306 = vset.pattern.permute.xlu0 0
        %2307 = vperm.xlu0 %2306, %v2297
        %v2308 = vpop.permute.xlu0 %2307
        %2311 = vset.pattern.permute.xlu0 0
        %2312 = vperm.xlu0 %2311, %v2298
        %v2313 = vpop.permute.xlu0 %2312
        %2316 = vset.pattern.permute.xlu0 0
        %2317 = vperm.xlu0 %2316, %v2299
        %v2318 = vpop.permute.xlu0 %2317
        %v2320 = vmul.f32 %v2292, %v2303
        %v2321 = vmul.f32 %v2293, %v2308
        %v2322 = vmul.f32 %v2294, %v2313
        %v2323 = vmul.f32 %v2295, %v2318
        %v2324 = vadd.f32 %v2320, %v2321
        %v2325 = vadd.f32 %v2324, %v2322
        %v2326 = vadd.f32 %v2325, %v2323
        %v2327 = vrot.slane %v2326, 4
        %v2328 = vadd.f32 %v2326, %v2327
        %v2329 = vrot.slane %v2328, 2
        %v2330 = vadd.f32 %v2328, %v2329
        %v2331 = vrot.slane %v2330, 1
        %v2332 = vadd.f32 %v2330, %v2331
        %v2333 = vld [vmem:[%s4] sm:$0xff]
        %v2334 = vld [vmem:[%s4 + $0x8] sm:$0xff]
        %v2335 = vld [vmem:[%s4 + $0x10] sm:$0xff]
        %v2336 = vld [vmem:[%s4 + $0x18] sm:$0xff]
        %v2337 = vld [vmem:[%s4 + $0x20] sm:$0xff]
        %v2338 = vld [vmem:[%s4 + $0x28] sm:$0xff]
        %v2339 = vld [vmem:[%s4 + $0x30] sm:$0xff]
        %v2340 = vld [vmem:[%s4 + $0x38] sm:$0xff]
        %v2341 = vld [vmem:[%s4 + $0x40] sm:$0xff]
        %v2342 = vld [vmem:[%s4 + $0x48] sm:$0xff]
        %v2343 = vld [vmem:[%s4 + $0x50] sm:$0xff]
        %v2344 = vld [vmem:[%s4 + $0x58] sm:$0xff]
        %v2345 = vld [vmem:[%s4 + $0x60] sm:$0xff]
        %v2346 = vld [vmem:[%s4 + $0x68] sm:$0xff]
        %v2347 = vld [vmem:[%s4 + $0x70] sm:$0xff]
        %v2348 = vld [vmem:[%s4 + $0x78] sm:$0xff]
        %v2349 = vld [vmem:[%s5] sm:$0x1]
        %2350 = vmatprep.subr.mxu0 0.0
        %2351 = vmatpush1.msra.mxu0 %v2348
        %2352 = vmatprep.subr.mxu0 0.0
        %2353 = vmatpush1.msra.mxu0 %v2347
        %2354 = vmatprep.subr.mxu0 0.0
        %2355 = vmatpush1.msra.mxu0 %v2346
        %2356 = vmatprep.subr.mxu0 0.0
        %2357 = vmatpush1.msra.mxu0 %v2345
        %2358 = vmatprep.subr.mxu0 0.0
        %2359 = vmatpush1.msra.mxu0 %v2344
        %2360 = vmatprep.subr.mxu0 0.0
        %2361 = vmatpush1.msra.mxu0 %v2343
        %2362 = vmatprep.subr.mxu0 0.0
        %2363 = vmatpush1.msra.mxu0 %v2342
        %2364 = vmatprep.subr.mxu0 0.0
        %2365 = vmatpush1.msra.mxu0 %v2341
        %2366 = vmatprep.subr.mxu0 0.0
        %2367 = vmatpush1.msra.mxu0 %v2340
        %2368 = vmatprep.subr.mxu0 0.0
        %2369 = vmatpush1.msra.mxu0 %v2339
        %2370 = vmatprep.subr.mxu0 0.0
        %2371 = vmatpush1.msra.mxu0 %v2338
        %2372 = vmatprep.subr.mxu0 0.0
        %2373 = vmatpush1.msra.mxu0 %v2337
        %2374 = vmatprep.subr.mxu0 0.0
        %2375 = vmatpush1.msra.mxu0 %v2336
        %2376 = vmatprep.subr.mxu0 0.0
        %2377 = vmatpush1.msra.mxu0 %v2335
        %2378 = vmatprep.subr.mxu0 0.0
        %2379 = vmatpush1.msra.mxu0 %v2334
        %2380 = vmatprep.subr.mxu0 0.0
        %2381 = vmatpush1.msra.mxu0 %v2333
        %2382 = vmatprep.subr.mxu0 0.0
        %2383 = vmatpush2.msra.mxu0 0.0
        %2384 = vmatprep.subr.mxu0 0.0
        %2385 = vmatpush2.msra.mxu0 0.0
        %2386 = vmatprep.subr.mxu0 0.0
        %2387 = vmatpush2.msra.mxu0 0.0
        %2388 = vmatprep.subr.mxu0 0.0
        %2389 = vmatpush2.msra.mxu0 0.0
        %2390 = vmatprep.subr.mxu0 0.0
        %2391 = vmatpush2.msra.mxu0 0.0
        %2392 = vmatprep.subr.mxu0 0.0
        %2393 = vmatpush2.msra.mxu0 0.0
        %2394 = vmatprep.subr.mxu0 0.0
        %2395 = vmatpush2.msra.mxu0 0.0
        %2396 = vmatprep.subr.mxu0 0.0
        %2397 = vmatpush2.msra.mxu0 0.0
        %2398 = vmatprep.subr.mxu0 0.0
        %2399 = vmatpush2.msra.mxu0 0.0
        %2400 = vmatprep.subr.mxu0 0.0
        %2401 = vmatpush2.msra.mxu0 0.0
        %2402 = vmatprep.subr.mxu0 0.0
        %2403 = vmatpush2.msra.mxu0 0.0
        %2404 = vmatprep.subr.mxu0 0.0
        %2405 = vmatpush2.msra.mxu0 0.0
        %2406 = vmatprep.subr.mxu0 0.0
        %2407 = vmatpush2.msra.mxu0 0.0
        %2408 = vmatprep.subr.mxu0 0.0
        %2409 = vmatpush2.msra.mxu0 0.0
        %2410 = vmatprep.subr.mxu0 0.0
        %2411 = vmatpush2.msra.mxu0 0.0
        %2412 = vmatprep.subr.mxu0 0.0
        %2413 = vmatpush2.msra.mxu0 0.0
        %2414 = vmatprep.mubr.f32.mxu0 0.0
        %2415 = vmatmul.mubr.f32.gmra.mxu0 %v2332
        %v2416 = vpop.f32.mrf.mxu0
        %v2417 = vadd.f32 %v2349, %v2416
        %v2418 = vpop.f32.mrf.mxu0
        %2419 = vdwg.mxu0
        %2420 = vst [vmem:[%s243] sm:$0x1] %v2417
        %s2421 = sand.u32 %s159, 1
        %s2422 = scalar_lea.sflag [#allocation3], %s2421
        %s2423 = sand.u32 %s159, 1
        %s2424 = scalar_lea.vmem [#allocation2], %s2423
        // Predicated region
        $region45: #{simple_classifier_forward.3} parent=43 // pred_check
          %p2425 = pneg %p169
        $region46: #{simple_classifier_forward.3} parent=43 // pred_check_branch
          %2427 = sbr.rel (%p2425) target = $region48
        $region47: #{simple_classifier_forward.3} parent=43 // pred_region
          %s2429 = ssub.s32 16, 16
          %2430 = vsyncadd %s2422, %s2429
          %s2431 = smul.addr %s20, 16
          %s2432 = scalar_lea.hbm %s6, %s2431
          %s2434 = sshll.u32 %s2424, 4
          %s2435 = int_to_ptr.vmem [resolvable:$true] %s2434
          %2437 = dma.vmem_to_hbm [thread:$0]  %s2435, 16, %s2432, %s2422
        $region48: #{simple_classifier_forward.3} parent=43 // pred_fallthru
          _
      $region44: #{simple_classifier_forward.3} parent=5 // pred_fallthru
        _
      %p2438 = scmp.le.s32.totalorder 2, %s15
      // Predicated region
      $region49: #{simple_classifier_forward.3} parent=5 // pred_check
        %p2439 = pneg %p2438
      $region50: #{simple_classifier_forward.3} parent=5 // pred_check_branch
        %2441 = sbr.rel (%p2439) target = $region52
      $region51: #{simple_classifier_forward.3} parent=5 // pred_region
        %s2442 = ssub.s32 %s15, 2
        // Predicated region
        $region53: #{simple_classifier_forward.3} parent=51 // pred_check
          %p2443 = pneg %p175
        $region54: #{simple_classifier_forward.3} parent=51 // pred_check_branch
          %2445 = sbr.rel (%p2443) target = $region56
        $region55: #{simple_classifier_forward.3} parent=51 // pred_region
          %s2446 = sand.u32 %s160, 1
          %s2447 = scalar_lea.sflag [#allocation3], %s2446
          %s2448 = sand.u32 %s160, 1
          %s2449 = scalar_lea.vmem [#allocation2], %s2448
          %2450 = dma.done %s2447, 16
        $region56: #{simple_classifier_forward.3} parent=51 // pred_fallthru
          _
      $region52: #{simple_classifier_forward.3} parent=5 // pred_fallthru
        _
    $region6: #{simple_classifier_forward.3} parent=1 // loop_footer
      %s19 = sadd.s32 1, %s15
    $region7: #{simple_classifier_forward.3} parent=1 // loop_footer_branch
      %14 = sbr.rel target = $region3
    $region8: #{simple_classifier_forward.3} parent=1 // loop_exit
      _
    %2451 = vsyncpa [#allocation3], 1
    %s2452 = scalar_lea.sflag [#allocation3], 1
    %2453 = vsyncpa %s2452, 1

</llo_original>
